<compile_context>
chip_gen: v7x
topology: tpu7x:2x2x1
jax: 0.10.0
libtpu: 0.0.40
codegen_flags: <defaults>
</compile_context>

<pallas_src>
import jax
import jax.numpy as jnp
from jax import lax
from jax.experimental import pallas as pl
from jax.experimental.pallas import tpu as pltpu

EPS = 1e-5  # nn.BatchNorm2d default


# ----------------------------------------------------------------------------
# Tiling
# ----------------------------------------------------------------------------
def _pick_tile_h(Ho, Wo, Wp, bf, cin, stride):
    """Output-row tile: prefer whole-image tiles (max input reuse, fewest grid
    steps); otherwise the largest divisor of Ho that keeps the output block
    (8,128)-aligned and the f32 scratch modest."""
    c_scr = bf + (cin if stride > 1 else 0)

    def ok(th):
        rows = th * Wo
        scratch = (stride * (th - 1) + 3) * Wp * c_scr * 4
        whole = (Ho // th == 1)
        return ((whole or rows % 128 == 0)
                and (whole or th % 8 == 0)
                and scratch <= (6 << 20) and rows <= 8192)

    for th in sorted((d for d in range(1, Ho + 1) if Ho % d == 0), reverse=True):
        if ok(th):
            return th
    # TODO(synk): very large frames fall back to whole-image tiles; a halo-DMA
    #             (memory_space=pl.ANY) variant would be needed there.
    return Ho


# ----------------------------------------------------------------------------
# Fused InvertedResidual kernel (one pallas_call per forward pass)
# ----------------------------------------------------------------------------
def _build_kernel(*, stride, TH, Wo, R, Hp, Wp, Cin, bf):
    s = stride

    def dotT(w_t, m):
        # (Cb, K) x (M, K)^T -> (Cb, M): channel-major result so the output
        # store is lane-dense along the flattened spatial tile.  Same "NT"
        # contraction pattern the MXU handles natively (q @ k^T form).
        return lax.dot_general(w_t, m, (((1,), (1,)), ((), ())),
                               preferred_element_type=jnp.float32)

    def dw_taps(src_ref, w9, cch):
        # 3x3 depthwise conv: 9 tap reads straight from a (rows, Wp, C) f32
        # VMEM ref; only the strided output positions are read; f32 VPU acc.
        acc = jnp.zeros((TH, Wo, cch), jnp.float32)
        for kh in range(3):
            for kw in range(3):
                if s == 1:
                    patch = src_ref[pl.ds(kh, TH), pl.ds(kw, Wo), :]
                else:
                    patch = src_ref[pl.ds(kh, TH, s), pl.ds(kw, Wo, s), :]
                acc = acc + patch.astype(jnp.float32) * w9[kh * 3 + kw]
        return acc

    def zero_pad_ring(t_ref, r0):
        # pw1(0) + bias != 0, so re-create the zero padding of the pw1 output.
        # Columns are static; rows only matter on the first / last H-tile.
        zc = jnp.zeros((R, 1, bf), jnp.float32)
        t_ref[:, 0:1, :] = zc
        t_ref[:, Wp - 1:Wp, :] = zc

        @pl.when(r0 == 0)
        def _():
            t_ref[0:1, :, :] = jnp.zeros((1, Wp, bf), jnp.float32)

        @pl.when(r0 + R == Hp)
        def _():
            t_ref[R - 1:R, :, :] = jnp.zeros((1, Wp, bf), jnp.float32)

    def branch2(x2d, r0, w21, b21, dw2, w22t, b2, t_ref):
        # pw1 + BN + ReLU (bf16 MXU inputs, f32 accumulation / f32 scratch)
        t = jnp.dot(x2d, w21, preferred_element_type=jnp.float32) + b21
        t_ref[...] = jnp.maximum(t, 0.0).reshape(R, Wp, bf)
        zero_pad_ring(t_ref, r0)
        # dw3x3 with folded BN scale; its BN bias is folded into b2 at init
        acc = dw_taps(t_ref, dw2, bf)
        # pw2 + BN + ReLU, computed channel-major
        return jnp.maximum(
            dotT(w22t, acc.reshape(TH * Wo, bf).astype(jnp.bfloat16)) + b2, 0.0)

    if s == 1:
        def kernel(x2_ref, x1_ref, w21_ref, b21_ref, dw2_ref, w22t_ref, b2_ref,
                   eye_ref, o_ref, t_ref):
            r0 = pl.multiple_of(pl.program_id(1) * TH, TH)
            # branch2 consumes only the padded second channel half (flat rows)
            x2 = x2_ref[pl.ds(r0 * Wp, R * Wp), :]          # (R*Wp, bf) bf16
            y2 = branch2(x2, r0, w21_ref[...], b21_ref[...], dw2_ref[...],
                         w22t_ref[...], b2_ref[...], t_ref)
            # branch1 == identity of the first channel half; the eye matmul just
            # transposes it to channel-major on the otherwise idle MXU so the
            # store stays lane-dense (no widened / zero-interleaved weights).
            x1 = x1_ref[pl.ds(r0 * Wo, TH * Wo), :]         # (TH*Wo, bf) bf16
            y1 = dotT(eye_ref[...], x1)
            o_ref[pl.ds(0, bf), :] = y1.astype(o_ref.dtype)
            o_ref[pl.ds(bf, bf), :] = y2.astype(o_ref.dtype)
        return kernel

    def kernel(x_ref, dw1_ref, w1t_ref, b1_ref, w21_ref, b21_ref, dw2_ref,
               w22t_ref, b2_ref, o_ref, t_ref, x32_ref):
        r0 = pl.multiple_of(pl.program_id(1) * (s * TH), s * TH)
        xb = x_ref[pl.ds(r0 * Wp, R * Wp), :]               # (R*Wp, Cin) bf16
        y2 = branch2(xb, r0, w21_ref[...], b21_ref[...], dw2_ref[...],
                     w22t_ref[...], b2_ref[...], t_ref)
        # branch1: stage the tile in f32 so the 9 strided dw taps stay unit-typed
        # 32-bit VMEM reads, then pw(1x1) + BN + ReLU, channel-major.
        x32_ref[...] = xb.astype(jnp.float32).reshape(R, Wp, Cin)
        acc1 = dw_taps(x32_ref, dw1_ref[...], Cin)
        y1 = jnp.maximum(
            dotT(w1t_ref[...], acc1.reshape(TH * Wo, Cin).astype(jnp.bfloat16))
            + b1_ref[...], 0.0)
        o_ref[pl.ds(0, bf), :] = y1.astype(o_ref.dtype)
        o_ref[pl.ds(bf, bf), :] = y2.astype(o_ref.dtype)
    return kernel


def inverted_residual_pallas(fused, x_nchw, stride):
    N, Cin, H, W = x_nchw.shape
    bf = fused["w22t"].shape[0]
    Cout = 2 * bf
    s = stride
    Ho = (H - 1) // s + 1
    Wo = (W - 1) // s + 1
    Hp, Wp = H + 2, W + 2
    TH = _pick_tile_h(Ho, Wo, Wp, bf, Cin, s)
    n_th = Ho // TH
    R = s * (TH - 1) + 3          # padded input rows needed per output H-tile

    # Hard (8,128) guards for the output row-tile (review correctness note).
    assert Ho % TH == 0
    assert (TH % 8 == 0) or n_th == 1, "H-tile must keep 8-row alignment"
    assert ((TH * Wo) % 128 == 0) or n_th == 1, \
        "flattened spatial tile must keep 128-lane alignment"

    # NCHW -> NHWC in bf16 + zero-pad ring, flattened per image (fused XLA pass).
    xh = jnp.transpose(x_nchw.astype(jnp.bfloat16), (0, 2, 3, 1))
    if s == 1:
        x2f = jnp.pad(xh[..., bf:], ((0, 0), (1, 1), (1, 1), (0, 0)))
        inputs = [x2f.reshape(N, Hp * Wp, bf),
                  xh[..., :bf].reshape(N, H * W, bf)]
        weights = [fused["w21"], fused["b21"], fused["dw2"],
                   fused["w22t"], fused["b2"], fused["eye"]]
        in_specs = [pl.BlockSpec((None, Hp * Wp, bf), lambda n, t: (n, 0, 0)),
                    pl.BlockSpec((None, H * W, bf), lambda n, t: (n, 0, 0))]
        scratch = [pltpu.VMEM((R, Wp, bf), jnp.float32)]
    else:
        xf = jnp.pad(xh, ((0, 0), (1, 1), (1, 1), (0, 0)))
        inputs = [xf.reshape(N, Hp * Wp, Cin)]
        weights = [fused["dw1"], fused["w1t"], fused["b1"],
                   fused["w21"], fused["b21"], fused["dw2"],
                   fused["w22t"], fused["b2"]]
        in_specs = [pl.BlockSpec((None, Hp * Wp, Cin), lambda n, t: (n, 0, 0))]
        scratch = [pltpu.VMEM((R, Wp, bf), jnp.float32),
                   pltpu.VMEM((R, Wp, Cin), jnp.float32)]

    in_specs += [pl.BlockSpec(tuple(w.shape), lambda n, t: (0, 0))
                 for w in weights]
    out_spec = pl.BlockSpec((None, Cout, TH * Wo), lambda n, t: (n, 0, t))

    kernel = _build_kernel(stride=s, TH=TH, Wo=Wo, R=R, Hp=Hp, Wp=Wp,
                           Cin=Cin, bf=bf)

    # Advisory cost estimate so XLA overlaps the boundary transposes with us.
    cin2 = Cin if s > 1 else bf
    flops = 2 * N * n_th * R * Wp * cin2 * bf          # pw1
    flops += 2 * N * Ho * Wo * 9 * bf                  # dw (branch2)
    flops += 2 * N * Ho * Wo * bf * bf                 # pw2
    if s > 1:
        flops += 2 * N * Ho * Wo * 9 * Cin             # dw (branch1)
        flops += 2 * N * Ho * Wo * Cin * bf            # pw (branch1)
    else:
        flops += 2 * N * Ho * Wo * bf * bf             # eye transpose matmul
    w_bytes = sum(int(w.size) * w.dtype.itemsize for w in weights)
    in_bytes = sum(int(a.size) * a.dtype.itemsize for a in inputs)
    bytes_accessed = in_bytes + N * Cout * Ho * Wo * 2 + w_bytes

    # Explicit VMEM budget with headroom (fits v7x's 64 MiB, uses v5e/v6e slack).
    in_block_b = sum(int(a.shape[1]) * int(a.shape[2]) * a.dtype.itemsize
                     for a in inputs)
    out_block_b = Cout * TH * Wo * 2
    scr_b = R * Wp * (bf + (Cin if s > 1 else 0)) * 4
    need = 2 * in_block_b + 2 * out_block_b + 2 * w_bytes + scr_b
    vmem_limit = int(min(48 << 20, max(16 << 20, 2 * need)))

    out = pl.pallas_call(
        kernel,
        out_shape=jax.ShapeDtypeStruct((N, Cout, Ho * Wo), jnp.bfloat16),
        grid=(N, n_th),
        in_specs=in_specs,
        out_specs=out_spec,
        scratch_shapes=scratch,
        compiler_params=pltpu.CompilerParams(
            dimension_semantics=("parallel", "arbitrary"),
            vmem_limit_bytes=vmem_limit),
        cost_estimate=pl.CostEstimate(flops=int(flops), transcendentals=0,
                                      bytes_accessed=int(bytes_accessed)),
    )(*inputs, *weights)

    # Kernel emits [branch1 | branch2] channel halves already in NCHW layout;
    # the groups=2 channel shuffle is one cheap channel permutation here.
    out = out.reshape(N, 2, bf, Ho, Wo)
    return jnp.transpose(out, (0, 2, 1, 3, 4)).reshape(N, Cout, Ho, Wo)


# ----------------------------------------------------------------------------
# Parameter init (matches InvertedResidual.__init__ shapes) + inference folding
# ----------------------------------------------------------------------------
def _bn_params(key, c):
    k1, k2, k3, k4 = jax.random.split(key, 4)
    return dict(
        gamma=1.0 + 0.1 * jax.random.normal(k1, (c,), jnp.float32),
        beta=0.1 * jax.random.normal(k2, (c,), jnp.float32),
        mean=0.1 * jax.random.normal(k3, (c,), jnp.float32),
        var=jnp.abs(1.0 + 0.1 * jax.random.normal(k4, (c,), jnp.float32)),
    )


def init_params(key, inp, oup, stride):
    assert 1 <= stride <= 3
    bf = oup // 2
    assert stride != 1 or inp == bf << 1
    keys = jax.random.split(key, 16)
    params = {}
    if stride > 1:
        params["branch1"] = dict(
            dw_w=0.1 * jax.random.normal(keys[0], (inp, 3, 3), jnp.float32),
            bn1=_bn_params(keys[1], inp),
            pw_w=0.1 * jax.random.normal(keys[2], (bf, inp), jnp.float32),
            bn2=_bn_params(keys[3], bf),
        )
    c_in2 = inp if stride > 1 else bf
    params["branch2"] = dict(
        pw1_w=0.1 * jax.random.normal(keys[4], (bf, c_in2), jnp.float32),
        bn1=_bn_params(keys[5], bf),
        dw_w=0.1 * jax.random.normal(keys[6], (bf, 3, 3), jnp.float32),
        bn2=_bn_params(keys[7], bf),
        pw2_w=0.1 * jax.random.normal(keys[8], (bf, bf), jnp.float32),
        bn3=_bn_params(keys[9], bf),
    )
    return params


def prepare_inference_params(params, stride):
    """Fold BN (eval mode) into conv weights/biases, pre-transpose the 1x1
    weights for the in-kernel layouts, fold the dw-BN bias through the next
    1x1 conv, and cast the MXU-facing weights to bf16.  Done ONCE at init."""
    def fold(bn):
        sc = bn["gamma"] / jnp.sqrt(bn["var"] + EPS)
        return sc, bn["beta"] - bn["mean"] * sc

    def dw9(w_chw, scale):          # (C,3,3) -> (9,C) f32, BN scale folded in
        return (jnp.transpose(w_chw, (1, 2, 0)) * scale).reshape(9, -1)

    p2 = params["branch2"]
    bf = p2["pw2_w"].shape[0]
    s1, c1 = fold(p2["bn1"])
    s2, c2 = fold(p2["bn2"])
    s3, c3 = fold(p2["bn3"])
    w21 = p2["pw1_w"].T * s1[None, :]               # (Cin2, bf)
    w22 = p2["pw2_w"].T * s3[None, :]               # (bf, bf)  (in, out)
    b2 = c2 @ w22 + c3                              # dw-BN bias folded through pw2
    fused = dict(
        w21=w21.astype(jnp.bfloat16),
        b21=c1.reshape(1, bf),                              # f32 row bias (pw1)
        dw2=dw9(p2["dw_w"], s2),                            # (9, bf) f32
        w22t=jnp.transpose(w22).astype(jnp.bfloat16),       # (out, in) for A@B^T
        b2=b2.reshape(bf, 1),                               # f32 channel-major bias
    )
    if stride == 1:
        fused["eye"] = jnp.eye(bf, dtype=jnp.bfloat16)      # MXU transpose, branch1
    else:
        p1 = params["branch1"]
        t1, d1 = fold(p1["bn1"])
        t2, d2 = fold(p1["bn2"])
        w1 = p1["pw_w"].T * t2[None, :]                     # (Cin, bf)
        fused["dw1"] = dw9(p1["dw_w"], t1)                  # (9, Cin) f32
        fused["w1t"] = jnp.transpose(w1).astype(jnp.bfloat16)   # (bf, Cin)
        fused["b1"] = (d1 @ w1 + d2).reshape(bf, 1)
    return fused


# ----------------------------------------------------------------------------
# Pure-JAX reference (mirrors the PyTorch module in NCHW, f32) for validation
# ----------------------------------------------------------------------------
def _bn_ref(x, bn):
    scale = bn["gamma"] / jnp.sqrt(bn["var"] + EPS)
    bias = bn["beta"] - bn["mean"] * scale
    return x * scale.reshape(1, -1, 1, 1) + bias.reshape(1, -1, 1, 1)


def _conv1x1_ref(x, w):
    return lax.conv_general_dilated(
        x, w[:, :, None, None], (1, 1), "VALID",
        dimension_numbers=("NCHW", "OIHW", "NCHW"),
        precision=lax.Precision.HIGHEST)


def _dwconv_ref(x, w, stride):
    C = x.shape[1]
    return lax.conv_general_dilated(
        x, w[:, None, :, :], (stride, stride), [(1, 1), (1, 1)],
        dimension_numbers=("NCHW", "OIHW", "NCHW"),
        feature_group_count=C, precision=lax.Precision.HIGHEST)


def _channel_shuffle_ref(x, groups):
    b, C, h, w = x.shape
    x = x.reshape(b, groups, C // groups, h, w)
    x = jnp.transpose(x, (0, 2, 1, 3, 4))
    return x.reshape(b, C, h, w)


def inverted_residual_ref(params, x, stride):
    def branch1(p, x):
        y = _bn_ref(_dwconv_ref(x, p["dw_w"], stride), p["bn1"])
        return jnp.maximum(_bn_ref(_conv1x1_ref(y, p["pw_w"]), p["bn2"]), 0.0)

    def branch2(p, x):
        y = jnp.maximum(_bn_ref(_conv1x1_ref(x, p["pw1_w"]), p["bn1"]), 0.0)
        y = _bn_ref(_dwconv_ref(y, p["dw_w"], stride), p["bn2"])
        return jnp.maximum(_bn_ref(_conv1x1_ref(y, p["pw2_w"]), p["bn3"]), 0.0)

    if stride == 1:
        c = x.shape[1] // 2
        out = jnp.concatenate([x[:, :c], branch2(params["branch2"], x[:, c:])], axis=1)
    else:
        out = jnp.concatenate(
            [branch1(params["branch1"], x), branch2(params["branch2"], x)], axis=1)
    return _channel_shuffle_ref(out, 2)


# ----------------------------------------------------------------------------
if __name__ == "__main__":
    key = jax.random.PRNGKey(0)
    kx, kp1, kp2 = jax.random.split(key, 3)

    N, C, H, W = 2, 8, 16, 16
    x = jax.random.normal(kx, (N, C, H, W), jnp.float32)

    # stride = 1: identity branch + branch2, inp == oup == 2 * branch_features
    params1 = init_params(kp1, inp=C, oup=C, stride=1)
    fused1 = prepare_inference_params(params1, stride=1)
    fwd1 = jax.jit(lambda f, a: inverted_residual_pallas(f, a, 1))
    out1 = jax.block_until_ready(fwd1(fused1, x))
    ref1 = inverted_residual_ref(params1, x, 1)
    assert out1.shape == (N, C, H, W)
    # bf16 storage for activations/weights -> bf16-appropriate tolerances vs f32 ref
    assert jnp.allclose(out1.astype(jnp.float32), ref1, atol=3e-2, rtol=3e-2), \
        "stride=1 mismatch"

    # stride = 2: both branches active, spatial dims halve, channels -> oup
    oup2 = 16
    params2 = init_params(kp2, inp=C, oup=oup2, stride=2)
    fused2 = prepare_inference_params(params2, stride=2)
    fwd2 = jax.jit(lambda f, a: inverted_residual_pallas(f, a, 2))
    out2 = jax.block_until_ready(fwd2(fused2, x))
    ref2 = inverted_residual_ref(params2, x, 2)
    assert out2.shape == (N, oup2, H // 2, W // 2)
    assert jnp.allclose(out2.astype(jnp.float32), ref2, atol=3e-2, rtol=3e-2), \
        "stride=2 mismatch"

    print("KERNEL_OK")
</pallas_src>

<mosaic_0001>
module attributes {stable_mosaic.version = 11 : i64} {
  func.func @kernel(%arg0: i32, %arg1: i32, %arg2: memref<1x324x4xbf16, #tpu.memory_space<vmem>>, %arg3: memref<1x256x4xbf16, #tpu.memory_space<vmem>>, %arg4: memref<4x4xbf16, #tpu.memory_space<vmem>>, %arg5: memref<1x4xf32, #tpu.memory_space<vmem>>, %arg6: memref<9x4xf32, #tpu.memory_space<vmem>>, %arg7: memref<4x4xbf16, #tpu.memory_space<vmem>>, %arg8: memref<4x1xf32, #tpu.memory_space<vmem>>, %arg9: memref<4x4xbf16, #tpu.memory_space<vmem>>, %arg10: memref<1x8x256xbf16, #tpu.memory_space<vmem>>, %arg11: memref<18x18x4xf32, #tpu.memory_space<vmem>>) attributes {dimension_semantics = [#tpu.dimension_semantics<parallel>, #tpu.dimension_semantics<arbitrary>], iteration_bounds = array<i64: 2, 1>, scalar_prefetch = 0 : i64, scratch_operands = 1 : i64, tpu.core_type = #tpu.core_type<tc>, window_params = [{transform_indices = @transform_0, window_bounds = array<i64: 1, 324, 4>}, {transform_indices = @transform_1, window_bounds = array<i64: 1, 256, 4>}, {pipeline_mode = #tpu.pipeline_mode<synchronous>, transform_indices = @transform_2, window_bounds = array<i64: 4, 4>}, {pipeline_mode = #tpu.pipeline_mode<synchronous>, transform_indices = @transform_3, window_bounds = array<i64: 1, 4>}, {pipeline_mode = #tpu.pipeline_mode<synchronous>, transform_indices = @transform_4, window_bounds = array<i64: 9, 4>}, {pipeline_mode = #tpu.pipeline_mode<synchronous>, transform_indices = @transform_5, window_bounds = array<i64: 4, 4>}, {pipeline_mode = #tpu.pipeline_mode<synchronous>, transform_indices = @transform_6, window_bounds = array<i64: 4, 1>}, {pipeline_mode = #tpu.pipeline_mode<synchronous>, transform_indices = @transform_7, window_bounds = array<i64: 4, 4>}, {transform_indices = @transform_8, window_bounds = array<i64: 1, 8, 256>}]} {
    %c16_i32 = arith.constant 16 : i32
    %0 = arith.muli %arg1, %c16_i32 : i32
    %1 = tpu.assume_multiple %0, 16 : i32
    %c18_i32 = arith.constant 18 : i32
    %2 = arith.muli %1, %c18_i32 : i32
    %c0 = arith.constant 0 : index
    %3 = arith.index_cast %2 : i32 to index
    %c0_0 = arith.constant 0 : index
    %4 = vector.load %arg2[%c0, %3, %c0_0] : memref<1x324x4xbf16, #tpu.memory_space<vmem>>, vector<1x324x4xbf16>
    %5 = vector.shape_cast %4 : vector<1x324x4xbf16> to vector<324x4xbf16>
    %c0_1 = arith.constant 0 : index
    %c0_2 = arith.constant 0 : index
    %6 = vector.load %arg4[%c0_1, %c0_2] : memref<4x4xbf16, #tpu.memory_space<vmem>>, vector<4x4xbf16>
    %c0_3 = arith.constant 0 : index
    %c0_4 = arith.constant 0 : index
    %7 = vector.load %arg5[%c0_3, %c0_4] : memref<1x4xf32, #tpu.memory_space<vmem>>, vector<1x4xf32>
    %c0_5 = arith.constant 0 : index
    %c0_6 = arith.constant 0 : index
    %8 = vector.load %arg6[%c0_5, %c0_6] : memref<9x4xf32, #tpu.memory_space<vmem>>, vector<9x4xf32>
    %c0_7 = arith.constant 0 : index
    %c0_8 = arith.constant 0 : index
    %9 = vector.load %arg7[%c0_7, %c0_8] : memref<4x4xbf16, #tpu.memory_space<vmem>>, vector<4x4xbf16>
    %c0_9 = arith.constant 0 : index
    %c0_10 = arith.constant 0 : index
    %10 = vector.load %arg8[%c0_9, %c0_10] : memref<4x1xf32, #tpu.memory_space<vmem>>, vector<4x1xf32>
    %cst = arith.constant dense<0.000000e+00> : vector<324x4xf32>
    %11 = tpu.matmul %5, %6, %cst {dimension_numbers = #tpu.dot_dimension_numbers<[1], [0], [0], [1], [0, 0, 1, 1], [], []>} : vector<324x4xbf16>, vector<4x4xbf16>, vector<324x4xf32> -> vector<324x4xf32>
    %12 = vector.broadcast %7 : vector<1x4xf32> to vector<324x4xf32>
    %13 = arith.addf %11, %12 : vector<324x4xf32>
    %cst_11 = arith.constant 0.000000e+00 : f32
    %14 = vector.broadcast %cst_11 : f32 to vector<324x4xf32>
    %15 = arith.maximumf %13, %14 : vector<324x4xf32>
    %16 = vector.shape_cast %15 : vector<324x4xf32> to vector<18x18x4xf32>
    %c0_12 = arith.constant 0 : index
    %c0_13 = arith.constant 0 : index
    %c0_14 = arith.constant 0 : index
    %17 = vector.load %arg11[%c0_12, %c0_13, %c0_14] : memref<18x18x4xf32, #tpu.memory_space<vmem>>, vector<18x18x4xf32>
    tpu.vector_store %arg11[%c0_12, %c0_13, %c0_14], %16 {strides = array<i32>} : memref<18x18x4xf32, #tpu.memory_space<vmem>>, vector<18x18x4xf32>,
    %cst_15 = arith.constant 0.000000e+00 : f32
    %18 = vector.broadcast %cst_15 : f32 to vector<18x1x4xf32>
    %c0_16 = arith.constant 0 : index
    %c0_17 = arith.constant 0 : index
    %c0_18 = arith.constant 0 : index
    %19 = vector.load %arg11[%c0_16, %c0_17, %c0_18] : memref<18x18x4xf32, #tpu.memory_space<vmem>>, vector<18x1x4xf32>
    tpu.vector_store %arg11[%c0_16, %c0_17, %c0_18], %18 {strides = array<i32>} : memref<18x18x4xf32, #tpu.memory_space<vmem>>, vector<18x1x4xf32>,
    %c0_19 = arith.constant 0 : index
    %c17 = arith.constant 17 : index
    %c0_20 = arith.constant 0 : index
    %20 = vector.load %arg11[%c0_19, %c17, %c0_20] : memref<18x18x4xf32, #tpu.memory_space<vmem>>, vector<18x1x4xf32>
    tpu.vector_store %arg11[%c0_19, %c17, %c0_20], %18 {strides = array<i32>} : memref<18x18x4xf32, #tpu.memory_space<vmem>>, vector<18x1x4xf32>,
    %c0_i32 = arith.constant 0 : i32
    %21 = arith.cmpi eq, %1, %c0_i32 : i32
    %22 = arith.extui %21 : i1 to i32
    %c0_i32_21 = arith.constant 0 : i32
    %23 = arith.cmpi ne, %22, %c0_i32_21 : i32
    scf.if %23 {
      %cst_64 = arith.constant 0.000000e+00 : f32
      %113 = vector.broadcast %cst_64 : f32 to vector<1x18x4xf32>
      %c0_65 = arith.constant 0 : index
      %c0_66 = arith.constant 0 : index
      %c0_67 = arith.constant 0 : index
      %114 = vector.load %arg11[%c0_65, %c0_66, %c0_67] : memref<18x18x4xf32, #tpu.memory_space<vmem>>, vector<1x18x4xf32>
      tpu.vector_store %arg11[%c0_65, %c0_66, %c0_67], %113 {strides = array<i32>} : memref<18x18x4xf32, #tpu.memory_space<vmem>>, vector<1x18x4xf32>,
    } else {
    }
    %c18_i32_22 = arith.constant 18 : i32
    %24 = arith.addi %1, %c18_i32_22 : i32
    %c18_i32_23 = arith.constant 18 : i32
    %25 = arith.cmpi eq, %24, %c18_i32_23 : i32
    %26 = arith.extui %25 : i1 to i32
    %c0_i32_24 = arith.constant 0 : i32
    %27 = arith.cmpi ne, %26, %c0_i32_24 : i32
    scf.if %27 {
      %cst_64 = arith.constant 0.000000e+00 : f32
      %113 = vector.broadcast %cst_64 : f32 to vector<1x18x4xf32>
      %c17_65 = arith.constant 17 : index
      %c0_66 = arith.constant 0 : index
      %c0_67 = arith.constant 0 : index
      %114 = vector.load %arg11[%c17_65, %c0_66, %c0_67] : memref<18x18x4xf32, #tpu.memory_space<vmem>>, vector<1x18x4xf32>
      tpu.vector_store %arg11[%c17_65, %c0_66, %c0_67], %113 {strides = array<i32>} : memref<18x18x4xf32, #tpu.memory_space<vmem>>, vector<1x18x4xf32>,
    } else {
    }
    %cst_25 = arith.constant 0.000000e+00 : f32
    %28 = vector.broadcast %cst_25 : f32 to vector<16x16x4xf32>
    %c0_26 = arith.constant 0 : index
    %c0_27 = arith.constant 0 : index
    %c0_28 = arith.constant 0 : index
    %29 = vector.load %arg11[%c0_26, %c0_27, %c0_28] : memref<18x18x4xf32, #tpu.memory_space<vmem>>, vector<16x16x4xf32>
    %30 = vector.extract_strided_slice %8 {offsets = [0, 0], sizes = [1, 4], strides = [1, 1]} : vector<9x4xf32> to vector<1x4xf32>
    %31 = vector.shape_cast %30 : vector<1x4xf32> to vector<4xf32>
    %32 = vector.shape_cast %31 : vector<4xf32> to vector<1x1x4xf32>
    %33 = vector.broadcast %32 : vector<1x1x4xf32> to vector<16x16x4xf32>
    %34 = arith.mulf %29, %33 : vector<16x16x4xf32>
    %35 = arith.addf %28, %34 : vector<16x16x4xf32>
    %c0_29 = arith.constant 0 : index
    %c1 = arith.constant 1 : index
    %c0_30 = arith.constant 0 : index
    %36 = vector.load %arg11[%c0_29, %c1, %c0_30] : memref<18x18x4xf32, #tpu.memory_space<vmem>>, vector<16x16x4xf32>
    %37 = vector.extract_strided_slice %8 {offsets = [1, 0], sizes = [1, 4], strides = [1, 1]} : vector<9x4xf32> to vector<1x4xf32>
    %38 = vector.shape_cast %37 : vector<1x4xf32> to vector<4xf32>
    %39 = vector.shape_cast %38 : vector<4xf32> to vector<1x1x4xf32>
    %40 = vector.broadcast %39 : vector<1x1x4xf32> to vector<16x16x4xf32>
    %41 = arith.mulf %36, %40 : vector<16x16x4xf32>
    %42 = arith.addf %35, %41 : vector<16x16x4xf32>
    %c0_31 = arith.constant 0 : index
    %c2 = arith.constant 2 : index
    %c0_32 = arith.constant 0 : index
    %43 = vector.load %arg11[%c0_31, %c2, %c0_32] : memref<18x18x4xf32, #tpu.memory_space<vmem>>, vector<16x16x4xf32>
    %44 = vector.extract_strided_slice %8 {offsets = [2, 0], sizes = [1, 4], strides = [1, 1]} : vector<9x4xf32> to vector<1x4xf32>
    %45 = vector.shape_cast %44 : vector<1x4xf32> to vector<4xf32>
    %46 = vector.shape_cast %45 : vector<4xf32> to vector<1x1x4xf32>
    %47 = vector.broadcast %46 : vector<1x1x4xf32> to vector<16x16x4xf32>
    %48 = arith.mulf %43, %47 : vector<16x16x4xf32>
    %49 = arith.addf %42, %48 : vector<16x16x4xf32>
    %c1_33 = arith.constant 1 : index
    %c0_34 = arith.constant 0 : index
    %c0_35 = arith.constant 0 : index
    %50 = vector.load %arg11[%c1_33, %c0_34, %c0_35] : memref<18x18x4xf32, #tpu.memory_space<vmem>>, vector<16x16x4xf32>
    %51 = vector.extract_strided_slice %8 {offsets = [3, 0], sizes = [1, 4], strides = [1, 1]} : vector<9x4xf32> to vector<1x4xf32>
    %52 = vector.shape_cast %51 : vector<1x4xf32> to vector<4xf32>
    %53 = vector.shape_cast %52 : vector<4xf32> to vector<1x1x4xf32>
    %54 = vector.broadcast %53 : vector<1x1x4xf32> to vector<16x16x4xf32>
    %55 = arith.mulf %50, %54 : vector<16x16x4xf32>
    %56 = arith.addf %49, %55 : vector<16x16x4xf32>
    %c1_36 = arith.constant 1 : index
    %c1_37 = arith.constant 1 : index
    %c0_38 = arith.constant 0 : index
    %57 = vector.load %arg11[%c1_36, %c1_37, %c0_38] : memref<18x18x4xf32, #tpu.memory_space<vmem>>, vector<16x16x4xf32>
    %58 = vector.extract_strided_slice %8 {offsets = [4, 0], sizes = [1, 4], strides = [1, 1]} : vector<9x4xf32> to vector<1x4xf32>
    %59 = vector.shape_cast %58 : vector<1x4xf32> to vector<4xf32>
    %60 = vector.shape_cast %59 : vector<4xf32> to vector<1x1x4xf32>
    %61 = vector.broadcast %60 : vector<1x1x4xf32> to vector<16x16x4xf32>
    %62 = arith.mulf %57, %61 : vector<16x16x4xf32>
    %63 = arith.addf %56, %62 : vector<16x16x4xf32>
    %c1_39 = arith.constant 1 : index
    %c2_40 = arith.constant 2 : index
    %c0_41 = arith.constant 0 : index
    %64 = vector.load %arg11[%c1_39, %c2_40, %c0_41] : memref<18x18x4xf32, #tpu.memory_space<vmem>>, vector<16x16x4xf32>
    %65 = vector.extract_strided_slice %8 {offsets = [5, 0], sizes = [1, 4], strides = [1, 1]} : vector<9x4xf32> to vector<1x4xf32>
    %66 = vector.shape_cast %65 : vector<1x4xf32> to vector<4xf32>
    %67 = vector.shape_cast %66 : vector<4xf32> to vector<1x1x4xf32>
    %68 = vector.broadcast %67 : vector<1x1x4xf32> to vector<16x16x4xf32>
    %69 = arith.mulf %64, %68 : vector<16x16x4xf32>
    %70 = arith.addf %63, %69 : vector<16x16x4xf32>
    %c2_42 = arith.constant 2 : index
    %c0_43 = arith.constant 0 : index
    %c0_44 = arith.constant 0 : index
    %71 = vector.load %arg11[%c2_42, %c0_43, %c0_44] : memref<18x18x4xf32, #tpu.memory_space<vmem>>, vector<16x16x4xf32>
    %72 = vector.extract_strided_slice %8 {offsets = [6, 0], sizes = [1, 4], strides = [1, 1]} : vector<9x4xf32> to vector<1x4xf32>
    %73 = vector.shape_cast %72 : vector<1x4xf32> to vector<4xf32>
    %74 = vector.shape_cast %73 : vector<4xf32> to vector<1x1x4xf32>
    %75 = vector.broadcast %74 : vector<1x1x4xf32> to vector<16x16x4xf32>
    %76 = arith.mulf %71, %75 : vector<16x16x4xf32>
    %77 = arith.addf %70, %76 : vector<16x16x4xf32>
    %c2_45 = arith.constant 2 : index
    %c1_46 = arith.constant 1 : index
    %c0_47 = arith.constant 0 : index
    %78 = vector.load %arg11[%c2_45, %c1_46, %c0_47] : memref<18x18x4xf32, #tpu.memory_space<vmem>>, vector<16x16x4xf32>
    %79 = vector.extract_strided_slice %8 {offsets = [7, 0], sizes = [1, 4], strides = [1, 1]} : vector<9x4xf32> to vector<1x4xf32>
    %80 = vector.shape_cast %79 : vector<1x4xf32> to vector<4xf32>
    %81 = vector.shape_cast %80 : vector<4xf32> to vector<1x1x4xf32>
    %82 = vector.broadcast %81 : vector<1x1x4xf32> to vector<16x16x4xf32>
    %83 = arith.mulf %78, %82 : vector<16x16x4xf32>
    %84 = arith.addf %77, %83 : vector<16x16x4xf32>
    %c2_48 = arith.constant 2 : index
    %c2_49 = arith.constant 2 : index
    %c0_50 = arith.constant 0 : index
    %85 = vector.load %arg11[%c2_48, %c2_49, %c0_50] : memref<18x18x4xf32, #tpu.memory_space<vmem>>, vector<16x16x4xf32>
    %86 = vector.extract_strided_slice %8 {offsets = [8, 0], sizes = [1, 4], strides = [1, 1]} : vector<9x4xf32> to vector<1x4xf32>
    %87 = vector.shape_cast %86 : vector<1x4xf32> to vector<4xf32>
    %88 = vector.shape_cast %87 : vector<4xf32> to vector<1x1x4xf32>
    %89 = vector.broadcast %88 : vector<1x1x4xf32> to vector<16x16x4xf32>
    %90 = arith.mulf %85, %89 : vector<16x16x4xf32>
    %91 = arith.addf %84, %90 : vector<16x16x4xf32>
    %92 = vector.shape_cast %91 : vector<16x16x4xf32> to vector<256x4xf32>
    %93 = arith.truncf %92 : vector<256x4xf32> to vector<256x4xbf16>
    %cst_51 = arith.constant dense<0.000000e+00> : vector<4x256xf32>
    %94 = tpu.matmul %9, %93, %cst_51 {dimension_numbers = #tpu.dot_dimension_numbers<[1], [1], [0], [0], [0, 0, 1, 0], [], []>} : vector<4x4xbf16>, vector<256x4xbf16>, vector<4x256xf32> -> vector<4x256xf32>
    %95 = vector.broadcast %10 : vector<4x1xf32> to vector<4x256xf32>
    %96 = arith.addf %94, %95 : vector<4x256xf32>
    %cst_52 = arith.constant 0.000000e+00 : f32
    %97 = vector.broadcast %cst_52 : f32 to vector<4x256xf32>
    %98 = arith.maximumf %96, %97 : vector<4x256xf32>
    %c16_i32_53 = arith.constant 16 : i32
    %99 = arith.muli %1, %c16_i32_53 : i32
    %c0_54 = arith.constant 0 : index
    %100 = arith.index_cast %99 : i32 to index
    %c0_55 = arith.constant 0 : index
    %101 = vector.load %arg3[%c0_54, %100, %c0_55] : memref<1x256x4xbf16, #tpu.memory_space<vmem>>, vector<1x256x4xbf16>
    %102 = vector.shape_cast %101 : vector<1x256x4xbf16> to vector<256x4xbf16>
    %c0_56 = arith.constant 0 : index
    %c0_57 = arith.constant 0 : index
    %103 = vector.load %arg9[%c0_56, %c0_57] : memref<4x4xbf16, #tpu.memory_space<vmem>>, vector<4x4xbf16>
    %cst_58 = arith.constant dense<0.000000e+00> : vector<4x256xf32>
    %104 = tpu.matmul %103, %102, %cst_58 {dimension_numbers = #tpu.dot_dimension_numbers<[1], [1], [0], [0], [0, 0, 1, 0], [], []>} : vector<4x4xbf16>, vector<256x4xbf16>, vector<4x256xf32> -> vector<4x256xf32>
    %105 = arith.truncf %104 : vector<4x256xf32> to vector<4x256xbf16>
    %c0_59 = arith.constant 0 : index
    %c0_60 = arith.constant 0 : index
    %c0_61 = arith.constant 0 : index
    %106 = vector.load %arg10[%c0_59, %c0_60, %c0_61] : memref<1x8x256xbf16, #tpu.memory_space<vmem>>, vector<1x4x256xbf16>
    %107 = vector.shape_cast %106 : vector<1x4x256xbf16> to vector<4x256xbf16>
    %108 = vector.shape_cast %105 : vector<4x256xbf16> to vector<1x4x256xbf16>
    tpu.vector_store %arg10[%c0_59, %c0_60, %c0_61], %108 {strides = array<i32>} : memref<1x8x256xbf16, #tpu.memory_space<vmem>>, vector<1x4x256xbf16>,
    %109 = arith.truncf %98 : vector<4x256xf32> to vector<4x256xbf16>
    %c0_62 = arith.constant 0 : index
    %c4 = arith.constant 4 : index
    %c0_63 = arith.constant 0 : index
    %110 = vector.load %arg10[%c0_62, %c4, %c0_63] : memref<1x8x256xbf16, #tpu.memory_space<vmem>>, vector<1x4x256xbf16>
    %111 = vector.shape_cast %110 : vector<1x4x256xbf16> to vector<4x256xbf16>
    %112 = vector.shape_cast %109 : vector<4x256xbf16> to vector<1x4x256xbf16>
    tpu.vector_store %arg10[%c0_62, %c4, %c0_63], %112 {strides = array<i32>} : memref<1x8x256xbf16, #tpu.memory_space<vmem>>, vector<1x4x256xbf16>,
    return
  }
  func.func @transform_0(%arg0: i32, %arg1: i32) -> (i32, i32, i32) {
    %c0_i32 = arith.constant 0 : i32
    %c0_i32_0 = arith.constant 0 : i32
    %c0_i32_1 = arith.constant 0 : i32
    return %arg0, %c0_i32, %c0_i32_0 : i32, i32, i32
  }
  func.func @transform_1(%arg0: i32, %arg1: i32) -> (i32, i32, i32) {
    %c0_i32 = arith.constant 0 : i32
    %c0_i32_0 = arith.constant 0 : i32
    %c0_i32_1 = arith.constant 0 : i32
    return %arg0, %c0_i32, %c0_i32_0 : i32, i32, i32
  }
  func.func @transform_2(%arg0: i32, %arg1: i32) -> (i32, i32) {
    %c0_i32 = arith.constant 0 : i32
    %c0_i32_0 = arith.constant 0 : i32
    %c0_i32_1 = arith.constant 0 : i32
    return %c0_i32, %c0_i32_0 : i32, i32
  }
  func.func @transform_3(%arg0: i32, %arg1: i32) -> (i32, i32) {
    %c0_i32 = arith.constant 0 : i32
    %c0_i32_0 = arith.constant 0 : i32
    %c0_i32_1 = arith.constant 0 : i32
    return %c0_i32, %c0_i32_0 : i32, i32
  }
  func.func @transform_4(%arg0: i32, %arg1: i32) -> (i32, i32) {
    %c0_i32 = arith.constant 0 : i32
    %c0_i32_0 = arith.constant 0 : i32
    %c0_i32_1 = arith.constant 0 : i32
    return %c0_i32, %c0_i32_0 : i32, i32
  }
  func.func @transform_5(%arg0: i32, %arg1: i32) -> (i32, i32) {
    %c0_i32 = arith.constant 0 : i32
    %c0_i32_0 = arith.constant 0 : i32
    %c0_i32_1 = arith.constant 0 : i32
    return %c0_i32, %c0_i32_0 : i32, i32
  }
  func.func @transform_6(%arg0: i32, %arg1: i32) -> (i32, i32) {
    %c0_i32 = arith.constant 0 : i32
    %c0_i32_0 = arith.constant 0 : i32
    %c0_i32_1 = arith.constant 0 : i32
    return %c0_i32, %c0_i32_0 : i32, i32
  }
  func.func @transform_7(%arg0: i32, %arg1: i32) -> (i32, i32) {
    %c0_i32 = arith.constant 0 : i32
    %c0_i32_0 = arith.constant 0 : i32
    %c0_i32_1 = arith.constant 0 : i32
    return %c0_i32, %c0_i32_0 : i32, i32
  }
  func.func @transform_8(%arg0: i32, %arg1: i32) -> (i32, i32, i32) {
    %c0_i32 = arith.constant 0 : i32
    %c0_i32_0 = arith.constant 0 : i32
    return %arg0, %c0_i32, %arg1 : i32, i32, i32
  }
}

</mosaic_0001>

<llo_original>
// kernel: _lambda_.1
$region0: #{_lambda_.1}
  #allocation0 [shape = 'u32[]', space=smem, size = 0x4, offset = 0x4, fixed_abs, tag = 'smem constant byte address 0x4 - core index']
  #allocation1 [shape = 'u32[144,128]{1,0:T(1,128)}', space=vmem, size = 0x12000, scoped, tag = 'internal scratch']
  #allocation2 [shape = 'f32[18,18,4]{2,1,0:T(8,128)}', space=vmem, size = 0x36000, scoped, tag = 'scratch operand']
  %s0 = inlined_call_operand.vmem [shape: bf16[2,324,4], index: 0, kind: input, shape index: {}]
  %s1 = inlined_call_operand.vmem [shape: bf16[2,256,4], index: 1, kind: input, shape index: {}]
  %s2 = inlined_call_operand.vmem [shape: bf16[4,4], index: 2, kind: input, shape index: {}]
  %s3 = inlined_call_operand.vmem [shape: f32[1,4], index: 3, kind: input, shape index: {}]
  %s4 = inlined_call_operand.vmem [shape: f32[9,4], index: 4, kind: input, shape index: {}]
  %s5 = inlined_call_operand.vmem [shape: bf16[4,4], index: 5, kind: input, shape index: {}]
  %s6 = inlined_call_operand.vmem [shape: f32[4,1], index: 6, kind: input, shape index: {}]
  %s7 = inlined_call_operand.vmem [shape: bf16[4,4], index: 7, kind: input, shape index: {}]
  %s8 = inlined_call_operand.vmem [shape: bf16[2,8,256], index: 8, kind: output, shape index: {}]
  %s9 = sld [smem:[#allocation0]]
  $region73: #{_lambda_.1} parent=0
    _
  %s11 = ssub.s32 1, %s9
  %s12 = scalar_select 0, %s11, %s9
  loop: start=0, step=1, limit=4
  $region2: #{_lambda_.1} parent=0 // loop_pre_header
    _
  $region3: #{_lambda_.1} parent=0 // loop_header
    %s14 = sphi 0, %s18
    %p15 = scmp.ge.s32.totalorder %s14, 4
    %s21 = sphi 0, %s33
    %s22 = sphi 0, %s29
    %s23 = sphi 0, %s21
    %s24 = sphi 0, %s22
    %s25 = sphi 0, %s23
    %s26 = sphi 0, %s24
    %s36 = sphi 0, %s38
    %s39 = sphi 0, %s36
    %s40 = sphi 0, %s39
    %s56 = sphi 0, %s40
    %s62 = sphi 0, %s64
    %s65 = sphi 0, %s62
    %s66 = sphi 0, %s65
    %s82 = sphi 0, %s66
    %s86 = sphi 0, %s86
    %s88 = sphi 0, %s86
    %s89 = sphi 0, %s88
    %s103 = sphi 0, %s89
    %s107 = sphi 0, %s107
    %s109 = sphi 0, %s107
    %s110 = sphi 0, %s109
    %s124 = sphi 0, %s110
    %s128 = sphi 0, %s128
    %s130 = sphi 0, %s128
    %s131 = sphi 0, %s130
    %s145 = sphi 0, %s131
    %s149 = sphi 0, %s149
    %s151 = sphi 0, %s149
    %s152 = sphi 0, %s151
    %s166 = sphi 0, %s152
    %s170 = sphi 0, %s170
    %s172 = sphi 0, %s170
    %s173 = sphi 0, %s172
    %s187 = sphi 0, %s173
    %s191 = sphi 0, %s191
    %s193 = sphi 0, %s191
    %s194 = sphi 0, %s193
    %s208 = sphi 0, %s194
    %s216 = sphi 0, %s218
    %s219 = sphi 0, %s216
    %s220 = sphi 0, %s219
    %s236 = sphi 0, %s220
  $region4: #{_lambda_.1} parent=0 // loop_header_branch
    %17 = sbr.rel (%p15) target = $region8
  $region5: #{_lambda_.1} parent=0 // loop_body
    %s19 = ssub.s32 %s14, 1
    %s20 = ssub.s32 %s14, 2
    %s27 = sadd.s32 1, %s22
    %p28 = scmp.ge.s32.totalorder %s27, 1
    %s29 = scalar_select %p28, 0, %s27
    %s30 = sadd.s32 1, %s21
    %s31 = scalar_select %p28, %s30, %s21
    %p32 = scmp.ge.s32.totalorder %s31, 2
    %s33 = scalar_select %p32, 0, %s31
    %s34 = ssub.s32 %s21, %s33
    %p35 = scmp.eq.s32.totalorder %s34, 0
    %s37 = sadd.s32 %s36, 1
    %s38 = scalar_select %p35, %s36, %s37
    %p41 = pneg %p35
    %p42 = scmp.eq.s32.totalorder %s14, 1
    %p43 = por %p41, %p42
    %p44 = scmp.ne.s32.totalorder %s36, %s39
    %p45 = scmp.eq.s32.totalorder %s14, 0
    %p46 = por %p44, %p45
    %p47 = scmp.ne.s32.totalorder %s36, %s39
    %p48 = scmp.eq.s32.totalorder %s19, 1
    %p49 = por %p47, %p48
    %p50 = scmp.ne.s32.totalorder %s39, %s40
    %p51 = scmp.eq.s32.totalorder %s19, 0
    %p52 = por %p50, %p51
    %p53 = scmp.ne.s32.totalorder %s39, %s40
    %p54 = scmp.eq.s32.totalorder %s20, 1
    %p55 = por %p53, %p54
    %p57 = scmp.ne.s32.totalorder %s40, %s56
    %p58 = scmp.eq.s32.totalorder %s20, 0
    %p59 = por %p57, %p58
    %s60 = ssub.s32 %s21, %s33
    %p61 = scmp.eq.s32.totalorder %s60, 0
    %s63 = sadd.s32 %s62, 1
    %s64 = scalar_select %p61, %s62, %s63
    %p67 = pneg %p61
    %p68 = scmp.eq.s32.totalorder %s14, 1
    %p69 = por %p67, %p68
    %p70 = scmp.ne.s32.totalorder %s62, %s65
    %p71 = scmp.eq.s32.totalorder %s14, 0
    %p72 = por %p70, %p71
    %p73 = scmp.ne.s32.totalorder %s62, %s65
    %p74 = scmp.eq.s32.totalorder %s19, 1
    %p75 = por %p73, %p74
    %p76 = scmp.ne.s32.totalorder %s65, %s66
    %p77 = scmp.eq.s32.totalorder %s19, 0
    %p78 = por %p76, %p77
    %p79 = scmp.ne.s32.totalorder %s65, %s66
    %p80 = scmp.eq.s32.totalorder %s20, 1
    %p81 = por %p79, %p80
    %p83 = scmp.ne.s32.totalorder %s66, %s82
    %p84 = scmp.eq.s32.totalorder %s20, 0
    %p85 = por %p83, %p84
    %s87 = sadd.s32 %s86, 1
    %p90 = scmp.eq.s32.totalorder %s14, 1
    %p91 = scmp.ne.s32.totalorder %s86, %s88
    %p92 = scmp.eq.s32.totalorder %s14, 0
    %p93 = por %p91, %p92
    %p94 = scmp.ne.s32.totalorder %s86, %s88
    %p95 = scmp.eq.s32.totalorder %s19, 1
    %p96 = por %p94, %p95
    %p97 = scmp.ne.s32.totalorder %s88, %s89
    %p98 = scmp.eq.s32.totalorder %s19, 0
    %p99 = por %p97, %p98
    %p100 = scmp.ne.s32.totalorder %s88, %s89
    %p101 = scmp.eq.s32.totalorder %s20, 1
    %p102 = por %p100, %p101
    %p104 = scmp.ne.s32.totalorder %s89, %s103
    %p105 = scmp.eq.s32.totalorder %s20, 0
    %p106 = por %p104, %p105
    %s108 = sadd.s32 %s107, 1
    %p111 = scmp.eq.s32.totalorder %s14, 1
    %p112 = scmp.ne.s32.totalorder %s107, %s109
    %p113 = scmp.eq.s32.totalorder %s14, 0
    %p114 = por %p112, %p113
    %p115 = scmp.ne.s32.totalorder %s107, %s109
    %p116 = scmp.eq.s32.totalorder %s19, 1
    %p117 = por %p115, %p116
    %p118 = scmp.ne.s32.totalorder %s109, %s110
    %p119 = scmp.eq.s32.totalorder %s19, 0
    %p120 = por %p118, %p119
    %p121 = scmp.ne.s32.totalorder %s109, %s110
    %p122 = scmp.eq.s32.totalorder %s20, 1
    %p123 = por %p121, %p122
    %p125 = scmp.ne.s32.totalorder %s110, %s124
    %p126 = scmp.eq.s32.totalorder %s20, 0
    %p127 = por %p125, %p126
    %s129 = sadd.s32 %s128, 1
    %p132 = scmp.eq.s32.totalorder %s14, 1
    %p133 = scmp.ne.s32.totalorder %s128, %s130
    %p134 = scmp.eq.s32.totalorder %s14, 0
    %p135 = por %p133, %p134
    %p136 = scmp.ne.s32.totalorder %s128, %s130
    %p137 = scmp.eq.s32.totalorder %s19, 1
    %p138 = por %p136, %p137
    %p139 = scmp.ne.s32.totalorder %s130, %s131
    %p140 = scmp.eq.s32.totalorder %s19, 0
    %p141 = por %p139, %p140
    %p142 = scmp.ne.s32.totalorder %s130, %s131
    %p143 = scmp.eq.s32.totalorder %s20, 1
    %p144 = por %p142, %p143
    %p146 = scmp.ne.s32.totalorder %s131, %s145
    %p147 = scmp.eq.s32.totalorder %s20, 0
    %p148 = por %p146, %p147
    %s150 = sadd.s32 %s149, 1
    %p153 = scmp.eq.s32.totalorder %s14, 1
    %p154 = scmp.ne.s32.totalorder %s149, %s151
    %p155 = scmp.eq.s32.totalorder %s14, 0
    %p156 = por %p154, %p155
    %p157 = scmp.ne.s32.totalorder %s149, %s151
    %p158 = scmp.eq.s32.totalorder %s19, 1
    %p159 = por %p157, %p158
    %p160 = scmp.ne.s32.totalorder %s151, %s152
    %p161 = scmp.eq.s32.totalorder %s19, 0
    %p162 = por %p160, %p161
    %p163 = scmp.ne.s32.totalorder %s151, %s152
    %p164 = scmp.eq.s32.totalorder %s20, 1
    %p165 = por %p163, %p164
    %p167 = scmp.ne.s32.totalorder %s152, %s166
    %p168 = scmp.eq.s32.totalorder %s20, 0
    %p169 = por %p167, %p168
    %s171 = sadd.s32 %s170, 1
    %p174 = scmp.eq.s32.totalorder %s14, 1
    %p175 = scmp.ne.s32.totalorder %s170, %s172
    %p176 = scmp.eq.s32.totalorder %s14, 0
    %p177 = por %p175, %p176
    %p178 = scmp.ne.s32.totalorder %s170, %s172
    %p179 = scmp.eq.s32.totalorder %s19, 1
    %p180 = por %p178, %p179
    %p181 = scmp.ne.s32.totalorder %s172, %s173
    %p182 = scmp.eq.s32.totalorder %s19, 0
    %p183 = por %p181, %p182
    %p184 = scmp.ne.s32.totalorder %s172, %s173
    %p185 = scmp.eq.s32.totalorder %s20, 1
    %p186 = por %p184, %p185
    %p188 = scmp.ne.s32.totalorder %s173, %s187
    %p189 = scmp.eq.s32.totalorder %s20, 0
    %p190 = por %p188, %p189
    %s192 = sadd.s32 %s191, 1
    %p195 = scmp.eq.s32.totalorder %s14, 1
    %p196 = scmp.ne.s32.totalorder %s191, %s193
    %p197 = scmp.eq.s32.totalorder %s14, 0
    %p198 = por %p196, %p197
    %p199 = scmp.ne.s32.totalorder %s191, %s193
    %p200 = scmp.eq.s32.totalorder %s19, 1
    %p201 = por %p199, %p200
    %p202 = scmp.ne.s32.totalorder %s193, %s194
    %p203 = scmp.eq.s32.totalorder %s19, 0
    %p204 = por %p202, %p203
    %p205 = scmp.ne.s32.totalorder %s193, %s194
    %p206 = scmp.eq.s32.totalorder %s20, 1
    %p207 = por %p205, %p206
    %p209 = scmp.ne.s32.totalorder %s194, %s208
    %p210 = scmp.eq.s32.totalorder %s20, 0
    %p211 = por %p209, %p210
    %s212 = ssub.s32 %s21, %s33
    %s213 = ssub.s32 %s22, %s29
    %s214 = sor.u32 %s212, %s213
    %p215 = scmp.eq.s32.totalorder %s214, 0
    %s217 = sadd.s32 %s216, 1
    %s218 = scalar_select %p215, %s216, %s217
    %p221 = pneg %p215
    %p222 = scmp.eq.s32.totalorder %s14, 1
    %p223 = por %p221, %p222
    %p224 = scmp.ne.s32.totalorder %s216, %s219
    %p225 = scmp.eq.s32.totalorder %s14, 0
    %p226 = por %p224, %p225
    %p227 = scmp.ne.s32.totalorder %s216, %s219
    %p228 = scmp.eq.s32.totalorder %s19, 1
    %p229 = por %p227, %p228
    %p230 = scmp.ne.s32.totalorder %s219, %s220
    %p231 = scmp.eq.s32.totalorder %s19, 0
    %p232 = por %p230, %p231
    %p233 = scmp.ne.s32.totalorder %s219, %s220
    %p234 = scmp.eq.s32.totalorder %s20, 1
    %p235 = por %p233, %p234
    %p237 = scmp.ne.s32.totalorder %s220, %s236
    %p238 = scmp.eq.s32.totalorder %s20, 0
    %p239 = por %p237, %p238
    %p240 = scmp.le.s32.totalorder 1, %s14
    %p241 = scmp.lt.s32.totalorder %s14, 3
    %p242 = pnand %p240, %p241
    %p243 = pneg %p242
    // Predicated region
    $region9: #{_lambda_.1} parent=5 // pred_check
      _
    $region10: #{_lambda_.1} parent=5 // pred_check_branch
      %245 = sbr.rel (%p242) target = $region12
    $region11: #{_lambda_.1} parent=5 // pred_region
      %s246 = ssub.s32 %s14, 1
      // Predicated region
      $region13: #{_lambda_.1} parent=11 // pred_check
        %p247 = pneg %p99
      $region14: #{_lambda_.1} parent=11 // pred_check_branch
        %249 = sbr.rel (%p247) target = $region16
      $region15: #{_lambda_.1} parent=11 // pred_region
        _
      $region16: #{_lambda_.1} parent=11 // pred_fallthru
        _
      // Predicated region
      $region17: #{_lambda_.1} parent=11 // pred_check
        %p250 = pneg %p120
      $region18: #{_lambda_.1} parent=11 // pred_check_branch
        %252 = sbr.rel (%p250) target = $region20
      $region19: #{_lambda_.1} parent=11 // pred_region
        _
      $region20: #{_lambda_.1} parent=11 // pred_fallthru
        _
      // Predicated region
      $region21: #{_lambda_.1} parent=11 // pred_check
        %p253 = pneg %p141
      $region22: #{_lambda_.1} parent=11 // pred_check_branch
        %255 = sbr.rel (%p253) target = $region24
      $region23: #{_lambda_.1} parent=11 // pred_region
        _
      $region24: #{_lambda_.1} parent=11 // pred_fallthru
        _
      // Predicated region
      $region25: #{_lambda_.1} parent=11 // pred_check
        %p256 = pneg %p162
      $region26: #{_lambda_.1} parent=11 // pred_check_branch
        %258 = sbr.rel (%p256) target = $region28
      $region27: #{_lambda_.1} parent=11 // pred_region
        _
      $region28: #{_lambda_.1} parent=11 // pred_fallthru
        _
      // Predicated region
      $region29: #{_lambda_.1} parent=11 // pred_check
        %p259 = pneg %p183
      $region30: #{_lambda_.1} parent=11 // pred_check_branch
        %261 = sbr.rel (%p259) target = $region32
      $region31: #{_lambda_.1} parent=11 // pred_region
        _
      $region32: #{_lambda_.1} parent=11 // pred_fallthru
        _
      // Predicated region
      $region33: #{_lambda_.1} parent=11 // pred_check
        %p262 = pneg %p204
      $region34: #{_lambda_.1} parent=11 // pred_check_branch
        %264 = sbr.rel (%p262) target = $region36
      $region35: #{_lambda_.1} parent=11 // pred_region
        _
      $region36: #{_lambda_.1} parent=11 // pred_fallthru
        _
    $region12: #{_lambda_.1} parent=5 // pred_fallthru
      _
    %p265 = scmp.lt.s32.totalorder %s14, 2
    // Predicated region
    $region37: #{_lambda_.1} parent=5 // pred_check
      %p266 = pneg %p265
    $region38: #{_lambda_.1} parent=5 // pred_check_branch
      %268 = sbr.rel (%p266) target = $region40
    $region39: #{_lambda_.1} parent=5 // pred_region
      // Predicated region
      $region41: #{_lambda_.1} parent=39 // pred_check
        %p269 = pneg %p46
      $region42: #{_lambda_.1} parent=39 // pred_check_branch
        %271 = sbr.rel (%p269) target = $region44
      $region43: #{_lambda_.1} parent=39 // pred_region
        %p272 = scmp.lt.s32.totalorder %s21, 1
        %s273 = scalar_select %p272, %s21, 1
        %s274 = smul.addr %s273, 41
        %s275 = smul.addr %s274, 4
        %s276 = scalar_lea.vmem %s0, %s275
      $region44: #{_lambda_.1} parent=39 // pred_fallthru
        _
      // Predicated region
      $region45: #{_lambda_.1} parent=39 // pred_check
        %p277 = pneg %p72
      $region46: #{_lambda_.1} parent=39 // pred_check_branch
        %279 = sbr.rel (%p277) target = $region48
      $region47: #{_lambda_.1} parent=39 // pred_region
        %p280 = scmp.lt.s32.totalorder %s21, 1
        %s281 = scalar_select %p280, %s21, 1
        %s282 = smul.addr %s281, 32
        %s283 = smul.addr %s282, 4
        %s284 = scalar_lea.vmem %s1, %s283
      $region48: #{_lambda_.1} parent=39 // pred_fallthru
        _
    $region40: #{_lambda_.1} parent=5 // pred_fallthru
      _
    %p285 = scmp.le.s32.totalorder 1, %s14
    %p286 = scmp.lt.s32.totalorder %s14, 3
    %p287 = pnand %p285, %p286
    %p288 = pneg %p287
    // Predicated region
    $region49: #{_lambda_.1} parent=5 // pred_check
      _
    $region50: #{_lambda_.1} parent=5 // pred_check_branch
      %290 = sbr.rel (%p287) target = $region52
    $region51: #{_lambda_.1} parent=5 // pred_region
      %s291 = ssub.s32 %s14, 1
      %p292 = scmp.lt.s32.totalorder %s23, 1
      %s293 = scalar_select %p292, %s23, 1
      %s294 = smul.addr %s293, 41
      %s295 = smul.addr %s294, 4
      %s296 = scalar_lea.vmem %s0, %s295
      %p297 = pneg %p52
      %p298 = pneg %p49
      %p299 = scmp.lt.s32.totalorder %s23, 1
      %s300 = scalar_select %p299, %s23, 1
      %s301 = smul.addr %s300, 32
      %s302 = smul.addr %s301, 4
      %s303 = scalar_lea.vmem %s1, %s302
      %p304 = pneg %p78
      %p305 = pneg %p75
      %p306 = pneg %p99
      %p307 = pneg %p96
      %p308 = pneg %p120
      %p309 = pneg %p117
      %p310 = pneg %p141
      %p311 = pneg %p138
      %p312 = pneg %p162
      %p313 = pneg %p159
      %p314 = pneg %p183
      %p315 = pneg %p180
      %p316 = pneg %p204
      %p317 = pneg %p201
      %p318 = pneg %p232
      %p319 = pneg %p229
      %s320 = smul.u32 2, %s24
      %p321 = scmp.lt.s32.totalorder %s23, 1
      %s322 = scalar_select %p321, %s23, 1
      %p323 = scmp.lt.s32.totalorder %s320, 1
      %s324 = scalar_select %p323, %s320, 1
      %s325 = smul.addr %s322, 2
      %s326 = sadd.s32 %s324, %s325
      %s327 = smul.addr %s326, 4
      %s328 = scalar_lea.vmem %s8, %s327
      %p329 = scmp.lt.s32.totalorder %s23, 1
      %s330 = scalar_select %p329, %s23, 1
      %s331 = smul.addr %s330, 41
      %s332 = smul.addr %s331, 4
      %s333 = scalar_lea.vmem %s0, %s332
      %p334 = scmp.lt.s32.totalorder %s23, 1
      %s335 = scalar_select %p334, %s23, 1
      %s336 = smul.addr %s335, 32
      %s337 = smul.addr %s336, 4
      %s338 = scalar_lea.vmem %s1, %s337
      %s339 = smul.u32 2, %s24
      %p340 = scmp.lt.s32.totalorder %s23, 1
      %s341 = scalar_select %p340, %s23, 1
      %p342 = scmp.lt.s32.totalorder %s339, 1
      %s343 = scalar_select %p342, %s339, 1
      %s344 = smul.addr %s341, 2
      %s345 = sadd.s32 %s343, %s344
      %s346 = smul.addr %s345, 4
      %s347 = scalar_lea.vmem %s8, %s346
      %s348 = smul.u32 2, %s24
      %s350 = smul.u32 %s24, 16
      %s351 = smul.u32 %s350, 18
      %s352 = sshra.s32 %s351, 3
      %s353 = sand.u32 %s351, 7
      %s354 = smul.addr %s352, 4
      %s355 = scalar_lea.vmem %s333, %s354
      %v356 = vld [vmem:[%s355] sm:$0xf]
      %v357 = vld [vmem:[%s355 + $0x4] sm:$0xf]
      %v358 = vld [vmem:[%s355 + $0x8] sm:$0xf]
      %v359 = vld [vmem:[%s355 + $0xc] sm:$0xf]
      %v360 = vld [vmem:[%s355 + $0x10] sm:$0xf]
      %v361 = vld [vmem:[%s355 + $0x14] sm:$0xf]
      %v362 = vld [vmem:[%s355 + $0x18] sm:$0xf]
      %v363 = vld [vmem:[%s355 + $0x1c] sm:$0xf]
      %v364 = vld [vmem:[%s355 + $0x20] sm:$0xf]
      %v365 = vld [vmem:[%s355 + $0x24] sm:$0xf]
      %v366 = vld [vmem:[%s355 + $0x28] sm:$0xf]
      %v367 = vld [vmem:[%s355 + $0x2c] sm:$0xf]
      %v368 = vld [vmem:[%s355 + $0x30] sm:$0xf]
      %v369 = vld [vmem:[%s355 + $0x34] sm:$0xf]
      %v370 = vld [vmem:[%s355 + $0x38] sm:$0xf]
      %v371 = vld [vmem:[%s355 + $0x3c] sm:$0xf]
      %v372 = vld [vmem:[%s355 + $0x40] sm:$0xf]
      %v373 = vld [vmem:[%s355 + $0x44] sm:$0xf]
      %v374 = vld [vmem:[%s355 + $0x48] sm:$0xf]
      %v375 = vld [vmem:[%s355 + $0x4c] sm:$0xf]
      %v376 = vld [vmem:[%s355 + $0x50] sm:$0xf]
      %v377 = vld [vmem:[%s355 + $0x54] sm:$0xf]
      %v378 = vld [vmem:[%s355 + $0x58] sm:$0xf]
      %v379 = vld [vmem:[%s355 + $0x5c] sm:$0xf]
      %v380 = vld [vmem:[%s355 + $0x60] sm:$0xf]
      %v381 = vld [vmem:[%s355 + $0x64] sm:$0xf]
      %v382 = vld [vmem:[%s355 + $0x68] sm:$0xf]
      %v383 = vld [vmem:[%s355 + $0x6c] sm:$0xf]
      %v384 = vld [vmem:[%s355 + $0x70] sm:$0xf]
      %v385 = vld [vmem:[%s355 + $0x74] sm:$0xf]
      %v386 = vld [vmem:[%s355 + $0x78] sm:$0xf]
      %v387 = vld [vmem:[%s355 + $0x7c] sm:$0xf]
      %v388 = vld [vmem:[%s355 + $0x80] sm:$0xf]
      %v389 = vld [vmem:[%s355 + $0x84] sm:$0xf]
      %v390 = vld [vmem:[%s355 + $0x88] sm:$0xf]
      %v391 = vld [vmem:[%s355 + $0x8c] sm:$0xf]
      %v392 = vld [vmem:[%s355 + $0x90] sm:$0xf]
      %v393 = vld [vmem:[%s355 + $0x94] sm:$0xf]
      %v394 = vld [vmem:[%s355 + $0x98] sm:$0xf]
      %v395 = vld [vmem:[%s355 + $0x9c] sm:$0xf]
      %v396 = vld [vmem:[%s355 + $0xa0] sm:$0x3]
      %v397 = vld [vmem:[%s2] sm:$0x3]
      %v398 = vld [vmem:[%s3] sm:$0x1]
      %v399 = vld [vmem:[%s4] sm:$0xff]
      %v400 = vld [vmem:[%s4 + $0x8] sm:$0x1]
      %v401 = vld [vmem:[%s5] sm:$0x3]
      %v402 = vld [vmem:[%s6] sm:$0xf]
      %v404 = vlaneseq
      %v405 = vshrl.u32 %v404, 7
      %v406 = vsub.s32 0, %v405
      %v407 = vrot.slane %v398, %v406
      %v450 = vunpack.c.l.b16 %v356
      %v451 = vunpack.c.l.b16 %v357
      %v452 = vunpack.c.l.b16 %v358
      %v453 = vunpack.c.l.b16 %v359
      %v454 = vunpack.c.l.b16 %v360
      %v455 = vunpack.c.l.b16 %v361
      %v456 = vunpack.c.l.b16 %v362
      %v457 = vunpack.c.l.b16 %v363
      %v458 = vunpack.c.l.b16 %v364
      %v459 = vunpack.c.l.b16 %v365
      %v460 = vunpack.c.l.b16 %v366
      %v461 = vunpack.c.l.b16 %v367
      %v462 = vunpack.c.l.b16 %v368
      %v463 = vunpack.c.l.b16 %v369
      %v464 = vunpack.c.l.b16 %v370
      %v465 = vunpack.c.l.b16 %v371
      %v466 = vunpack.c.l.b16 %v372
      %v467 = vunpack.c.l.b16 %v373
      %v468 = vunpack.c.l.b16 %v374
      %v469 = vunpack.c.l.b16 %v375
      %v470 = vunpack.c.l.b16 %v376
      %v471 = vunpack.c.l.b16 %v377
      %v472 = vunpack.c.l.b16 %v378
      %v473 = vunpack.c.l.b16 %v379
      %v474 = vunpack.c.l.b16 %v380
      %v475 = vunpack.c.l.b16 %v381
      %v476 = vunpack.c.l.b16 %v382
      %v477 = vunpack.c.l.b16 %v383
      %v478 = vunpack.c.l.b16 %v384
      %v479 = vunpack.c.l.b16 %v385
      %v480 = vunpack.c.l.b16 %v386
      %v481 = vunpack.c.l.b16 %v387
      %v482 = vunpack.c.l.b16 %v388
      %v483 = vunpack.c.l.b16 %v389
      %v484 = vunpack.c.l.b16 %v390
      %v485 = vunpack.c.l.b16 %v391
      %v486 = vunpack.c.l.b16 %v392
      %v487 = vunpack.c.l.b16 %v393
      %v488 = vunpack.c.l.b16 %v394
      %v489 = vunpack.c.l.b16 %v395
      %v490 = vunpack.c.l.b16 %v396
      %v491 = vpack.c.b16 %v451, %v450
      %v492 = vpack.c.b16 %v453, %v452
      %v493 = vpack.c.b16 %v455, %v454
      %v494 = vpack.c.b16 %v457, %v456
      %v495 = vpack.c.b16 %v459, %v458
      %v496 = vpack.c.b16 %v461, %v460
      %v497 = vpack.c.b16 %v463, %v462
      %v498 = vpack.c.b16 %v465, %v464
      %v499 = vpack.c.b16 %v467, %v466
      %v500 = vpack.c.b16 %v469, %v468
      %v501 = vpack.c.b16 %v471, %v470
      %v502 = vpack.c.b16 %v473, %v472
      %v503 = vpack.c.b16 %v475, %v474
      %v504 = vpack.c.b16 %v477, %v476
      %v505 = vpack.c.b16 %v479, %v478
      %v506 = vpack.c.b16 %v481, %v480
      %v507 = vpack.c.b16 %v483, %v482
      %v508 = vpack.c.b16 %v485, %v484
      %v509 = vpack.c.b16 %v487, %v486
      %v510 = vpack.c.b16 %v489, %v488
      %v511 = vpack.c.b16 %v490, %v490
      %vm512 = vcmask 31744
      %v514 = vsel %vm512, %v491, 0
      %v517 = vsel %vm512, %v492, 0
      %v520 = vsel %vm512, %v493, 0
      %v523 = vsel %vm512, %v494, 0
      %v526 = vsel %vm512, %v495, 0
      %v529 = vsel %vm512, %v496, 0
      %v532 = vsel %vm512, %v497, 0
      %v535 = vsel %vm512, %v498, 0
      %v538 = vsel %vm512, %v499, 0
      %v541 = vsel %vm512, %v500, 0
      %v544 = vsel %vm512, %v501, 0
      %v547 = vsel %vm512, %v502, 0
      %v550 = vsel %vm512, %v503, 0
      %v553 = vsel %vm512, %v504, 0
      %v556 = vsel %vm512, %v505, 0
      %v559 = vsel %vm512, %v506, 0
      %v562 = vsel %vm512, %v507, 0
      %v565 = vsel %vm512, %v508, 0
      %v568 = vsel %vm512, %v509, 0
      %v571 = vsel %vm512, %v510, 0
      %v574 = vsel %vm512, %v511, 0
      %vm576 = vcmask 1041408
      %v578 = vsel %vm576, %v397, 0
      %580 = vmatprep.subr.bf16.mxu0 0
      %581 = vmatpush1.bf16.msra.mxu0 %v578
      %582 = vmatprep.subr.bf16.mxu0 0
      %583 = vmatpush1.bf16.msra.mxu0 0
      %584 = vmatprep.subr.bf16.mxu0 0
      %585 = vmatpush1.bf16.msra.mxu0 0
      %586 = vmatprep.subr.bf16.mxu0 0
      %587 = vmatpush1.bf16.msra.mxu0 0
      %588 = vmatprep.subr.bf16.mxu0 0
      %589 = vmatpush1.bf16.msra.mxu0 0
      %590 = vmatprep.subr.bf16.mxu0 0
      %591 = vmatpush1.bf16.msra.mxu0 0
      %592 = vmatprep.subr.bf16.mxu0 0
      %593 = vmatpush1.bf16.msra.mxu0 0
      %594 = vmatprep.subr.bf16.mxu0 0
      %595 = vmatpush1.bf16.msra.mxu0 0
      %596 = vmatprep.subr.bf16.mxu0 0
      %597 = vmatpush1.bf16.msra.mxu0 0
      %598 = vmatprep.subr.bf16.mxu0 0
      %599 = vmatpush1.bf16.msra.mxu0 0
      %600 = vmatprep.subr.bf16.mxu0 0
      %601 = vmatpush1.bf16.msra.mxu0 0
      %602 = vmatprep.subr.bf16.mxu0 0
      %603 = vmatpush1.bf16.msra.mxu0 0
      %604 = vmatprep.subr.bf16.mxu0 0
      %605 = vmatpush1.bf16.msra.mxu0 0
      %606 = vmatprep.subr.bf16.mxu0 0
      %607 = vmatpush1.bf16.msra.mxu0 0
      %608 = vmatprep.subr.bf16.mxu0 0
      %609 = vmatpush1.bf16.msra.mxu0 0
      %610 = vmatprep.subr.bf16.mxu0 0
      %611 = vmatpush1.bf16.msra.mxu0 0
      %612 = vmatprep.mubr.bf16.mxu0 0
      %613 = vmatmul.mubr.bf16.gmra.mrb[0].mxu0 %v514
      %v614 = vpop.f32.mrb[0].mxu0
      %v615 = vadd.f32 %v407, %v614
      %v616 = vpop.f32.mrb[0].mxu0
      %v617 = vpop.f32.mrb[0].mxu0
      %v618 = vadd.f32 %v407, %v617
      %v619 = vpop.f32.mrb[0].mxu0
      %620 = vmatprep.mubr.bf16.mxu0 0
      %621 = vmatmul.mubr.bf16.gmra.mrb[0].mxu0 %v517
      %v622 = vpop.f32.mrb[0].mxu0
      %v623 = vadd.f32 %v407, %v622
      %v624 = vpop.f32.mrb[0].mxu0
      %v625 = vpop.f32.mrb[0].mxu0
      %v626 = vadd.f32 %v407, %v625
      %v627 = vpop.f32.mrb[0].mxu0
      %628 = vmatprep.mubr.bf16.mxu0 0
      %629 = vmatmul.mubr.bf16.gmra.mrb[0].mxu0 %v520
      %v630 = vpop.f32.mrb[0].mxu0
      %v631 = vadd.f32 %v407, %v630
      %v632 = vpop.f32.mrb[0].mxu0
      %v633 = vpop.f32.mrb[0].mxu0
      %v634 = vadd.f32 %v407, %v633
      %v635 = vpop.f32.mrb[0].mxu0
      %636 = vmatprep.mubr.bf16.mxu0 0
      %637 = vmatmul.mubr.bf16.gmra.mrb[0].mxu0 %v523
      %v638 = vpop.f32.mrb[0].mxu0
      %v639 = vadd.f32 %v407, %v638
      %v640 = vpop.f32.mrb[0].mxu0
      %v641 = vpop.f32.mrb[0].mxu0
      %v642 = vadd.f32 %v407, %v641
      %v643 = vpop.f32.mrb[0].mxu0
      %644 = vmatprep.mubr.bf16.mxu0 0
      %645 = vmatmul.mubr.bf16.gmra.mrb[0].mxu0 %v526
      %v646 = vpop.f32.mrb[0].mxu0
      %v647 = vadd.f32 %v407, %v646
      %v648 = vpop.f32.mrb[0].mxu0
      %v649 = vpop.f32.mrb[0].mxu0
      %v650 = vadd.f32 %v407, %v649
      %v651 = vpop.f32.mrb[0].mxu0
      %652 = vmatprep.mubr.bf16.mxu0 0
      %653 = vmatmul.mubr.bf16.gmra.mrb[0].mxu0 %v529
      %v654 = vpop.f32.mrb[0].mxu0
      %v655 = vadd.f32 %v407, %v654
      %v656 = vpop.f32.mrb[0].mxu0
      %v657 = vpop.f32.mrb[0].mxu0
      %v658 = vadd.f32 %v407, %v657
      %v659 = vpop.f32.mrb[0].mxu0
      %660 = vmatprep.mubr.bf16.mxu0 0
      %661 = vmatmul.mubr.bf16.gmra.mrb[0].mxu0 %v532
      %v662 = vpop.f32.mrb[0].mxu0
      %v663 = vadd.f32 %v407, %v662
      %v664 = vpop.f32.mrb[0].mxu0
      %v665 = vpop.f32.mrb[0].mxu0
      %v666 = vadd.f32 %v407, %v665
      %v667 = vpop.f32.mrb[0].mxu0
      %668 = vmatprep.mubr.bf16.mxu0 0
      %669 = vmatmul.mubr.bf16.gmra.mrb[0].mxu0 %v535
      %v670 = vpop.f32.mrb[0].mxu0
      %v671 = vadd.f32 %v407, %v670
      %v672 = vpop.f32.mrb[0].mxu0
      %v673 = vpop.f32.mrb[0].mxu0
      %v674 = vadd.f32 %v407, %v673
      %v675 = vpop.f32.mrb[0].mxu0
      %676 = vmatprep.mubr.bf16.mxu0 0
      %677 = vmatmul.mubr.bf16.gmra.mrb[0].mxu0 %v538
      %v678 = vpop.f32.mrb[0].mxu0
      %v679 = vadd.f32 %v407, %v678
      %v680 = vpop.f32.mrb[0].mxu0
      %v681 = vpop.f32.mrb[0].mxu0
      %v682 = vadd.f32 %v407, %v681
      %v683 = vpop.f32.mrb[0].mxu0
      %684 = vmatprep.mubr.bf16.mxu0 0
      %685 = vmatmul.mubr.bf16.gmra.mrb[0].mxu0 %v541
      %v686 = vpop.f32.mrb[0].mxu0
      %v687 = vadd.f32 %v407, %v686
      %v688 = vpop.f32.mrb[0].mxu0
      %v689 = vpop.f32.mrb[0].mxu0
      %v690 = vadd.f32 %v407, %v689
      %v691 = vpop.f32.mrb[0].mxu0
      %692 = vmatprep.mubr.bf16.mxu0 0
      %693 = vmatmul.mubr.bf16.gmra.mrb[0].mxu0 %v544
      %v694 = vpop.f32.mrb[0].mxu0
      %v695 = vadd.f32 %v407, %v694
      %v696 = vpop.f32.mrb[0].mxu0
      %v697 = vpop.f32.mrb[0].mxu0
      %v698 = vadd.f32 %v407, %v697
      %v699 = vpop.f32.mrb[0].mxu0
      %700 = vmatprep.mubr.bf16.mxu0 0
      %701 = vmatmul.mubr.bf16.gmra.mrb[0].mxu0 %v547
      %v702 = vpop.f32.mrb[0].mxu0
      %v703 = vadd.f32 %v407, %v702
      %v704 = vpop.f32.mrb[0].mxu0
      %v705 = vpop.f32.mrb[0].mxu0
      %v706 = vadd.f32 %v407, %v705
      %v707 = vpop.f32.mrb[0].mxu0
      %708 = vmatprep.mubr.bf16.mxu0 0
      %709 = vmatmul.mubr.bf16.gmra.mrb[0].mxu0 %v550
      %v710 = vpop.f32.mrb[0].mxu0
      %v711 = vadd.f32 %v407, %v710
      %v712 = vpop.f32.mrb[0].mxu0
      %v713 = vpop.f32.mrb[0].mxu0
      %v714 = vadd.f32 %v407, %v713
      %v715 = vpop.f32.mrb[0].mxu0
      %716 = vmatprep.mubr.bf16.mxu0 0
      %717 = vmatmul.mubr.bf16.gmra.mrb[0].mxu0 %v553
      %v718 = vpop.f32.mrb[0].mxu0
      %v719 = vadd.f32 %v407, %v718
      %v720 = vpop.f32.mrb[0].mxu0
      %v721 = vpop.f32.mrb[0].mxu0
      %v722 = vadd.f32 %v407, %v721
      %v723 = vpop.f32.mrb[0].mxu0
      %724 = vmatprep.mubr.bf16.mxu0 0
      %725 = vmatmul.mubr.bf16.gmra.mrb[0].mxu0 %v556
      %v726 = vpop.f32.mrb[0].mxu0
      %v727 = vadd.f32 %v407, %v726
      %v728 = vpop.f32.mrb[0].mxu0
      %v729 = vpop.f32.mrb[0].mxu0
      %v730 = vadd.f32 %v407, %v729
      %v731 = vpop.f32.mrb[0].mxu0
      %732 = vmatprep.mubr.bf16.mxu0 0
      %733 = vmatmul.mubr.bf16.gmra.mrb[0].mxu0 %v559
      %v734 = vpop.f32.mrb[0].mxu0
      %v735 = vadd.f32 %v407, %v734
      %v736 = vpop.f32.mrb[0].mxu0
      %v737 = vpop.f32.mrb[0].mxu0
      %v738 = vadd.f32 %v407, %v737
      %v739 = vpop.f32.mrb[0].mxu0
      %740 = vmatprep.mubr.bf16.mxu0 0
      %741 = vmatmul.mubr.bf16.gmra.mrb[0].mxu0 %v562
      %v742 = vpop.f32.mrb[0].mxu0
      %v743 = vadd.f32 %v407, %v742
      %v744 = vpop.f32.mrb[0].mxu0
      %v745 = vpop.f32.mrb[0].mxu0
      %v746 = vadd.f32 %v407, %v745
      %v747 = vpop.f32.mrb[0].mxu0
      %748 = vmatprep.mubr.bf16.mxu0 0
      %749 = vmatmul.mubr.bf16.gmra.mrb[0].mxu0 %v565
      %v750 = vpop.f32.mrb[0].mxu0
      %v751 = vadd.f32 %v407, %v750
      %v752 = vpop.f32.mrb[0].mxu0
      %v753 = vpop.f32.mrb[0].mxu0
      %v754 = vadd.f32 %v407, %v753
      %v755 = vpop.f32.mrb[0].mxu0
      %756 = vmatprep.mubr.bf16.mxu0 0
      %757 = vmatmul.mubr.bf16.gmra.mrb[0].mxu0 %v568
      %v758 = vpop.f32.mrb[0].mxu0
      %v759 = vadd.f32 %v407, %v758
      %v760 = vpop.f32.mrb[0].mxu0
      %v761 = vpop.f32.mrb[0].mxu0
      %v762 = vadd.f32 %v407, %v761
      %v763 = vpop.f32.mrb[0].mxu0
      %764 = vmatprep.mubr.bf16.mxu0 0
      %765 = vmatmul.mubr.bf16.gmra.mrb[0].mxu0 %v571
      %v766 = vpop.f32.mrb[0].mxu0
      %v767 = vadd.f32 %v407, %v766
      %v768 = vpop.f32.mrb[0].mxu0
      %v769 = vpop.f32.mrb[0].mxu0
      %v770 = vadd.f32 %v407, %v769
      %v771 = vpop.f32.mrb[0].mxu0
      %772 = vmatprep.mubr.bf16.mxu0 0
      %773 = vmatmul.mubr.bf16.gmra.mrb[0].mxu0 %v574
      %v774 = vpop.f32.mrb[0].mxu0
      %v775 = vadd.f32 %v407, %v774
      %v776 = vpop.f32.mrb[0].mxu0
      %v777 = vpop.f32.mrb[0].mxu0
      %v778 = vpop.f32.mrb[0].mxu0
      %779 = vdwg.mxu0
      %v780 = vmax.f32 %v615, 0.0
      %v781 = vmax.f32 %v618, 0.0
      %v782 = vmax.f32 %v623, 0.0
      %v783 = vmax.f32 %v626, 0.0
      %v784 = vmax.f32 %v631, 0.0
      %v785 = vmax.f32 %v634, 0.0
      %v786 = vmax.f32 %v639, 0.0
      %v787 = vmax.f32 %v642, 0.0
      %v788 = vmax.f32 %v647, 0.0
      %v789 = vmax.f32 %v650, 0.0
      %v790 = vmax.f32 %v655, 0.0
      %v791 = vmax.f32 %v658, 0.0
      %v792 = vmax.f32 %v663, 0.0
      %v793 = vmax.f32 %v666, 0.0
      %v794 = vmax.f32 %v671, 0.0
      %v795 = vmax.f32 %v674, 0.0
      %v796 = vmax.f32 %v679, 0.0
      %v797 = vmax.f32 %v682, 0.0
      %v798 = vmax.f32 %v687, 0.0
      %v799 = vmax.f32 %v690, 0.0
      %v800 = vmax.f32 %v695, 0.0
      %v801 = vmax.f32 %v698, 0.0
      %v802 = vmax.f32 %v703, 0.0
      %v803 = vmax.f32 %v706, 0.0
      %v804 = vmax.f32 %v711, 0.0
      %v805 = vmax.f32 %v714, 0.0
      %v806 = vmax.f32 %v719, 0.0
      %v807 = vmax.f32 %v722, 0.0
      %v808 = vmax.f32 %v727, 0.0
      %v809 = vmax.f32 %v730, 0.0
      %v810 = vmax.f32 %v735, 0.0
      %v811 = vmax.f32 %v738, 0.0
      %v812 = vmax.f32 %v743, 0.0
      %v813 = vmax.f32 %v746, 0.0
      %v814 = vmax.f32 %v751, 0.0
      %v815 = vmax.f32 %v754, 0.0
      %v816 = vmax.f32 %v759, 0.0
      %v817 = vmax.f32 %v762, 0.0
      %v818 = vmax.f32 %v767, 0.0
      %v819 = vmax.f32 %v770, 0.0
      %v820 = vmax.f32 %v775, 0.0
      %v862 = vcombine.high %v780, %v780
      %v864 = vunpack.c.l.s4 1983009808
      %v865 = vunpack.c.0.s8 %v864
      %v866 = vlaneseq
      %v867 = vshrl.u32 %v866, 7
      %v868 = vsub.s32 %v865, %v867
      %v869 = vrot.slane %v780, %v868
      %v871 = vunpack.c.l.s4 1983009808
      %v872 = vunpack.c.0.s8 %v871
      %v873 = vlaneseq
      %v874 = vshrl.u32 %v873, 7
      %v875 = vsub.s32 %v872, %v874
      %v876 = vrot.slane %v862, %v875
      %v877 = vcombine.high %v869, %v869
      %v878 = vcombine.high %v876, %v876
      %v879 = vcombine.high %v781, %v781
      %v881 = vunpack.c.l.s4 1983009808
      %v882 = vunpack.c.0.s8 %v881
      %v883 = vlaneseq
      %v884 = vshrl.u32 %v883, 7
      %v885 = vsub.s32 %v882, %v884
      %v886 = vrot.slane %v781, %v885
      %v888 = vunpack.c.l.s4 1983009808
      %v889 = vunpack.c.0.s8 %v888
      %v890 = vlaneseq
      %v891 = vshrl.u32 %v890, 7
      %v892 = vsub.s32 %v889, %v891
      %v893 = vrot.slane %v879, %v892
      %v894 = vcombine.high %v886, %v886
      %v895 = vcombine.high %v893, %v893
      %v896 = vcombine.high %v782, %v782
      %v898 = vunpack.c.l.s4 1983009808
      %v899 = vunpack.c.0.s8 %v898
      %v900 = vlaneseq
      %v901 = vshrl.u32 %v900, 7
      %v902 = vsub.s32 %v899, %v901
      %v903 = vrot.slane %v782, %v902
      %v905 = vunpack.c.l.s4 1983009808
      %v906 = vunpack.c.0.s8 %v905
      %v907 = vlaneseq
      %v908 = vshrl.u32 %v907, 7
      %v909 = vsub.s32 %v906, %v908
      %v910 = vrot.slane %v896, %v909
      %v911 = vcombine.high %v903, %v903
      %v912 = vcombine.high %v910, %v910
      %v913 = vcombine.high %v783, %v783
      %v915 = vunpack.c.l.s4 1983009808
      %v916 = vunpack.c.0.s8 %v915
      %v917 = vlaneseq
      %v918 = vshrl.u32 %v917, 7
      %v919 = vsub.s32 %v916, %v918
      %v920 = vrot.slane %v783, %v919
      %v922 = vunpack.c.l.s4 1983009808
      %v923 = vunpack.c.0.s8 %v922
      %v924 = vlaneseq
      %v925 = vshrl.u32 %v924, 7
      %v926 = vsub.s32 %v923, %v925
      %v927 = vrot.slane %v913, %v926
      %v928 = vcombine.high %v920, %v920
      %v929 = vcombine.high %v927, %v927
      %v930 = vcombine.high %v784, %v784
      %v932 = vunpack.c.l.s4 1983009808
      %v933 = vunpack.c.0.s8 %v932
      %v934 = vlaneseq
      %v935 = vshrl.u32 %v934, 7
      %v936 = vsub.s32 %v933, %v935
      %v937 = vrot.slane %v784, %v936
      %v939 = vunpack.c.l.s4 1983009808
      %v940 = vunpack.c.0.s8 %v939
      %v941 = vlaneseq
      %v942 = vshrl.u32 %v941, 7
      %v943 = vsub.s32 %v940, %v942
      %v944 = vrot.slane %v930, %v943
      %v945 = vcombine.high %v937, %v937
      %v946 = vcombine.high %v944, %v944
      %v947 = vcombine.high %v785, %v785
      %v949 = vunpack.c.l.s4 1983009808
      %v950 = vunpack.c.0.s8 %v949
      %v951 = vlaneseq
      %v952 = vshrl.u32 %v951, 7
      %v953 = vsub.s32 %v950, %v952
      %v954 = vrot.slane %v785, %v953
      %v956 = vunpack.c.l.s4 1983009808
      %v957 = vunpack.c.0.s8 %v956
      %v958 = vlaneseq
      %v959 = vshrl.u32 %v958, 7
      %v960 = vsub.s32 %v957, %v959
      %v961 = vrot.slane %v947, %v960
      %v962 = vcombine.high %v954, %v954
      %v963 = vcombine.high %v961, %v961
      %v964 = vcombine.high %v786, %v786
      %v966 = vunpack.c.l.s4 1983009808
      %v967 = vunpack.c.0.s8 %v966
      %v968 = vlaneseq
      %v969 = vshrl.u32 %v968, 7
      %v970 = vsub.s32 %v967, %v969
      %v971 = vrot.slane %v786, %v970
      %v973 = vunpack.c.l.s4 1983009808
      %v974 = vunpack.c.0.s8 %v973
      %v975 = vlaneseq
      %v976 = vshrl.u32 %v975, 7
      %v977 = vsub.s32 %v974, %v976
      %v978 = vrot.slane %v964, %v977
      %v979 = vcombine.high %v971, %v971
      %v980 = vcombine.high %v978, %v978
      %v981 = vcombine.high %v787, %v787
      %v983 = vunpack.c.l.s4 1983009808
      %v984 = vunpack.c.0.s8 %v983
      %v985 = vlaneseq
      %v986 = vshrl.u32 %v985, 7
      %v987 = vsub.s32 %v984, %v986
      %v988 = vrot.slane %v787, %v987
      %v990 = vunpack.c.l.s4 1983009808
      %v991 = vunpack.c.0.s8 %v990
      %v992 = vlaneseq
      %v993 = vshrl.u32 %v992, 7
      %v994 = vsub.s32 %v991, %v993
      %v995 = vrot.slane %v981, %v994
      %v996 = vcombine.high %v988, %v988
      %v997 = vcombine.high %v995, %v995
      %v998 = vcombine.high %v788, %v788
      %v1000 = vunpack.c.l.s4 1983009808
      %v1001 = vunpack.c.0.s8 %v1000
      %v1002 = vlaneseq
      %v1003 = vshrl.u32 %v1002, 7
      %v1004 = vsub.s32 %v1001, %v1003
      %v1005 = vrot.slane %v788, %v1004
      %v1007 = vunpack.c.l.s4 1983009808
      %v1008 = vunpack.c.0.s8 %v1007
      %v1009 = vlaneseq
      %v1010 = vshrl.u32 %v1009, 7
      %v1011 = vsub.s32 %v1008, %v1010
      %v1012 = vrot.slane %v998, %v1011
      %v1013 = vcombine.high %v1005, %v1005
      %v1014 = vcombine.high %v1012, %v1012
      %v1015 = vcombine.high %v789, %v789
      %v1017 = vunpack.c.l.s4 1983009808
      %v1018 = vunpack.c.0.s8 %v1017
      %v1019 = vlaneseq
      %v1020 = vshrl.u32 %v1019, 7
      %v1021 = vsub.s32 %v1018, %v1020
      %v1022 = vrot.slane %v789, %v1021
      %v1024 = vunpack.c.l.s4 1983009808
      %v1025 = vunpack.c.0.s8 %v1024
      %v1026 = vlaneseq
      %v1027 = vshrl.u32 %v1026, 7
      %v1028 = vsub.s32 %v1025, %v1027
      %v1029 = vrot.slane %v1015, %v1028
      %v1030 = vcombine.high %v1022, %v1022
      %v1031 = vcombine.high %v1029, %v1029
      %v1032 = vcombine.high %v790, %v790
      %v1034 = vunpack.c.l.s4 1983009808
      %v1035 = vunpack.c.0.s8 %v1034
      %v1036 = vlaneseq
      %v1037 = vshrl.u32 %v1036, 7
      %v1038 = vsub.s32 %v1035, %v1037
      %v1039 = vrot.slane %v790, %v1038
      %v1041 = vunpack.c.l.s4 1983009808
      %v1042 = vunpack.c.0.s8 %v1041
      %v1043 = vlaneseq
      %v1044 = vshrl.u32 %v1043, 7
      %v1045 = vsub.s32 %v1042, %v1044
      %v1046 = vrot.slane %v1032, %v1045
      %v1047 = vcombine.high %v1039, %v1039
      %v1048 = vcombine.high %v1046, %v1046
      %v1049 = vcombine.high %v791, %v791
      %v1051 = vunpack.c.l.s4 1983009808
      %v1052 = vunpack.c.0.s8 %v1051
      %v1053 = vlaneseq
      %v1054 = vshrl.u32 %v1053, 7
      %v1055 = vsub.s32 %v1052, %v1054
      %v1056 = vrot.slane %v791, %v1055
      %v1058 = vunpack.c.l.s4 1983009808
      %v1059 = vunpack.c.0.s8 %v1058
      %v1060 = vlaneseq
      %v1061 = vshrl.u32 %v1060, 7
      %v1062 = vsub.s32 %v1059, %v1061
      %v1063 = vrot.slane %v1049, %v1062
      %v1064 = vcombine.high %v1056, %v1056
      %v1065 = vcombine.high %v1063, %v1063
      %v1066 = vcombine.high %v792, %v792
      %v1068 = vunpack.c.l.s4 1983009808
      %v1069 = vunpack.c.0.s8 %v1068
      %v1070 = vlaneseq
      %v1071 = vshrl.u32 %v1070, 7
      %v1072 = vsub.s32 %v1069, %v1071
      %v1073 = vrot.slane %v792, %v1072
      %v1075 = vunpack.c.l.s4 1983009808
      %v1076 = vunpack.c.0.s8 %v1075
      %v1077 = vlaneseq
      %v1078 = vshrl.u32 %v1077, 7
      %v1079 = vsub.s32 %v1076, %v1078
      %v1080 = vrot.slane %v1066, %v1079
      %v1081 = vcombine.high %v1073, %v1073
      %v1082 = vcombine.high %v1080, %v1080
      %v1083 = vcombine.high %v793, %v793
      %v1085 = vunpack.c.l.s4 1983009808
      %v1086 = vunpack.c.0.s8 %v1085
      %v1087 = vlaneseq
      %v1088 = vshrl.u32 %v1087, 7
      %v1089 = vsub.s32 %v1086, %v1088
      %v1090 = vrot.slane %v793, %v1089
      %v1092 = vunpack.c.l.s4 1983009808
      %v1093 = vunpack.c.0.s8 %v1092
      %v1094 = vlaneseq
      %v1095 = vshrl.u32 %v1094, 7
      %v1096 = vsub.s32 %v1093, %v1095
      %v1097 = vrot.slane %v1083, %v1096
      %v1098 = vcombine.high %v1090, %v1090
      %v1099 = vcombine.high %v1097, %v1097
      %v1100 = vcombine.high %v794, %v794
      %v1102 = vunpack.c.l.s4 1983009808
      %v1103 = vunpack.c.0.s8 %v1102
      %v1104 = vlaneseq
      %v1105 = vshrl.u32 %v1104, 7
      %v1106 = vsub.s32 %v1103, %v1105
      %v1107 = vrot.slane %v794, %v1106
      %v1109 = vunpack.c.l.s4 1983009808
      %v1110 = vunpack.c.0.s8 %v1109
      %v1111 = vlaneseq
      %v1112 = vshrl.u32 %v1111, 7
      %v1113 = vsub.s32 %v1110, %v1112
      %v1114 = vrot.slane %v1100, %v1113
      %v1115 = vcombine.high %v1107, %v1107
      %v1116 = vcombine.high %v1114, %v1114
      %v1117 = vcombine.high %v795, %v795
      %v1119 = vunpack.c.l.s4 1983009808
      %v1120 = vunpack.c.0.s8 %v1119
      %v1121 = vlaneseq
      %v1122 = vshrl.u32 %v1121, 7
      %v1123 = vsub.s32 %v1120, %v1122
      %v1124 = vrot.slane %v795, %v1123
      %v1126 = vunpack.c.l.s4 1983009808
      %v1127 = vunpack.c.0.s8 %v1126
      %v1128 = vlaneseq
      %v1129 = vshrl.u32 %v1128, 7
      %v1130 = vsub.s32 %v1127, %v1129
      %v1131 = vrot.slane %v1117, %v1130
      %v1132 = vcombine.high %v1124, %v1124
      %v1133 = vcombine.high %v1131, %v1131
      %v1134 = vcombine.high %v796, %v796
      %v1136 = vunpack.c.l.s4 1983009808
      %v1137 = vunpack.c.0.s8 %v1136
      %v1138 = vlaneseq
      %v1139 = vshrl.u32 %v1138, 7
      %v1140 = vsub.s32 %v1137, %v1139
      %v1141 = vrot.slane %v796, %v1140
      %v1143 = vunpack.c.l.s4 1983009808
      %v1144 = vunpack.c.0.s8 %v1143
      %v1145 = vlaneseq
      %v1146 = vshrl.u32 %v1145, 7
      %v1147 = vsub.s32 %v1144, %v1146
      %v1148 = vrot.slane %v1134, %v1147
      %v1149 = vcombine.high %v1141, %v1141
      %v1150 = vcombine.high %v1148, %v1148
      %v1151 = vcombine.high %v797, %v797
      %v1153 = vunpack.c.l.s4 1983009808
      %v1154 = vunpack.c.0.s8 %v1153
      %v1155 = vlaneseq
      %v1156 = vshrl.u32 %v1155, 7
      %v1157 = vsub.s32 %v1154, %v1156
      %v1158 = vrot.slane %v797, %v1157
      %v1160 = vunpack.c.l.s4 1983009808
      %v1161 = vunpack.c.0.s8 %v1160
      %v1162 = vlaneseq
      %v1163 = vshrl.u32 %v1162, 7
      %v1164 = vsub.s32 %v1161, %v1163
      %v1165 = vrot.slane %v1151, %v1164
      %v1166 = vcombine.high %v1158, %v1158
      %v1167 = vcombine.high %v1165, %v1165
      %v1168 = vcombine.high %v798, %v798
      %v1170 = vunpack.c.l.s4 1983009808
      %v1171 = vunpack.c.0.s8 %v1170
      %v1172 = vlaneseq
      %v1173 = vshrl.u32 %v1172, 7
      %v1174 = vsub.s32 %v1171, %v1173
      %v1175 = vrot.slane %v798, %v1174
      %v1177 = vunpack.c.l.s4 1983009808
      %v1178 = vunpack.c.0.s8 %v1177
      %v1179 = vlaneseq
      %v1180 = vshrl.u32 %v1179, 7
      %v1181 = vsub.s32 %v1178, %v1180
      %v1182 = vrot.slane %v1168, %v1181
      %v1183 = vcombine.high %v1175, %v1175
      %v1184 = vcombine.high %v1182, %v1182
      %v1185 = vcombine.high %v799, %v799
      %v1187 = vunpack.c.l.s4 1983009808
      %v1188 = vunpack.c.0.s8 %v1187
      %v1189 = vlaneseq
      %v1190 = vshrl.u32 %v1189, 7
      %v1191 = vsub.s32 %v1188, %v1190
      %v1192 = vrot.slane %v799, %v1191
      %v1194 = vunpack.c.l.s4 1983009808
      %v1195 = vunpack.c.0.s8 %v1194
      %v1196 = vlaneseq
      %v1197 = vshrl.u32 %v1196, 7
      %v1198 = vsub.s32 %v1195, %v1197
      %v1199 = vrot.slane %v1185, %v1198
      %v1200 = vcombine.high %v1192, %v1192
      %v1201 = vcombine.high %v1199, %v1199
      %v1202 = vcombine.high %v800, %v800
      %v1204 = vunpack.c.l.s4 1983009808
      %v1205 = vunpack.c.0.s8 %v1204
      %v1206 = vlaneseq
      %v1207 = vshrl.u32 %v1206, 7
      %v1208 = vsub.s32 %v1205, %v1207
      %v1209 = vrot.slane %v800, %v1208
      %v1211 = vunpack.c.l.s4 1983009808
      %v1212 = vunpack.c.0.s8 %v1211
      %v1213 = vlaneseq
      %v1214 = vshrl.u32 %v1213, 7
      %v1215 = vsub.s32 %v1212, %v1214
      %v1216 = vrot.slane %v1202, %v1215
      %v1217 = vcombine.high %v1209, %v1209
      %v1218 = vcombine.high %v1216, %v1216
      %v1219 = vcombine.high %v801, %v801
      %v1221 = vunpack.c.l.s4 1983009808
      %v1222 = vunpack.c.0.s8 %v1221
      %v1223 = vlaneseq
      %v1224 = vshrl.u32 %v1223, 7
      %v1225 = vsub.s32 %v1222, %v1224
      %v1226 = vrot.slane %v801, %v1225
      %v1228 = vunpack.c.l.s4 1983009808
      %v1229 = vunpack.c.0.s8 %v1228
      %v1230 = vlaneseq
      %v1231 = vshrl.u32 %v1230, 7
      %v1232 = vsub.s32 %v1229, %v1231
      %v1233 = vrot.slane %v1219, %v1232
      %v1234 = vcombine.high %v1226, %v1226
      %v1235 = vcombine.high %v1233, %v1233
      %v1236 = vcombine.high %v802, %v802
      %v1238 = vunpack.c.l.s4 1983009808
      %v1239 = vunpack.c.0.s8 %v1238
      %v1240 = vlaneseq
      %v1241 = vshrl.u32 %v1240, 7
      %v1242 = vsub.s32 %v1239, %v1241
      %v1243 = vrot.slane %v802, %v1242
      %v1245 = vunpack.c.l.s4 1983009808
      %v1246 = vunpack.c.0.s8 %v1245
      %v1247 = vlaneseq
      %v1248 = vshrl.u32 %v1247, 7
      %v1249 = vsub.s32 %v1246, %v1248
      %v1250 = vrot.slane %v1236, %v1249
      %v1251 = vcombine.high %v1243, %v1243
      %v1252 = vcombine.high %v1250, %v1250
      %v1253 = vcombine.high %v803, %v803
      %v1255 = vunpack.c.l.s4 1983009808
      %v1256 = vunpack.c.0.s8 %v1255
      %v1257 = vlaneseq
      %v1258 = vshrl.u32 %v1257, 7
      %v1259 = vsub.s32 %v1256, %v1258
      %v1260 = vrot.slane %v803, %v1259
      %v1262 = vunpack.c.l.s4 1983009808
      %v1263 = vunpack.c.0.s8 %v1262
      %v1264 = vlaneseq
      %v1265 = vshrl.u32 %v1264, 7
      %v1266 = vsub.s32 %v1263, %v1265
      %v1267 = vrot.slane %v1253, %v1266
      %v1268 = vcombine.high %v1260, %v1260
      %v1269 = vcombine.high %v1267, %v1267
      %v1270 = vcombine.high %v804, %v804
      %v1272 = vunpack.c.l.s4 1983009808
      %v1273 = vunpack.c.0.s8 %v1272
      %v1274 = vlaneseq
      %v1275 = vshrl.u32 %v1274, 7
      %v1276 = vsub.s32 %v1273, %v1275
      %v1277 = vrot.slane %v804, %v1276
      %v1279 = vunpack.c.l.s4 1983009808
      %v1280 = vunpack.c.0.s8 %v1279
      %v1281 = vlaneseq
      %v1282 = vshrl.u32 %v1281, 7
      %v1283 = vsub.s32 %v1280, %v1282
      %v1284 = vrot.slane %v1270, %v1283
      %v1285 = vcombine.high %v1277, %v1277
      %v1286 = vcombine.high %v1284, %v1284
      %v1287 = vcombine.high %v805, %v805
      %v1289 = vunpack.c.l.s4 1983009808
      %v1290 = vunpack.c.0.s8 %v1289
      %v1291 = vlaneseq
      %v1292 = vshrl.u32 %v1291, 7
      %v1293 = vsub.s32 %v1290, %v1292
      %v1294 = vrot.slane %v805, %v1293
      %v1296 = vunpack.c.l.s4 1983009808
      %v1297 = vunpack.c.0.s8 %v1296
      %v1298 = vlaneseq
      %v1299 = vshrl.u32 %v1298, 7
      %v1300 = vsub.s32 %v1297, %v1299
      %v1301 = vrot.slane %v1287, %v1300
      %v1302 = vcombine.high %v1294, %v1294
      %v1303 = vcombine.high %v1301, %v1301
      %v1304 = vcombine.high %v806, %v806
      %v1306 = vunpack.c.l.s4 1983009808
      %v1307 = vunpack.c.0.s8 %v1306
      %v1308 = vlaneseq
      %v1309 = vshrl.u32 %v1308, 7
      %v1310 = vsub.s32 %v1307, %v1309
      %v1311 = vrot.slane %v806, %v1310
      %v1313 = vunpack.c.l.s4 1983009808
      %v1314 = vunpack.c.0.s8 %v1313
      %v1315 = vlaneseq
      %v1316 = vshrl.u32 %v1315, 7
      %v1317 = vsub.s32 %v1314, %v1316
      %v1318 = vrot.slane %v1304, %v1317
      %v1319 = vcombine.high %v1311, %v1311
      %v1320 = vcombine.high %v1318, %v1318
      %v1321 = vcombine.high %v807, %v807
      %v1323 = vunpack.c.l.s4 1983009808
      %v1324 = vunpack.c.0.s8 %v1323
      %v1325 = vlaneseq
      %v1326 = vshrl.u32 %v1325, 7
      %v1327 = vsub.s32 %v1324, %v1326
      %v1328 = vrot.slane %v807, %v1327
      %v1330 = vunpack.c.l.s4 1983009808
      %v1331 = vunpack.c.0.s8 %v1330
      %v1332 = vlaneseq
      %v1333 = vshrl.u32 %v1332, 7
      %v1334 = vsub.s32 %v1331, %v1333
      %v1335 = vrot.slane %v1321, %v1334
      %v1336 = vcombine.high %v1328, %v1328
      %v1337 = vcombine.high %v1335, %v1335
      %v1338 = vcombine.high %v808, %v808
      %v1340 = vunpack.c.l.s4 1983009808
      %v1341 = vunpack.c.0.s8 %v1340
      %v1342 = vlaneseq
      %v1343 = vshrl.u32 %v1342, 7
      %v1344 = vsub.s32 %v1341, %v1343
      %v1345 = vrot.slane %v808, %v1344
      %v1347 = vunpack.c.l.s4 1983009808
      %v1348 = vunpack.c.0.s8 %v1347
      %v1349 = vlaneseq
      %v1350 = vshrl.u32 %v1349, 7
      %v1351 = vsub.s32 %v1348, %v1350
      %v1352 = vrot.slane %v1338, %v1351
      %v1353 = vcombine.high %v1345, %v1345
      %v1354 = vcombine.high %v1352, %v1352
      %v1355 = vcombine.high %v809, %v809
      %v1357 = vunpack.c.l.s4 1983009808
      %v1358 = vunpack.c.0.s8 %v1357
      %v1359 = vlaneseq
      %v1360 = vshrl.u32 %v1359, 7
      %v1361 = vsub.s32 %v1358, %v1360
      %v1362 = vrot.slane %v809, %v1361
      %v1364 = vunpack.c.l.s4 1983009808
      %v1365 = vunpack.c.0.s8 %v1364
      %v1366 = vlaneseq
      %v1367 = vshrl.u32 %v1366, 7
      %v1368 = vsub.s32 %v1365, %v1367
      %v1369 = vrot.slane %v1355, %v1368
      %v1370 = vcombine.high %v1362, %v1362
      %v1371 = vcombine.high %v1369, %v1369
      %v1372 = vcombine.high %v810, %v810
      %v1374 = vunpack.c.l.s4 1983009808
      %v1375 = vunpack.c.0.s8 %v1374
      %v1376 = vlaneseq
      %v1377 = vshrl.u32 %v1376, 7
      %v1378 = vsub.s32 %v1375, %v1377
      %v1379 = vrot.slane %v810, %v1378
      %v1381 = vunpack.c.l.s4 1983009808
      %v1382 = vunpack.c.0.s8 %v1381
      %v1383 = vlaneseq
      %v1384 = vshrl.u32 %v1383, 7
      %v1385 = vsub.s32 %v1382, %v1384
      %v1386 = vrot.slane %v1372, %v1385
      %v1387 = vcombine.high %v1379, %v1379
      %v1388 = vcombine.high %v1386, %v1386
      %v1389 = vcombine.high %v811, %v811
      %v1391 = vunpack.c.l.s4 1983009808
      %v1392 = vunpack.c.0.s8 %v1391
      %v1393 = vlaneseq
      %v1394 = vshrl.u32 %v1393, 7
      %v1395 = vsub.s32 %v1392, %v1394
      %v1396 = vrot.slane %v811, %v1395
      %v1398 = vunpack.c.l.s4 1983009808
      %v1399 = vunpack.c.0.s8 %v1398
      %v1400 = vlaneseq
      %v1401 = vshrl.u32 %v1400, 7
      %v1402 = vsub.s32 %v1399, %v1401
      %v1403 = vrot.slane %v1389, %v1402
      %v1404 = vcombine.high %v1396, %v1396
      %v1405 = vcombine.high %v1403, %v1403
      %v1406 = vcombine.high %v812, %v812
      %v1408 = vunpack.c.l.s4 1983009808
      %v1409 = vunpack.c.0.s8 %v1408
      %v1410 = vlaneseq
      %v1411 = vshrl.u32 %v1410, 7
      %v1412 = vsub.s32 %v1409, %v1411
      %v1413 = vrot.slane %v812, %v1412
      %v1415 = vunpack.c.l.s4 1983009808
      %v1416 = vunpack.c.0.s8 %v1415
      %v1417 = vlaneseq
      %v1418 = vshrl.u32 %v1417, 7
      %v1419 = vsub.s32 %v1416, %v1418
      %v1420 = vrot.slane %v1406, %v1419
      %v1421 = vcombine.high %v1413, %v1413
      %v1422 = vcombine.high %v1420, %v1420
      %v1423 = vcombine.high %v813, %v813
      %v1425 = vunpack.c.l.s4 1983009808
      %v1426 = vunpack.c.0.s8 %v1425
      %v1427 = vlaneseq
      %v1428 = vshrl.u32 %v1427, 7
      %v1429 = vsub.s32 %v1426, %v1428
      %v1430 = vrot.slane %v813, %v1429
      %v1432 = vunpack.c.l.s4 1983009808
      %v1433 = vunpack.c.0.s8 %v1432
      %v1434 = vlaneseq
      %v1435 = vshrl.u32 %v1434, 7
      %v1436 = vsub.s32 %v1433, %v1435
      %v1437 = vrot.slane %v1423, %v1436
      %v1438 = vcombine.high %v1430, %v1430
      %v1439 = vcombine.high %v1437, %v1437
      %v1440 = vcombine.high %v814, %v814
      %v1442 = vunpack.c.l.s4 1983009808
      %v1443 = vunpack.c.0.s8 %v1442
      %v1444 = vlaneseq
      %v1445 = vshrl.u32 %v1444, 7
      %v1446 = vsub.s32 %v1443, %v1445
      %v1447 = vrot.slane %v814, %v1446
      %v1449 = vunpack.c.l.s4 1983009808
      %v1450 = vunpack.c.0.s8 %v1449
      %v1451 = vlaneseq
      %v1452 = vshrl.u32 %v1451, 7
      %v1453 = vsub.s32 %v1450, %v1452
      %v1454 = vrot.slane %v1440, %v1453
      %v1455 = vcombine.high %v1447, %v1447
      %v1456 = vcombine.high %v1454, %v1454
      %v1457 = vcombine.high %v815, %v815
      %v1459 = vunpack.c.l.s4 1983009808
      %v1460 = vunpack.c.0.s8 %v1459
      %v1461 = vlaneseq
      %v1462 = vshrl.u32 %v1461, 7
      %v1463 = vsub.s32 %v1460, %v1462
      %v1464 = vrot.slane %v815, %v1463
      %v1466 = vunpack.c.l.s4 1983009808
      %v1467 = vunpack.c.0.s8 %v1466
      %v1468 = vlaneseq
      %v1469 = vshrl.u32 %v1468, 7
      %v1470 = vsub.s32 %v1467, %v1469
      %v1471 = vrot.slane %v1457, %v1470
      %v1472 = vcombine.high %v1464, %v1464
      %v1473 = vcombine.high %v1471, %v1471
      %v1474 = vcombine.high %v816, %v816
      %v1476 = vunpack.c.l.s4 1983009808
      %v1477 = vunpack.c.0.s8 %v1476
      %v1478 = vlaneseq
      %v1479 = vshrl.u32 %v1478, 7
      %v1480 = vsub.s32 %v1477, %v1479
      %v1481 = vrot.slane %v816, %v1480
      %v1483 = vunpack.c.l.s4 1983009808
      %v1484 = vunpack.c.0.s8 %v1483
      %v1485 = vlaneseq
      %v1486 = vshrl.u32 %v1485, 7
      %v1487 = vsub.s32 %v1484, %v1486
      %v1488 = vrot.slane %v1474, %v1487
      %v1489 = vcombine.high %v1481, %v1481
      %v1490 = vcombine.high %v1488, %v1488
      %v1491 = vcombine.high %v817, %v817
      %v1493 = vunpack.c.l.s4 1983009808
      %v1494 = vunpack.c.0.s8 %v1493
      %v1495 = vlaneseq
      %v1496 = vshrl.u32 %v1495, 7
      %v1497 = vsub.s32 %v1494, %v1496
      %v1498 = vrot.slane %v817, %v1497
      %v1500 = vunpack.c.l.s4 1983009808
      %v1501 = vunpack.c.0.s8 %v1500
      %v1502 = vlaneseq
      %v1503 = vshrl.u32 %v1502, 7
      %v1504 = vsub.s32 %v1501, %v1503
      %v1505 = vrot.slane %v1491, %v1504
      %v1506 = vcombine.high %v1498, %v1498
      %v1507 = vcombine.high %v1505, %v1505
      %v1508 = vcombine.high %v818, %v818
      %v1510 = vunpack.c.l.s4 1983009808
      %v1511 = vunpack.c.0.s8 %v1510
      %v1512 = vlaneseq
      %v1513 = vshrl.u32 %v1512, 7
      %v1514 = vsub.s32 %v1511, %v1513
      %v1515 = vrot.slane %v818, %v1514
      %v1517 = vunpack.c.l.s4 1983009808
      %v1518 = vunpack.c.0.s8 %v1517
      %v1519 = vlaneseq
      %v1520 = vshrl.u32 %v1519, 7
      %v1521 = vsub.s32 %v1518, %v1520
      %v1522 = vrot.slane %v1508, %v1521
      %v1523 = vcombine.high %v1515, %v1515
      %v1524 = vcombine.high %v1522, %v1522
      %v1525 = vcombine.high %v819, %v819
      %v1527 = vunpack.c.l.s4 1983009808
      %v1528 = vunpack.c.0.s8 %v1527
      %v1529 = vlaneseq
      %v1530 = vshrl.u32 %v1529, 7
      %v1531 = vsub.s32 %v1528, %v1530
      %v1532 = vrot.slane %v819, %v1531
      %v1534 = vunpack.c.l.s4 1983009808
      %v1535 = vunpack.c.0.s8 %v1534
      %v1536 = vlaneseq
      %v1537 = vshrl.u32 %v1536, 7
      %v1538 = vsub.s32 %v1535, %v1537
      %v1539 = vrot.slane %v1525, %v1538
      %v1540 = vcombine.high %v1532, %v1532
      %v1541 = vcombine.high %v1539, %v1539
      %v1543 = vunpack.c.l.s4 1983009808
      %v1544 = vunpack.c.0.s8 %v1543
      %v1545 = vlaneseq
      %v1546 = vshrl.u32 %v1545, 7
      %v1547 = vsub.s32 %v1544, %v1546
      %v1548 = vrot.slane %v820, %v1547
      %v1549 = vcombine.high %v1548, %v1548
      %v1550 = vcombine.low %v869, %v877
      %v1551 = vcombine.low %v876, %v878
      %v1553 = vunpack.c.l.s4 1983009808
      %v1554 = vunpack.c.0.s8 %v1553
      %v1555 = vlaneseq
      %v1556 = vshrl.u32 %v1555, 7
      %v1557 = vsub.s32 %v1554, %v1556
      %v1558 = vrot.slane %v1550, %v1557
      %v1560 = vunpack.c.l.s4 1983009808
      %v1561 = vunpack.c.0.s8 %v1560
      %v1562 = vlaneseq
      %v1563 = vshrl.u32 %v1562, 7
      %v1564 = vsub.s32 %v1561, %v1563
      %v1565 = vrot.slane %v1551, %v1564
      %v1566 = vcombine.low %v1558, %v1565
      %v1567 = vcombine.low %v886, %v894
      %v1568 = vcombine.low %v893, %v895
      %v1570 = vunpack.c.l.s4 1983009808
      %v1571 = vunpack.c.0.s8 %v1570
      %v1572 = vlaneseq
      %v1573 = vshrl.u32 %v1572, 7
      %v1574 = vsub.s32 %v1571, %v1573
      %v1575 = vrot.slane %v1567, %v1574
      %v1577 = vunpack.c.l.s4 1983009808
      %v1578 = vunpack.c.0.s8 %v1577
      %v1579 = vlaneseq
      %v1580 = vshrl.u32 %v1579, 7
      %v1581 = vsub.s32 %v1578, %v1580
      %v1582 = vrot.slane %v1568, %v1581
      %v1583 = vcombine.low %v1575, %v1582
      %v1585 = vunpack.c.l.s4 1983009808
      %v1586 = vunpack.c.0.s8 %v1585
      %v1587 = vlaneseq
      %v1588 = vshrl.u32 %v1587, 7
      %v1589 = vsub.s32 %v1586, %v1588
      %v1590 = vrot.slane %v903, %v1589
      %v1591 = vcombine.low %v911, %v910
      %v1592 = vcombine.low %v912, %v920
      %v1594 = vunpack.c.l.s4 1983009808
      %v1595 = vunpack.c.0.s8 %v1594
      %v1596 = vlaneseq
      %v1597 = vshrl.u32 %v1596, 7
      %v1598 = vsub.s32 %v1595, %v1597
      %v1599 = vrot.slane %v1591, %v1598
      %v1601 = vunpack.c.l.s4 1983009808
      %v1602 = vunpack.c.0.s8 %v1601
      %v1603 = vlaneseq
      %v1604 = vshrl.u32 %v1603, 7
      %v1605 = vsub.s32 %v1602, %v1604
      %v1606 = vrot.slane %v1592, %v1605
      %v1607 = vcombine.low %v1599, %v1606
      %v1608 = vcombine.low %v928, %v927
      %v1609 = vcombine.low %v929, %v937
      %v1611 = vunpack.c.l.s4 1983009808
      %v1612 = vunpack.c.0.s8 %v1611
      %v1613 = vlaneseq
      %v1614 = vshrl.u32 %v1613, 7
      %v1615 = vsub.s32 %v1612, %v1614
      %v1616 = vrot.slane %v1608, %v1615
      %v1618 = vunpack.c.l.s4 1983009808
      %v1619 = vunpack.c.0.s8 %v1618
      %v1620 = vlaneseq
      %v1621 = vshrl.u32 %v1620, 7
      %v1622 = vsub.s32 %v1619, %v1621
      %v1623 = vrot.slane %v1609, %v1622
      %v1624 = vcombine.low %v1616, %v1623
      %v1626 = vunpack.c.l.s4 1983009808
      %v1627 = vunpack.c.0.s8 %v1626
      %v1628 = vlaneseq
      %v1629 = vshrl.u32 %v1628, 7
      %v1630 = vsub.s32 %v1627, %v1629
      %v1631 = vrot.slane %v945, %v1630
      %v1632 = vcombine.low %v944, %v946
      %v1633 = vcombine.low %v954, %v962
      %v1635 = vunpack.c.l.s4 1983009808
      %v1636 = vunpack.c.0.s8 %v1635
      %v1637 = vlaneseq
      %v1638 = vshrl.u32 %v1637, 7
      %v1639 = vsub.s32 %v1636, %v1638
      %v1640 = vrot.slane %v1632, %v1639
      %v1642 = vunpack.c.l.s4 1983009808
      %v1643 = vunpack.c.0.s8 %v1642
      %v1644 = vlaneseq
      %v1645 = vshrl.u32 %v1644, 7
      %v1646 = vsub.s32 %v1643, %v1645
      %v1647 = vrot.slane %v1633, %v1646
      %v1648 = vcombine.low %v1640, %v1647
      %v1649 = vcombine.low %v961, %v963
      %v1650 = vcombine.low %v971, %v979
      %v1652 = vunpack.c.l.s4 1983009808
      %v1653 = vunpack.c.0.s8 %v1652
      %v1654 = vlaneseq
      %v1655 = vshrl.u32 %v1654, 7
      %v1656 = vsub.s32 %v1653, %v1655
      %v1657 = vrot.slane %v1649, %v1656
      %v1659 = vunpack.c.l.s4 1983009808
      %v1660 = vunpack.c.0.s8 %v1659
      %v1661 = vlaneseq
      %v1662 = vshrl.u32 %v1661, 7
      %v1663 = vsub.s32 %v1660, %v1662
      %v1664 = vrot.slane %v1650, %v1663
      %v1665 = vcombine.low %v1657, %v1664
      %v1667 = vunpack.c.l.s4 1983009808
      %v1668 = vunpack.c.0.s8 %v1667
      %v1669 = vlaneseq
      %v1670 = vshrl.u32 %v1669, 7
      %v1671 = vsub.s32 %v1668, %v1670
      %v1672 = vrot.slane %v978, %v1671
      %v1673 = vcombine.low %v980, %v988
      %v1674 = vcombine.low %v996, %v995
      %v1676 = vunpack.c.l.s4 1983009808
      %v1677 = vunpack.c.0.s8 %v1676
      %v1678 = vlaneseq
      %v1679 = vshrl.u32 %v1678, 7
      %v1680 = vsub.s32 %v1677, %v1679
      %v1681 = vrot.slane %v1673, %v1680
      %v1683 = vunpack.c.l.s4 1983009808
      %v1684 = vunpack.c.0.s8 %v1683
      %v1685 = vlaneseq
      %v1686 = vshrl.u32 %v1685, 7
      %v1687 = vsub.s32 %v1684, %v1686
      %v1688 = vrot.slane %v1674, %v1687
      %v1689 = vcombine.low %v1681, %v1688
      %v1690 = vcombine.low %v997, %v1005
      %v1691 = vcombine.low %v1013, %v1012
      %v1693 = vunpack.c.l.s4 1983009808
      %v1694 = vunpack.c.0.s8 %v1693
      %v1695 = vlaneseq
      %v1696 = vshrl.u32 %v1695, 7
      %v1697 = vsub.s32 %v1694, %v1696
      %v1698 = vrot.slane %v1690, %v1697
      %v1700 = vunpack.c.l.s4 1983009808
      %v1701 = vunpack.c.0.s8 %v1700
      %v1702 = vlaneseq
      %v1703 = vshrl.u32 %v1702, 7
      %v1704 = vsub.s32 %v1701, %v1703
      %v1705 = vrot.slane %v1691, %v1704
      %v1706 = vcombine.low %v1698, %v1705
      %v1708 = vunpack.c.l.s4 1983009808
      %v1709 = vunpack.c.0.s8 %v1708
      %v1710 = vlaneseq
      %v1711 = vshrl.u32 %v1710, 7
      %v1712 = vsub.s32 %v1709, %v1711
      %v1713 = vrot.slane %v1014, %v1712
      %v1714 = vcombine.low %v1022, %v1030
      %v1715 = vcombine.low %v1029, %v1031
      %v1717 = vunpack.c.l.s4 1983009808
      %v1718 = vunpack.c.0.s8 %v1717
      %v1719 = vlaneseq
      %v1720 = vshrl.u32 %v1719, 7
      %v1721 = vsub.s32 %v1718, %v1720
      %v1722 = vrot.slane %v1714, %v1721
      %v1724 = vunpack.c.l.s4 1983009808
      %v1725 = vunpack.c.0.s8 %v1724
      %v1726 = vlaneseq
      %v1727 = vshrl.u32 %v1726, 7
      %v1728 = vsub.s32 %v1725, %v1727
      %v1729 = vrot.slane %v1715, %v1728
      %v1730 = vcombine.low %v1722, %v1729
      %v1731 = vcombine.low %v1039, %v1047
      %v1732 = vcombine.low %v1046, %v1048
      %v1734 = vunpack.c.l.s4 1983009808
      %v1735 = vunpack.c.0.s8 %v1734
      %v1736 = vlaneseq
      %v1737 = vshrl.u32 %v1736, 7
      %v1738 = vsub.s32 %v1735, %v1737
      %v1739 = vrot.slane %v1731, %v1738
      %v1741 = vunpack.c.l.s4 1983009808
      %v1742 = vunpack.c.0.s8 %v1741
      %v1743 = vlaneseq
      %v1744 = vshrl.u32 %v1743, 7
      %v1745 = vsub.s32 %v1742, %v1744
      %v1746 = vrot.slane %v1732, %v1745
      %v1747 = vcombine.low %v1739, %v1746
      %v1749 = vunpack.c.l.s4 1983009808
      %v1750 = vunpack.c.0.s8 %v1749
      %v1751 = vlaneseq
      %v1752 = vshrl.u32 %v1751, 7
      %v1753 = vsub.s32 %v1750, %v1752
      %v1754 = vrot.slane %v1056, %v1753
      %v1755 = vcombine.low %v1064, %v1063
      %v1756 = vcombine.low %v1065, %v1073
      %v1758 = vunpack.c.l.s4 1983009808
      %v1759 = vunpack.c.0.s8 %v1758
      %v1760 = vlaneseq
      %v1761 = vshrl.u32 %v1760, 7
      %v1762 = vsub.s32 %v1759, %v1761
      %v1763 = vrot.slane %v1755, %v1762
      %v1765 = vunpack.c.l.s4 1983009808
      %v1766 = vunpack.c.0.s8 %v1765
      %v1767 = vlaneseq
      %v1768 = vshrl.u32 %v1767, 7
      %v1769 = vsub.s32 %v1766, %v1768
      %v1770 = vrot.slane %v1756, %v1769
      %v1771 = vcombine.low %v1763, %v1770
      %v1772 = vcombine.low %v1081, %v1080
      %v1773 = vcombine.low %v1082, %v1090
      %v1775 = vunpack.c.l.s4 1983009808
      %v1776 = vunpack.c.0.s8 %v1775
      %v1777 = vlaneseq
      %v1778 = vshrl.u32 %v1777, 7
      %v1779 = vsub.s32 %v1776, %v1778
      %v1780 = vrot.slane %v1772, %v1779
      %v1782 = vunpack.c.l.s4 1983009808
      %v1783 = vunpack.c.0.s8 %v1782
      %v1784 = vlaneseq
      %v1785 = vshrl.u32 %v1784, 7
      %v1786 = vsub.s32 %v1783, %v1785
      %v1787 = vrot.slane %v1773, %v1786
      %v1788 = vcombine.low %v1780, %v1787
      %v1790 = vunpack.c.l.s4 1983009808
      %v1791 = vunpack.c.0.s8 %v1790
      %v1792 = vlaneseq
      %v1793 = vshrl.u32 %v1792, 7
      %v1794 = vsub.s32 %v1791, %v1793
      %v1795 = vrot.slane %v1098, %v1794
      %v1796 = vcombine.low %v1097, %v1099
      %v1797 = vcombine.low %v1107, %v1115
      %v1799 = vunpack.c.l.s4 1983009808
      %v1800 = vunpack.c.0.s8 %v1799
      %v1801 = vlaneseq
      %v1802 = vshrl.u32 %v1801, 7
      %v1803 = vsub.s32 %v1800, %v1802
      %v1804 = vrot.slane %v1796, %v1803
      %v1806 = vunpack.c.l.s4 1983009808
      %v1807 = vunpack.c.0.s8 %v1806
      %v1808 = vlaneseq
      %v1809 = vshrl.u32 %v1808, 7
      %v1810 = vsub.s32 %v1807, %v1809
      %v1811 = vrot.slane %v1797, %v1810
      %v1812 = vcombine.low %v1804, %v1811
      %v1813 = vcombine.low %v1114, %v1116
      %v1814 = vcombine.low %v1124, %v1132
      %v1816 = vunpack.c.l.s4 1983009808
      %v1817 = vunpack.c.0.s8 %v1816
      %v1818 = vlaneseq
      %v1819 = vshrl.u32 %v1818, 7
      %v1820 = vsub.s32 %v1817, %v1819
      %v1821 = vrot.slane %v1813, %v1820
      %v1823 = vunpack.c.l.s4 1983009808
      %v1824 = vunpack.c.0.s8 %v1823
      %v1825 = vlaneseq
      %v1826 = vshrl.u32 %v1825, 7
      %v1827 = vsub.s32 %v1824, %v1826
      %v1828 = vrot.slane %v1814, %v1827
      %v1829 = vcombine.low %v1821, %v1828
      %v1831 = vunpack.c.l.s4 1983009808
      %v1832 = vunpack.c.0.s8 %v1831
      %v1833 = vlaneseq
      %v1834 = vshrl.u32 %v1833, 7
      %v1835 = vsub.s32 %v1832, %v1834
      %v1836 = vrot.slane %v1131, %v1835
      %v1837 = vcombine.low %v1133, %v1141
      %v1838 = vcombine.low %v1149, %v1148
      %v1840 = vunpack.c.l.s4 1983009808
      %v1841 = vunpack.c.0.s8 %v1840
      %v1842 = vlaneseq
      %v1843 = vshrl.u32 %v1842, 7
      %v1844 = vsub.s32 %v1841, %v1843
      %v1845 = vrot.slane %v1837, %v1844
      %v1847 = vunpack.c.l.s4 1983009808
      %v1848 = vunpack.c.0.s8 %v1847
      %v1849 = vlaneseq
      %v1850 = vshrl.u32 %v1849, 7
      %v1851 = vsub.s32 %v1848, %v1850
      %v1852 = vrot.slane %v1838, %v1851
      %v1853 = vcombine.low %v1845, %v1852
      %v1854 = vcombine.low %v1150, %v1158
      %v1855 = vcombine.low %v1166, %v1165
      %v1857 = vunpack.c.l.s4 1983009808
      %v1858 = vunpack.c.0.s8 %v1857
      %v1859 = vlaneseq
      %v1860 = vshrl.u32 %v1859, 7
      %v1861 = vsub.s32 %v1858, %v1860
      %v1862 = vrot.slane %v1854, %v1861
      %v1864 = vunpack.c.l.s4 1983009808
      %v1865 = vunpack.c.0.s8 %v1864
      %v1866 = vlaneseq
      %v1867 = vshrl.u32 %v1866, 7
      %v1868 = vsub.s32 %v1865, %v1867
      %v1869 = vrot.slane %v1855, %v1868
      %v1870 = vcombine.low %v1862, %v1869
      %v1872 = vunpack.c.l.s4 1983009808
      %v1873 = vunpack.c.0.s8 %v1872
      %v1874 = vlaneseq
      %v1875 = vshrl.u32 %v1874, 7
      %v1876 = vsub.s32 %v1873, %v1875
      %v1877 = vrot.slane %v1167, %v1876
      %v1878 = vcombine.low %v1175, %v1183
      %v1879 = vcombine.low %v1182, %v1184
      %v1881 = vunpack.c.l.s4 1983009808
      %v1882 = vunpack.c.0.s8 %v1881
      %v1883 = vlaneseq
      %v1884 = vshrl.u32 %v1883, 7
      %v1885 = vsub.s32 %v1882, %v1884
      %v1886 = vrot.slane %v1878, %v1885
      %v1888 = vunpack.c.l.s4 1983009808
      %v1889 = vunpack.c.0.s8 %v1888
      %v1890 = vlaneseq
      %v1891 = vshrl.u32 %v1890, 7
      %v1892 = vsub.s32 %v1889, %v1891
      %v1893 = vrot.slane %v1879, %v1892
      %v1894 = vcombine.low %v1886, %v1893
      %v1895 = vcombine.low %v1192, %v1200
      %v1896 = vcombine.low %v1199, %v1201
      %v1898 = vunpack.c.l.s4 1983009808
      %v1899 = vunpack.c.0.s8 %v1898
      %v1900 = vlaneseq
      %v1901 = vshrl.u32 %v1900, 7
      %v1902 = vsub.s32 %v1899, %v1901
      %v1903 = vrot.slane %v1895, %v1902
      %v1905 = vunpack.c.l.s4 1983009808
      %v1906 = vunpack.c.0.s8 %v1905
      %v1907 = vlaneseq
      %v1908 = vshrl.u32 %v1907, 7
      %v1909 = vsub.s32 %v1906, %v1908
      %v1910 = vrot.slane %v1896, %v1909
      %v1911 = vcombine.low %v1903, %v1910
      %v1913 = vunpack.c.l.s4 1983009808
      %v1914 = vunpack.c.0.s8 %v1913
      %v1915 = vlaneseq
      %v1916 = vshrl.u32 %v1915, 7
      %v1917 = vsub.s32 %v1914, %v1916
      %v1918 = vrot.slane %v1209, %v1917
      %v1919 = vcombine.low %v1217, %v1216
      %v1920 = vcombine.low %v1218, %v1226
      %v1922 = vunpack.c.l.s4 1983009808
      %v1923 = vunpack.c.0.s8 %v1922
      %v1924 = vlaneseq
      %v1925 = vshrl.u32 %v1924, 7
      %v1926 = vsub.s32 %v1923, %v1925
      %v1927 = vrot.slane %v1919, %v1926
      %v1929 = vunpack.c.l.s4 1983009808
      %v1930 = vunpack.c.0.s8 %v1929
      %v1931 = vlaneseq
      %v1932 = vshrl.u32 %v1931, 7
      %v1933 = vsub.s32 %v1930, %v1932
      %v1934 = vrot.slane %v1920, %v1933
      %v1935 = vcombine.low %v1927, %v1934
      %v1936 = vcombine.low %v1234, %v1233
      %v1937 = vcombine.low %v1235, %v1243
      %v1939 = vunpack.c.l.s4 1983009808
      %v1940 = vunpack.c.0.s8 %v1939
      %v1941 = vlaneseq
      %v1942 = vshrl.u32 %v1941, 7
      %v1943 = vsub.s32 %v1940, %v1942
      %v1944 = vrot.slane %v1936, %v1943
      %v1946 = vunpack.c.l.s4 1983009808
      %v1947 = vunpack.c.0.s8 %v1946
      %v1948 = vlaneseq
      %v1949 = vshrl.u32 %v1948, 7
      %v1950 = vsub.s32 %v1947, %v1949
      %v1951 = vrot.slane %v1937, %v1950
      %v1952 = vcombine.low %v1944, %v1951
      %v1954 = vunpack.c.l.s4 1983009808
      %v1955 = vunpack.c.0.s8 %v1954
      %v1956 = vlaneseq
      %v1957 = vshrl.u32 %v1956, 7
      %v1958 = vsub.s32 %v1955, %v1957
      %v1959 = vrot.slane %v1251, %v1958
      %v1960 = vcombine.low %v1250, %v1252
      %v1961 = vcombine.low %v1260, %v1268
      %v1963 = vunpack.c.l.s4 1983009808
      %v1964 = vunpack.c.0.s8 %v1963
      %v1965 = vlaneseq
      %v1966 = vshrl.u32 %v1965, 7
      %v1967 = vsub.s32 %v1964, %v1966
      %v1968 = vrot.slane %v1960, %v1967
      %v1970 = vunpack.c.l.s4 1983009808
      %v1971 = vunpack.c.0.s8 %v1970
      %v1972 = vlaneseq
      %v1973 = vshrl.u32 %v1972, 7
      %v1974 = vsub.s32 %v1971, %v1973
      %v1975 = vrot.slane %v1961, %v1974
      %v1976 = vcombine.low %v1968, %v1975
      %v1977 = vcombine.low %v1267, %v1269
      %v1978 = vcombine.low %v1277, %v1285
      %v1980 = vunpack.c.l.s4 1983009808
      %v1981 = vunpack.c.0.s8 %v1980
      %v1982 = vlaneseq
      %v1983 = vshrl.u32 %v1982, 7
      %v1984 = vsub.s32 %v1981, %v1983
      %v1985 = vrot.slane %v1977, %v1984
      %v1987 = vunpack.c.l.s4 1983009808
      %v1988 = vunpack.c.0.s8 %v1987
      %v1989 = vlaneseq
      %v1990 = vshrl.u32 %v1989, 7
      %v1991 = vsub.s32 %v1988, %v1990
      %v1992 = vrot.slane %v1978, %v1991
      %v1993 = vcombine.low %v1985, %v1992
      %v1995 = vunpack.c.l.s4 1983009808
      %v1996 = vunpack.c.0.s8 %v1995
      %v1997 = vlaneseq
      %v1998 = vshrl.u32 %v1997, 7
      %v1999 = vsub.s32 %v1996, %v1998
      %v2000 = vrot.slane %v1284, %v1999
      %v2001 = vcombine.low %v1286, %v1294
      %v2002 = vcombine.low %v1302, %v1301
      %v2004 = vunpack.c.l.s4 1983009808
      %v2005 = vunpack.c.0.s8 %v2004
      %v2006 = vlaneseq
      %v2007 = vshrl.u32 %v2006, 7
      %v2008 = vsub.s32 %v2005, %v2007
      %v2009 = vrot.slane %v2001, %v2008
      %v2011 = vunpack.c.l.s4 1983009808
      %v2012 = vunpack.c.0.s8 %v2011
      %v2013 = vlaneseq
      %v2014 = vshrl.u32 %v2013, 7
      %v2015 = vsub.s32 %v2012, %v2014
      %v2016 = vrot.slane %v2002, %v2015
      %v2017 = vcombine.low %v2009, %v2016
      %v2018 = vcombine.low %v1303, %v1311
      %v2019 = vcombine.low %v1319, %v1318
      %v2021 = vunpack.c.l.s4 1983009808
      %v2022 = vunpack.c.0.s8 %v2021
      %v2023 = vlaneseq
      %v2024 = vshrl.u32 %v2023, 7
      %v2025 = vsub.s32 %v2022, %v2024
      %v2026 = vrot.slane %v2018, %v2025
      %v2028 = vunpack.c.l.s4 1983009808
      %v2029 = vunpack.c.0.s8 %v2028
      %v2030 = vlaneseq
      %v2031 = vshrl.u32 %v2030, 7
      %v2032 = vsub.s32 %v2029, %v2031
      %v2033 = vrot.slane %v2019, %v2032
      %v2034 = vcombine.low %v2026, %v2033
      %v2036 = vunpack.c.l.s4 1983009808
      %v2037 = vunpack.c.0.s8 %v2036
      %v2038 = vlaneseq
      %v2039 = vshrl.u32 %v2038, 7
      %v2040 = vsub.s32 %v2037, %v2039
      %v2041 = vrot.slane %v1320, %v2040
      %v2042 = vcombine.low %v1328, %v1336
      %v2043 = vcombine.low %v1335, %v1337
      %v2045 = vunpack.c.l.s4 1983009808
      %v2046 = vunpack.c.0.s8 %v2045
      %v2047 = vlaneseq
      %v2048 = vshrl.u32 %v2047, 7
      %v2049 = vsub.s32 %v2046, %v2048
      %v2050 = vrot.slane %v2042, %v2049
      %v2052 = vunpack.c.l.s4 1983009808
      %v2053 = vunpack.c.0.s8 %v2052
      %v2054 = vlaneseq
      %v2055 = vshrl.u32 %v2054, 7
      %v2056 = vsub.s32 %v2053, %v2055
      %v2057 = vrot.slane %v2043, %v2056
      %v2058 = vcombine.low %v2050, %v2057
      %v2059 = vcombine.low %v1345, %v1353
      %v2060 = vcombine.low %v1352, %v1354
      %v2062 = vunpack.c.l.s4 1983009808
      %v2063 = vunpack.c.0.s8 %v2062
      %v2064 = vlaneseq
      %v2065 = vshrl.u32 %v2064, 7
      %v2066 = vsub.s32 %v2063, %v2065
      %v2067 = vrot.slane %v2059, %v2066
      %v2069 = vunpack.c.l.s4 1983009808
      %v2070 = vunpack.c.0.s8 %v2069
      %v2071 = vlaneseq
      %v2072 = vshrl.u32 %v2071, 7
      %v2073 = vsub.s32 %v2070, %v2072
      %v2074 = vrot.slane %v2060, %v2073
      %v2075 = vcombine.low %v2067, %v2074
      %v2077 = vunpack.c.l.s4 1983009808
      %v2078 = vunpack.c.0.s8 %v2077
      %v2079 = vlaneseq
      %v2080 = vshrl.u32 %v2079, 7
      %v2081 = vsub.s32 %v2078, %v2080
      %v2082 = vrot.slane %v1362, %v2081
      %v2083 = vcombine.low %v1370, %v1369
      %v2084 = vcombine.low %v1371, %v1379
      %v2086 = vunpack.c.l.s4 1983009808
      %v2087 = vunpack.c.0.s8 %v2086
      %v2088 = vlaneseq
      %v2089 = vshrl.u32 %v2088, 7
      %v2090 = vsub.s32 %v2087, %v2089
      %v2091 = vrot.slane %v2083, %v2090
      %v2093 = vunpack.c.l.s4 1983009808
      %v2094 = vunpack.c.0.s8 %v2093
      %v2095 = vlaneseq
      %v2096 = vshrl.u32 %v2095, 7
      %v2097 = vsub.s32 %v2094, %v2096
      %v2098 = vrot.slane %v2084, %v2097
      %v2099 = vcombine.low %v2091, %v2098
      %v2100 = vcombine.low %v1387, %v1386
      %v2101 = vcombine.low %v1388, %v1396
      %v2103 = vunpack.c.l.s4 1983009808
      %v2104 = vunpack.c.0.s8 %v2103
      %v2105 = vlaneseq
      %v2106 = vshrl.u32 %v2105, 7
      %v2107 = vsub.s32 %v2104, %v2106
      %v2108 = vrot.slane %v2100, %v2107
      %v2110 = vunpack.c.l.s4 1983009808
      %v2111 = vunpack.c.0.s8 %v2110
      %v2112 = vlaneseq
      %v2113 = vshrl.u32 %v2112, 7
      %v2114 = vsub.s32 %v2111, %v2113
      %v2115 = vrot.slane %v2101, %v2114
      %v2116 = vcombine.low %v2108, %v2115
      %v2118 = vunpack.c.l.s4 1983009808
      %v2119 = vunpack.c.0.s8 %v2118
      %v2120 = vlaneseq
      %v2121 = vshrl.u32 %v2120, 7
      %v2122 = vsub.s32 %v2119, %v2121
      %v2123 = vrot.slane %v1404, %v2122
      %v2124 = vcombine.low %v1403, %v1405
      %v2125 = vcombine.low %v1413, %v1421
      %v2127 = vunpack.c.l.s4 1983009808
      %v2128 = vunpack.c.0.s8 %v2127
      %v2129 = vlaneseq
      %v2130 = vshrl.u32 %v2129, 7
      %v2131 = vsub.s32 %v2128, %v2130
      %v2132 = vrot.slane %v2124, %v2131
      %v2134 = vunpack.c.l.s4 1983009808
      %v2135 = vunpack.c.0.s8 %v2134
      %v2136 = vlaneseq
      %v2137 = vshrl.u32 %v2136, 7
      %v2138 = vsub.s32 %v2135, %v2137
      %v2139 = vrot.slane %v2125, %v2138
      %v2140 = vcombine.low %v2132, %v2139
      %v2141 = vcombine.low %v1420, %v1422
      %v2142 = vcombine.low %v1430, %v1438
      %v2144 = vunpack.c.l.s4 1983009808
      %v2145 = vunpack.c.0.s8 %v2144
      %v2146 = vlaneseq
      %v2147 = vshrl.u32 %v2146, 7
      %v2148 = vsub.s32 %v2145, %v2147
      %v2149 = vrot.slane %v2141, %v2148
      %v2151 = vunpack.c.l.s4 1983009808
      %v2152 = vunpack.c.0.s8 %v2151
      %v2153 = vlaneseq
      %v2154 = vshrl.u32 %v2153, 7
      %v2155 = vsub.s32 %v2152, %v2154
      %v2156 = vrot.slane %v2142, %v2155
      %v2157 = vcombine.low %v2149, %v2156
      %v2159 = vunpack.c.l.s4 1983009808
      %v2160 = vunpack.c.0.s8 %v2159
      %v2161 = vlaneseq
      %v2162 = vshrl.u32 %v2161, 7
      %v2163 = vsub.s32 %v2160, %v2162
      %v2164 = vrot.slane %v1437, %v2163
      %v2165 = vcombine.low %v1439, %v1447
      %v2166 = vcombine.low %v1455, %v1454
      %v2168 = vunpack.c.l.s4 1983009808
      %v2169 = vunpack.c.0.s8 %v2168
      %v2170 = vlaneseq
      %v2171 = vshrl.u32 %v2170, 7
      %v2172 = vsub.s32 %v2169, %v2171
      %v2173 = vrot.slane %v2165, %v2172
      %v2175 = vunpack.c.l.s4 1983009808
      %v2176 = vunpack.c.0.s8 %v2175
      %v2177 = vlaneseq
      %v2178 = vshrl.u32 %v2177, 7
      %v2179 = vsub.s32 %v2176, %v2178
      %v2180 = vrot.slane %v2166, %v2179
      %v2181 = vcombine.low %v2173, %v2180
      %v2182 = vcombine.low %v1456, %v1464
      %v2183 = vcombine.low %v1472, %v1471
      %v2185 = vunpack.c.l.s4 1983009808
      %v2186 = vunpack.c.0.s8 %v2185
      %v2187 = vlaneseq
      %v2188 = vshrl.u32 %v2187, 7
      %v2189 = vsub.s32 %v2186, %v2188
      %v2190 = vrot.slane %v2182, %v2189
      %v2192 = vunpack.c.l.s4 1983009808
      %v2193 = vunpack.c.0.s8 %v2192
      %v2194 = vlaneseq
      %v2195 = vshrl.u32 %v2194, 7
      %v2196 = vsub.s32 %v2193, %v2195
      %v2197 = vrot.slane %v2183, %v2196
      %v2198 = vcombine.low %v2190, %v2197
      %v2200 = vunpack.c.l.s4 1983009808
      %v2201 = vunpack.c.0.s8 %v2200
      %v2202 = vlaneseq
      %v2203 = vshrl.u32 %v2202, 7
      %v2204 = vsub.s32 %v2201, %v2203
      %v2205 = vrot.slane %v1473, %v2204
      %v2206 = vcombine.low %v1481, %v1489
      %v2207 = vcombine.low %v1488, %v1490
      %v2209 = vunpack.c.l.s4 1983009808
      %v2210 = vunpack.c.0.s8 %v2209
      %v2211 = vlaneseq
      %v2212 = vshrl.u32 %v2211, 7
      %v2213 = vsub.s32 %v2210, %v2212
      %v2214 = vrot.slane %v2206, %v2213
      %v2216 = vunpack.c.l.s4 1983009808
      %v2217 = vunpack.c.0.s8 %v2216
      %v2218 = vlaneseq
      %v2219 = vshrl.u32 %v2218, 7
      %v2220 = vsub.s32 %v2217, %v2219
      %v2221 = vrot.slane %v2207, %v2220
      %v2222 = vcombine.low %v2214, %v2221
      %v2223 = vcombine.low %v1498, %v1506
      %v2224 = vcombine.low %v1505, %v1507
      %v2226 = vunpack.c.l.s4 1983009808
      %v2227 = vunpack.c.0.s8 %v2226
      %v2228 = vlaneseq
      %v2229 = vshrl.u32 %v2228, 7
      %v2230 = vsub.s32 %v2227, %v2229
      %v2231 = vrot.slane %v2223, %v2230
      %v2233 = vunpack.c.l.s4 1983009808
      %v2234 = vunpack.c.0.s8 %v2233
      %v2235 = vlaneseq
      %v2236 = vshrl.u32 %v2235, 7
      %v2237 = vsub.s32 %v2234, %v2236
      %v2238 = vrot.slane %v2224, %v2237
      %v2239 = vcombine.low %v2231, %v2238
      %v2241 = vunpack.c.l.s4 1983009808
      %v2242 = vunpack.c.0.s8 %v2241
      %v2243 = vlaneseq
      %v2244 = vshrl.u32 %v2243, 7
      %v2245 = vsub.s32 %v2242, %v2244
      %v2246 = vrot.slane %v1515, %v2245
      %v2247 = vcombine.low %v1523, %v1522
      %v2248 = vcombine.low %v1524, %v1532
      %v2250 = vunpack.c.l.s4 1983009808
      %v2251 = vunpack.c.0.s8 %v2250
      %v2252 = vlaneseq
      %v2253 = vshrl.u32 %v2252, 7
      %v2254 = vsub.s32 %v2251, %v2253
      %v2255 = vrot.slane %v2247, %v2254
      %v2257 = vunpack.c.l.s4 1983009808
      %v2258 = vunpack.c.0.s8 %v2257
      %v2259 = vlaneseq
      %v2260 = vshrl.u32 %v2259, 7
      %v2261 = vsub.s32 %v2258, %v2260
      %v2262 = vrot.slane %v2248, %v2261
      %v2263 = vcombine.low %v2255, %v2262
      %v2264 = vcombine.low %v1540, %v1539
      %v2265 = vcombine.low %v1541, %v1548
      %v2267 = vunpack.c.l.s4 1983009808
      %v2268 = vunpack.c.0.s8 %v2267
      %v2269 = vlaneseq
      %v2270 = vshrl.u32 %v2269, 7
      %v2271 = vsub.s32 %v2268, %v2270
      %v2272 = vrot.slane %v2264, %v2271
      %v2274 = vunpack.c.l.s4 1983009808
      %v2275 = vunpack.c.0.s8 %v2274
      %v2276 = vlaneseq
      %v2277 = vshrl.u32 %v2276, 7
      %v2278 = vsub.s32 %v2275, %v2277
      %v2279 = vrot.slane %v2265, %v2278
      %v2280 = vcombine.low %v2272, %v2279
      %v2282 = vunpack.c.l.s4 1983009808
      %v2283 = vunpack.c.0.s8 %v2282
      %v2284 = vlaneseq
      %v2285 = vshrl.u32 %v2284, 7
      %v2286 = vsub.s32 %v2283, %v2285
      %v2287 = vrot.slane %v1549, %v2286
      %2342 = vst.msk [vmem:[#allocation2] sm:$0xff] %vm512, %v1566
      %2343 = vst.msk [vmem:[#allocation2 + $0x8] sm:$0xff] %vm512, %v1583
      %vm2344 = vcmask 25600
      %2345 = vst.msk [vmem:[#allocation2 + $0x10] sm:$0x3] %vm2344, %v1590
      %2346 = vst.msk [vmem:[#allocation2 + $0x18] sm:$0xff] %vm512, %v1607
      %2347 = vst.msk [vmem:[#allocation2 + $0x20] sm:$0xff] %vm512, %v1624
      %2348 = vst.msk [vmem:[#allocation2 + $0x28] sm:$0x3] %vm2344, %v1631
      %2349 = vst.msk [vmem:[#allocation2 + $0x30] sm:$0xff] %vm512, %v1648
      %2350 = vst.msk [vmem:[#allocation2 + $0x38] sm:$0xff] %vm512, %v1665
      %2351 = vst.msk [vmem:[#allocation2 + $0x40] sm:$0x3] %vm2344, %v1672
      %2352 = vst.msk [vmem:[#allocation2 + $0x48] sm:$0xff] %vm512, %v1689
      %2353 = vst.msk [vmem:[#allocation2 + $0x50] sm:$0xff] %vm512, %v1706
      %2354 = vst.msk [vmem:[#allocation2 + $0x58] sm:$0x3] %vm2344, %v1713
      %2355 = vst.msk [vmem:[#allocation2 + $0x60] sm:$0xff] %vm512, %v1730
      %2356 = vst.msk [vmem:[#allocation2 + $0x68] sm:$0xff] %vm512, %v1747
      %2357 = vst.msk [vmem:[#allocation2 + $0x70] sm:$0x3] %vm2344, %v1754
      %2358 = vst.msk [vmem:[#allocation2 + $0x78] sm:$0xff] %vm512, %v1771
      %2359 = vst.msk [vmem:[#allocation2 + $0x80] sm:$0xff] %vm512, %v1788
      %2360 = vst.msk [vmem:[#allocation2 + $0x88] sm:$0x3] %vm2344, %v1795
      %2361 = vst.msk [vmem:[#allocation2 + $0x90] sm:$0xff] %vm512, %v1812
      %2362 = vst.msk [vmem:[#allocation2 + $0x98] sm:$0xff] %vm512, %v1829
      %2363 = vst.msk [vmem:[#allocation2 + $0xa0] sm:$0x3] %vm2344, %v1836
      %2364 = vst.msk [vmem:[#allocation2 + $0xa8] sm:$0xff] %vm512, %v1853
      %2365 = vst.msk [vmem:[#allocation2 + $0xb0] sm:$0xff] %vm512, %v1870
      %2366 = vst.msk [vmem:[#allocation2 + $0xb8] sm:$0x3] %vm2344, %v1877
      %2367 = vst.msk [vmem:[#allocation2 + $0xc0] sm:$0xff] %vm512, %v1894
      %2368 = vst.msk [vmem:[#allocation2 + $0xc8] sm:$0xff] %vm512, %v1911
      %2369 = vst.msk [vmem:[#allocation2 + $0xd0] sm:$0x3] %vm2344, %v1918
      %2370 = vst.msk [vmem:[#allocation2 + $0xd8] sm:$0xff] %vm512, %v1935
      %2371 = vst.msk [vmem:[#allocation2 + $0xe0] sm:$0xff] %vm512, %v1952
      %2372 = vst.msk [vmem:[#allocation2 + $0xe8] sm:$0x3] %vm2344, %v1959
      %2373 = vst.msk [vmem:[#allocation2 + $0xf0] sm:$0xff] %vm512, %v1976
      %2374 = vst.msk [vmem:[#allocation2 + $0xf8] sm:$0xff] %vm512, %v1993
      %2375 = vst.msk [vmem:[#allocation2 + $0x100] sm:$0x3] %vm2344, %v2000
      %2376 = vst.msk [vmem:[#allocation2 + $0x108] sm:$0xff] %vm512, %v2017
      %2377 = vst.msk [vmem:[#allocation2 + $0x110] sm:$0xff] %vm512, %v2034
      %2378 = vst.msk [vmem:[#allocation2 + $0x118] sm:$0x3] %vm2344, %v2041
      %2379 = vst.msk [vmem:[#allocation2 + $0x120] sm:$0xff] %vm512, %v2058
      %2380 = vst.msk [vmem:[#allocation2 + $0x128] sm:$0xff] %vm512, %v2075
      %2381 = vst.msk [vmem:[#allocation2 + $0x130] sm:$0x3] %vm2344, %v2082
      %2382 = vst.msk [vmem:[#allocation2 + $0x138] sm:$0xff] %vm512, %v2099
      %2383 = vst.msk [vmem:[#allocation2 + $0x140] sm:$0xff] %vm512, %v2116
      %2384 = vst.msk [vmem:[#allocation2 + $0x148] sm:$0x3] %vm2344, %v2123
      %2385 = vst.msk [vmem:[#allocation2 + $0x150] sm:$0xff] %vm512, %v2140
      %2386 = vst.msk [vmem:[#allocation2 + $0x158] sm:$0xff] %vm512, %v2157
      %2387 = vst.msk [vmem:[#allocation2 + $0x160] sm:$0x3] %vm2344, %v2164
      %2388 = vst.msk [vmem:[#allocation2 + $0x168] sm:$0xff] %vm512, %v2181
      %2389 = vst.msk [vmem:[#allocation2 + $0x170] sm:$0xff] %vm512, %v2198
      %2390 = vst.msk [vmem:[#allocation2 + $0x178] sm:$0x3] %vm2344, %v2205
      %2391 = vst.msk [vmem:[#allocation2 + $0x180] sm:$0xff] %vm512, %v2222
      %2392 = vst.msk [vmem:[#allocation2 + $0x188] sm:$0xff] %vm512, %v2239
      %2393 = vst.msk [vmem:[#allocation2 + $0x190] sm:$0x3] %vm2344, %v2246
      %2394 = vst.msk [vmem:[#allocation2 + $0x198] sm:$0xff] %vm512, %v2263
      %2395 = vst.msk [vmem:[#allocation2 + $0x1a0] sm:$0xff] %vm512, %v2280
      %2396 = vst.msk [vmem:[#allocation2 + $0x1a8] sm:$0x3] %vm2344, %v2287
      %vm2397 = vcmask 24576
      %2398 = vst.msk [vmem:[#allocation2] sm:$0x1] %vm2397, 0.0
      %2399 = vst.msk [vmem:[#allocation2 + $0x18] sm:$0x1] %vm2397, 0.0
      %2400 = vst.msk [vmem:[#allocation2 + $0x30] sm:$0x1] %vm2397, 0.0
      %2401 = vst.msk [vmem:[#allocation2 + $0x48] sm:$0x1] %vm2397, 0.0
      %2402 = vst.msk [vmem:[#allocation2 + $0x60] sm:$0x1] %vm2397, 0.0
      %2403 = vst.msk [vmem:[#allocation2 + $0x78] sm:$0x1] %vm2397, 0.0
      %2404 = vst.msk [vmem:[#allocation2 + $0x90] sm:$0x1] %vm2397, 0.0
      %2405 = vst.msk [vmem:[#allocation2 + $0xa8] sm:$0x1] %vm2397, 0.0
      %2406 = vst.msk [vmem:[#allocation2 + $0xc0] sm:$0x1] %vm2397, 0.0
      %2407 = vst.msk [vmem:[#allocation2 + $0xd8] sm:$0x1] %vm2397, 0.0
      %2408 = vst.msk [vmem:[#allocation2 + $0xf0] sm:$0x1] %vm2397, 0.0
      %2409 = vst.msk [vmem:[#allocation2 + $0x108] sm:$0x1] %vm2397, 0.0
      %2410 = vst.msk [vmem:[#allocation2 + $0x120] sm:$0x1] %vm2397, 0.0
      %2411 = vst.msk [vmem:[#allocation2 + $0x138] sm:$0x1] %vm2397, 0.0
      %2412 = vst.msk [vmem:[#allocation2 + $0x150] sm:$0x1] %vm2397, 0.0
      %2413 = vst.msk [vmem:[#allocation2 + $0x168] sm:$0x1] %vm2397, 0.0
      %2414 = vst.msk [vmem:[#allocation2 + $0x180] sm:$0x1] %vm2397, 0.0
      %2415 = vst.msk [vmem:[#allocation2 + $0x198] sm:$0x1] %vm2397, 0.0
      %2416 = vst.msk [vmem:[#allocation2 + $0x11] sm:$0x1] %vm2397, 0.0
      %2417 = vst.msk [vmem:[#allocation2 + $0x29] sm:$0x1] %vm2397, 0.0
      %2418 = vst.msk [vmem:[#allocation2 + $0x41] sm:$0x1] %vm2397, 0.0
      %2419 = vst.msk [vmem:[#allocation2 + $0x59] sm:$0x1] %vm2397, 0.0
      %2420 = vst.msk [vmem:[#allocation2 + $0x71] sm:$0x1] %vm2397, 0.0
      %2421 = vst.msk [vmem:[#allocation2 + $0x89] sm:$0x1] %vm2397, 0.0
      %2422 = vst.msk [vmem:[#allocation2 + $0xa1] sm:$0x1] %vm2397, 0.0
      %2423 = vst.msk [vmem:[#allocation2 + $0xb9] sm:$0x1] %vm2397, 0.0
      %2424 = vst.msk [vmem:[#allocation2 + $0xd1] sm:$0x1] %vm2397, 0.0
      %2425 = vst.msk [vmem:[#allocation2 + $0xe9] sm:$0x1] %vm2397, 0.0
      %2426 = vst.msk [vmem:[#allocation2 + $0x101] sm:$0x1] %vm2397, 0.0
      %2427 = vst.msk [vmem:[#allocation2 + $0x119] sm:$0x1] %vm2397, 0.0
      %2428 = vst.msk [vmem:[#allocation2 + $0x131] sm:$0x1] %vm2397, 0.0
      %2429 = vst.msk [vmem:[#allocation2 + $0x149] sm:$0x1] %vm2397, 0.0
      %2430 = vst.msk [vmem:[#allocation2 + $0x161] sm:$0x1] %vm2397, 0.0
      %2431 = vst.msk [vmem:[#allocation2 + $0x179] sm:$0x1] %vm2397, 0.0
      %2432 = vst.msk [vmem:[#allocation2 + $0x191] sm:$0x1] %vm2397, 0.0
      %2433 = vst.msk [vmem:[#allocation2 + $0x1a9] sm:$0x1] %vm2397, 0.0
      %p2434 = scmp.eq.s32.totalorder %s350, 0
      // Predicated region
      $region53: #{_lambda_.1} parent=51 // pred_check
        %p2435 = pneg %p2434
      $region54: #{_lambda_.1} parent=51 // pred_check_branch
        %2437 = sbr.rel (%p2435) target = $region56
      $region55: #{_lambda_.1} parent=51 // pred_region
        %2438 = vst.msk [vmem:[#allocation2] sm:$0xff] %vm512, 0.0
        %2439 = vst.msk [vmem:[#allocation2 + $0x8] sm:$0xff] %vm512, 0.0
        %2440 = vst.msk [vmem:[#allocation2 + $0x10] sm:$0x3] %vm2344, 0.0
      $region56: #{_lambda_.1} parent=51 // pred_fallthru
        _
      %s2441 = sadd.s32 %s350, 18
      %p2442 = scmp.eq.s32.totalorder %s2441, 18
      // Predicated region
      $region57: #{_lambda_.1} parent=51 // pred_check
        %p2443 = pneg %p2442
      $region58: #{_lambda_.1} parent=51 // pred_check_branch
        %2445 = sbr.rel (%p2443) target = $region60
      $region59: #{_lambda_.1} parent=51 // pred_region
        %s2446 = scalar_lea.vmem [#allocation2], 408
        %2447 = vst.msk [vmem:[%s2446] sm:$0xff] %vm512, 0.0
        %2448 = vst.msk [vmem:[%s2446 + $0x8] sm:$0xff] %vm512, 0.0
        %2449 = vst.msk [vmem:[%s2446 + $0x10] sm:$0x3] %vm2344, 0.0
      $region60: #{_lambda_.1} parent=51 // pred_fallthru
        _
      %v2450 = vld [vmem:[#allocation2] sm:$0xff]
      %v2451 = vld [vmem:[#allocation2 + $0x8] sm:$0xff]
      %v2452 = vld [vmem:[#allocation2 + $0x18] sm:$0xff]
      %v2453 = vld [vmem:[#allocation2 + $0x20] sm:$0xff]
      %v2454 = vld [vmem:[#allocation2 + $0x30] sm:$0xff]
      %v2455 = vld [vmem:[#allocation2 + $0x38] sm:$0xff]
      %v2456 = vld [vmem:[#allocation2 + $0x48] sm:$0xff]
      %v2457 = vld [vmem:[#allocation2 + $0x50] sm:$0xff]
      %v2458 = vld [vmem:[#allocation2 + $0x60] sm:$0xff]
      %v2459 = vld [vmem:[#allocation2 + $0x68] sm:$0xff]
      %v2460 = vld [vmem:[#allocation2 + $0x78] sm:$0xff]
      %v2461 = vld [vmem:[#allocation2 + $0x80] sm:$0xff]
      %v2462 = vld [vmem:[#allocation2 + $0x90] sm:$0xff]
      %v2463 = vld [vmem:[#allocation2 + $0x98] sm:$0xff]
      %v2464 = vld [vmem:[#allocation2 + $0xa8] sm:$0xff]
      %v2465 = vld [vmem:[#allocation2 + $0xb0] sm:$0xff]
      %v2466 = vld [vmem:[#allocation2 + $0xc0] sm:$0xff]
      %v2467 = vld [vmem:[#allocation2 + $0xc8] sm:$0xff]
      %v2468 = vld [vmem:[#allocation2 + $0xd8] sm:$0xff]
      %v2469 = vld [vmem:[#allocation2 + $0xe0] sm:$0xff]
      %v2470 = vld [vmem:[#allocation2 + $0xf0] sm:$0xff]
      %v2471 = vld [vmem:[#allocation2 + $0xf8] sm:$0xff]
      %v2472 = vld [vmem:[#allocation2 + $0x108] sm:$0xff]
      %v2473 = vld [vmem:[#allocation2 + $0x110] sm:$0xff]
      %v2474 = vld [vmem:[#allocation2 + $0x120] sm:$0xff]
      %v2475 = vld [vmem:[#allocation2 + $0x128] sm:$0xff]
      %v2476 = vld [vmem:[#allocation2 + $0x138] sm:$0xff]
      %v2477 = vld [vmem:[#allocation2 + $0x140] sm:$0xff]
      %v2478 = vld [vmem:[#allocation2 + $0x150] sm:$0xff]
      %v2479 = vld [vmem:[#allocation2 + $0x158] sm:$0xff]
      %v2480 = vld [vmem:[#allocation2 + $0x168] sm:$0xff]
      %v2481 = vld [vmem:[#allocation2 + $0x170] sm:$0xff]
      %v2482 = vlaneseq
      %v2483 = vshrl.u32 %v2482, 7
      %v2484 = vsub.s32 0, %v2483
      %v2485 = vrot.slane %v399, %v2484
      %v2486 = vmul.f32 %v2450, %v2485
      %v2487 = vmul.f32 %v2451, %v2485
      %v2488 = vmul.f32 %v2452, %v2485
      %v2489 = vmul.f32 %v2453, %v2485
      %v2490 = vmul.f32 %v2454, %v2485
      %v2491 = vmul.f32 %v2455, %v2485
      %v2492 = vmul.f32 %v2456, %v2485
      %v2493 = vmul.f32 %v2457, %v2485
      %v2494 = vmul.f32 %v2458, %v2485
      %v2495 = vmul.f32 %v2459, %v2485
      %v2496 = vmul.f32 %v2460, %v2485
      %v2497 = vmul.f32 %v2461, %v2485
      %v2498 = vmul.f32 %v2462, %v2485
      %v2499 = vmul.f32 %v2463, %v2485
      %v2500 = vmul.f32 %v2464, %v2485
      %v2501 = vmul.f32 %v2465, %v2485
      %v2502 = vmul.f32 %v2466, %v2485
      %v2503 = vmul.f32 %v2467, %v2485
      %v2504 = vmul.f32 %v2468, %v2485
      %v2505 = vmul.f32 %v2469, %v2485
      %v2506 = vmul.f32 %v2470, %v2485
      %v2507 = vmul.f32 %v2471, %v2485
      %v2508 = vmul.f32 %v2472, %v2485
      %v2509 = vmul.f32 %v2473, %v2485
      %v2510 = vmul.f32 %v2474, %v2485
      %v2511 = vmul.f32 %v2475, %v2485
      %v2512 = vmul.f32 %v2476, %v2485
      %v2513 = vmul.f32 %v2477, %v2485
      %v2514 = vmul.f32 %v2478, %v2485
      %v2515 = vmul.f32 %v2479, %v2485
      %v2516 = vmul.f32 %v2480, %v2485
      %v2517 = vmul.f32 %v2481, %v2485
      %v2518 = vadd.f32 %v2486, 0.0
      %v2519 = vadd.f32 %v2487, 0.0
      %v2520 = vadd.f32 %v2488, 0.0
      %v2521 = vadd.f32 %v2489, 0.0
      %v2522 = vadd.f32 %v2490, 0.0
      %v2523 = vadd.f32 %v2491, 0.0
      %v2524 = vadd.f32 %v2492, 0.0
      %v2525 = vadd.f32 %v2493, 0.0
      %v2526 = vadd.f32 %v2494, 0.0
      %v2527 = vadd.f32 %v2495, 0.0
      %v2528 = vadd.f32 %v2496, 0.0
      %v2529 = vadd.f32 %v2497, 0.0
      %v2530 = vadd.f32 %v2498, 0.0
      %v2531 = vadd.f32 %v2499, 0.0
      %v2532 = vadd.f32 %v2500, 0.0
      %v2533 = vadd.f32 %v2501, 0.0
      %v2534 = vadd.f32 %v2502, 0.0
      %v2535 = vadd.f32 %v2503, 0.0
      %v2536 = vadd.f32 %v2504, 0.0
      %v2537 = vadd.f32 %v2505, 0.0
      %v2538 = vadd.f32 %v2506, 0.0
      %v2539 = vadd.f32 %v2507, 0.0
      %v2540 = vadd.f32 %v2508, 0.0
      %v2541 = vadd.f32 %v2509, 0.0
      %v2542 = vadd.f32 %v2510, 0.0
      %v2543 = vadd.f32 %v2511, 0.0
      %v2544 = vadd.f32 %v2512, 0.0
      %v2545 = vadd.f32 %v2513, 0.0
      %v2546 = vadd.f32 %v2514, 0.0
      %v2547 = vadd.f32 %v2515, 0.0
      %v2548 = vadd.f32 %v2516, 0.0
      %v2549 = vadd.f32 %v2517, 0.0
      %v2550 = vld [vmem:[#allocation2 + $0x1] sm:$0xff]
      %v2551 = vld [vmem:[#allocation2 + $0x9] sm:$0xff]
      %v2552 = vld [vmem:[#allocation2 + $0x19] sm:$0xff]
      %v2553 = vld [vmem:[#allocation2 + $0x21] sm:$0xff]
      %v2554 = vld [vmem:[#allocation2 + $0x31] sm:$0xff]
      %v2555 = vld [vmem:[#allocation2 + $0x39] sm:$0xff]
      %v2556 = vld [vmem:[#allocation2 + $0x49] sm:$0xff]
      %v2557 = vld [vmem:[#allocation2 + $0x51] sm:$0xff]
      %v2558 = vld [vmem:[#allocation2 + $0x61] sm:$0xff]
      %v2559 = vld [vmem:[#allocation2 + $0x69] sm:$0xff]
      %v2560 = vld [vmem:[#allocation2 + $0x79] sm:$0xff]
      %v2561 = vld [vmem:[#allocation2 + $0x81] sm:$0xff]
      %v2562 = vld [vmem:[#allocation2 + $0x91] sm:$0xff]
      %v2563 = vld [vmem:[#allocation2 + $0x99] sm:$0xff]
      %v2564 = vld [vmem:[#allocation2 + $0xa9] sm:$0xff]
      %v2565 = vld [vmem:[#allocation2 + $0xb1] sm:$0xff]
      %v2566 = vld [vmem:[#allocation2 + $0xc1] sm:$0xff]
      %v2567 = vld [vmem:[#allocation2 + $0xc9] sm:$0xff]
      %v2568 = vld [vmem:[#allocation2 + $0xd9] sm:$0xff]
      %v2569 = vld [vmem:[#allocation2 + $0xe1] sm:$0xff]
      %v2570 = vld [vmem:[#allocation2 + $0xf1] sm:$0xff]
      %v2571 = vld [vmem:[#allocation2 + $0xf9] sm:$0xff]
      %v2572 = vld [vmem:[#allocation2 + $0x109] sm:$0xff]
      %v2573 = vld [vmem:[#allocation2 + $0x111] sm:$0xff]
      %v2574 = vld [vmem:[#allocation2 + $0x121] sm:$0xff]
      %v2575 = vld [vmem:[#allocation2 + $0x129] sm:$0xff]
      %v2576 = vld [vmem:[#allocation2 + $0x139] sm:$0xff]
      %v2577 = vld [vmem:[#allocation2 + $0x141] sm:$0xff]
      %v2578 = vld [vmem:[#allocation2 + $0x151] sm:$0xff]
      %v2579 = vld [vmem:[#allocation2 + $0x159] sm:$0xff]
      %v2580 = vld [vmem:[#allocation2 + $0x169] sm:$0xff]
      %v2581 = vld [vmem:[#allocation2 + $0x171] sm:$0xff]
      %v2582 = vlaneseq
      %v2583 = vshrl.u32 %v2582, 7
      %v2584 = vsub.s32 1, %v2583
      %v2585 = vrot.slane %v399, %v2584
      %v2586 = vmul.f32 %v2550, %v2585
      %v2587 = vmul.f32 %v2551, %v2585
      %v2588 = vmul.f32 %v2552, %v2585
      %v2589 = vmul.f32 %v2553, %v2585
      %v2590 = vmul.f32 %v2554, %v2585
      %v2591 = vmul.f32 %v2555, %v2585
      %v2592 = vmul.f32 %v2556, %v2585
      %v2593 = vmul.f32 %v2557, %v2585
      %v2594 = vmul.f32 %v2558, %v2585
      %v2595 = vmul.f32 %v2559, %v2585
      %v2596 = vmul.f32 %v2560, %v2585
      %v2597 = vmul.f32 %v2561, %v2585
      %v2598 = vmul.f32 %v2562, %v2585
      %v2599 = vmul.f32 %v2563, %v2585
      %v2600 = vmul.f32 %v2564, %v2585
      %v2601 = vmul.f32 %v2565, %v2585
      %v2602 = vmul.f32 %v2566, %v2585
      %v2603 = vmul.f32 %v2567, %v2585
      %v2604 = vmul.f32 %v2568, %v2585
      %v2605 = vmul.f32 %v2569, %v2585
      %v2606 = vmul.f32 %v2570, %v2585
      %v2607 = vmul.f32 %v2571, %v2585
      %v2608 = vmul.f32 %v2572, %v2585
      %v2609 = vmul.f32 %v2573, %v2585
      %v2610 = vmul.f32 %v2574, %v2585
      %v2611 = vmul.f32 %v2575, %v2585
      %v2612 = vmul.f32 %v2576, %v2585
      %v2613 = vmul.f32 %v2577, %v2585
      %v2614 = vmul.f32 %v2578, %v2585
      %v2615 = vmul.f32 %v2579, %v2585
      %v2616 = vmul.f32 %v2580, %v2585
      %v2617 = vmul.f32 %v2581, %v2585
      %v2618 = vadd.f32 %v2518, %v2586
      %v2619 = vadd.f32 %v2519, %v2587
      %v2620 = vadd.f32 %v2520, %v2588
      %v2621 = vadd.f32 %v2521, %v2589
      %v2622 = vadd.f32 %v2522, %v2590
      %v2623 = vadd.f32 %v2523, %v2591
      %v2624 = vadd.f32 %v2524, %v2592
      %v2625 = vadd.f32 %v2525, %v2593
      %v2626 = vadd.f32 %v2526, %v2594
      %v2627 = vadd.f32 %v2527, %v2595
      %v2628 = vadd.f32 %v2528, %v2596
      %v2629 = vadd.f32 %v2529, %v2597
      %v2630 = vadd.f32 %v2530, %v2598
      %v2631 = vadd.f32 %v2531, %v2599
      %v2632 = vadd.f32 %v2532, %v2600
      %v2633 = vadd.f32 %v2533, %v2601
      %v2634 = vadd.f32 %v2534, %v2602
      %v2635 = vadd.f32 %v2535, %v2603
      %v2636 = vadd.f32 %v2536, %v2604
      %v2637 = vadd.f32 %v2537, %v2605
      %v2638 = vadd.f32 %v2538, %v2606
      %v2639 = vadd.f32 %v2539, %v2607
      %v2640 = vadd.f32 %v2540, %v2608
      %v2641 = vadd.f32 %v2541, %v2609
      %v2642 = vadd.f32 %v2542, %v2610
      %v2643 = vadd.f32 %v2543, %v2611
      %v2644 = vadd.f32 %v2544, %v2612
      %v2645 = vadd.f32 %v2545, %v2613
      %v2646 = vadd.f32 %v2546, %v2614
      %v2647 = vadd.f32 %v2547, %v2615
      %v2648 = vadd.f32 %v2548, %v2616
      %v2649 = vadd.f32 %v2549, %v2617
      %v2650 = vld [vmem:[#allocation2 + $0x2] sm:$0xff]
      %v2651 = vld [vmem:[#allocation2 + $0xa] sm:$0xff]
      %v2652 = vld [vmem:[#allocation2 + $0x1a] sm:$0xff]
      %v2653 = vld [vmem:[#allocation2 + $0x22] sm:$0xff]
      %v2654 = vld [vmem:[#allocation2 + $0x32] sm:$0xff]
      %v2655 = vld [vmem:[#allocation2 + $0x3a] sm:$0xff]
      %v2656 = vld [vmem:[#allocation2 + $0x4a] sm:$0xff]
      %v2657 = vld [vmem:[#allocation2 + $0x52] sm:$0xff]
      %v2658 = vld [vmem:[#allocation2 + $0x62] sm:$0xff]
      %v2659 = vld [vmem:[#allocation2 + $0x6a] sm:$0xff]
      %v2660 = vld [vmem:[#allocation2 + $0x7a] sm:$0xff]
      %v2661 = vld [vmem:[#allocation2 + $0x82] sm:$0xff]
      %v2662 = vld [vmem:[#allocation2 + $0x92] sm:$0xff]
      %v2663 = vld [vmem:[#allocation2 + $0x9a] sm:$0xff]
      %v2664 = vld [vmem:[#allocation2 + $0xaa] sm:$0xff]
      %v2665 = vld [vmem:[#allocation2 + $0xb2] sm:$0xff]
      %v2666 = vld [vmem:[#allocation2 + $0xc2] sm:$0xff]
      %v2667 = vld [vmem:[#allocation2 + $0xca] sm:$0xff]
      %v2668 = vld [vmem:[#allocation2 + $0xda] sm:$0xff]
      %v2669 = vld [vmem:[#allocation2 + $0xe2] sm:$0xff]
      %v2670 = vld [vmem:[#allocation2 + $0xf2] sm:$0xff]
      %v2671 = vld [vmem:[#allocation2 + $0xfa] sm:$0xff]
      %v2672 = vld [vmem:[#allocation2 + $0x10a] sm:$0xff]
      %v2673 = vld [vmem:[#allocation2 + $0x112] sm:$0xff]
      %v2674 = vld [vmem:[#allocation2 + $0x122] sm:$0xff]
      %v2675 = vld [vmem:[#allocation2 + $0x12a] sm:$0xff]
      %v2676 = vld [vmem:[#allocation2 + $0x13a] sm:$0xff]
      %v2677 = vld [vmem:[#allocation2 + $0x142] sm:$0xff]
      %v2678 = vld [vmem:[#allocation2 + $0x152] sm:$0xff]
      %v2679 = vld [vmem:[#allocation2 + $0x15a] sm:$0xff]
      %v2680 = vld [vmem:[#allocation2 + $0x16a] sm:$0xff]
      %v2681 = vld [vmem:[#allocation2 + $0x172] sm:$0xff]
      %v2682 = vlaneseq
      %v2683 = vshrl.u32 %v2682, 7
      %v2684 = vsub.s32 2, %v2683
      %v2685 = vrot.slane %v399, %v2684
      %v2686 = vmul.f32 %v2650, %v2685
      %v2687 = vmul.f32 %v2651, %v2685
      %v2688 = vmul.f32 %v2652, %v2685
      %v2689 = vmul.f32 %v2653, %v2685
      %v2690 = vmul.f32 %v2654, %v2685
      %v2691 = vmul.f32 %v2655, %v2685
      %v2692 = vmul.f32 %v2656, %v2685
      %v2693 = vmul.f32 %v2657, %v2685
      %v2694 = vmul.f32 %v2658, %v2685
      %v2695 = vmul.f32 %v2659, %v2685
      %v2696 = vmul.f32 %v2660, %v2685
      %v2697 = vmul.f32 %v2661, %v2685
      %v2698 = vmul.f32 %v2662, %v2685
      %v2699 = vmul.f32 %v2663, %v2685
      %v2700 = vmul.f32 %v2664, %v2685
      %v2701 = vmul.f32 %v2665, %v2685
      %v2702 = vmul.f32 %v2666, %v2685
      %v2703 = vmul.f32 %v2667, %v2685
      %v2704 = vmul.f32 %v2668, %v2685
      %v2705 = vmul.f32 %v2669, %v2685
      %v2706 = vmul.f32 %v2670, %v2685
      %v2707 = vmul.f32 %v2671, %v2685
      %v2708 = vmul.f32 %v2672, %v2685
      %v2709 = vmul.f32 %v2673, %v2685
      %v2710 = vmul.f32 %v2674, %v2685
      %v2711 = vmul.f32 %v2675, %v2685
      %v2712 = vmul.f32 %v2676, %v2685
      %v2713 = vmul.f32 %v2677, %v2685
      %v2714 = vmul.f32 %v2678, %v2685
      %v2715 = vmul.f32 %v2679, %v2685
      %v2716 = vmul.f32 %v2680, %v2685
      %v2717 = vmul.f32 %v2681, %v2685
      %v2718 = vadd.f32 %v2618, %v2686
      %v2719 = vadd.f32 %v2619, %v2687
      %v2720 = vadd.f32 %v2620, %v2688
      %v2721 = vadd.f32 %v2621, %v2689
      %v2722 = vadd.f32 %v2622, %v2690
      %v2723 = vadd.f32 %v2623, %v2691
      %v2724 = vadd.f32 %v2624, %v2692
      %v2725 = vadd.f32 %v2625, %v2693
      %v2726 = vadd.f32 %v2626, %v2694
      %v2727 = vadd.f32 %v2627, %v2695
      %v2728 = vadd.f32 %v2628, %v2696
      %v2729 = vadd.f32 %v2629, %v2697
      %v2730 = vadd.f32 %v2630, %v2698
      %v2731 = vadd.f32 %v2631, %v2699
      %v2732 = vadd.f32 %v2632, %v2700
      %v2733 = vadd.f32 %v2633, %v2701
      %v2734 = vadd.f32 %v2634, %v2702
      %v2735 = vadd.f32 %v2635, %v2703
      %v2736 = vadd.f32 %v2636, %v2704
      %v2737 = vadd.f32 %v2637, %v2705
      %v2738 = vadd.f32 %v2638, %v2706
      %v2739 = vadd.f32 %v2639, %v2707
      %v2740 = vadd.f32 %v2640, %v2708
      %v2741 = vadd.f32 %v2641, %v2709
      %v2742 = vadd.f32 %v2642, %v2710
      %v2743 = vadd.f32 %v2643, %v2711
      %v2744 = vadd.f32 %v2644, %v2712
      %v2745 = vadd.f32 %v2645, %v2713
      %v2746 = vadd.f32 %v2646, %v2714
      %v2747 = vadd.f32 %v2647, %v2715
      %v2748 = vadd.f32 %v2648, %v2716
      %v2749 = vadd.f32 %v2649, %v2717
      %s2750 = scalar_lea.vmem [#allocation2], 24
      %v2751 = vld [vmem:[%s2750] sm:$0xff]
      %v2752 = vld [vmem:[%s2750 + $0x8] sm:$0xff]
      %v2753 = vld [vmem:[%s2750 + $0x18] sm:$0xff]
      %v2754 = vld [vmem:[%s2750 + $0x20] sm:$0xff]
      %v2755 = vld [vmem:[%s2750 + $0x30] sm:$0xff]
      %v2756 = vld [vmem:[%s2750 + $0x38] sm:$0xff]
      %v2757 = vld [vmem:[%s2750 + $0x48] sm:$0xff]
      %v2758 = vld [vmem:[%s2750 + $0x50] sm:$0xff]
      %v2759 = vld [vmem:[%s2750 + $0x60] sm:$0xff]
      %v2760 = vld [vmem:[%s2750 + $0x68] sm:$0xff]
      %v2761 = vld [vmem:[%s2750 + $0x78] sm:$0xff]
      %v2762 = vld [vmem:[%s2750 + $0x80] sm:$0xff]
      %v2763 = vld [vmem:[%s2750 + $0x90] sm:$0xff]
      %v2764 = vld [vmem:[%s2750 + $0x98] sm:$0xff]
      %v2765 = vld [vmem:[%s2750 + $0xa8] sm:$0xff]
      %v2766 = vld [vmem:[%s2750 + $0xb0] sm:$0xff]
      %v2767 = vld [vmem:[%s2750 + $0xc0] sm:$0xff]
      %v2768 = vld [vmem:[%s2750 + $0xc8] sm:$0xff]
      %v2769 = vld [vmem:[%s2750 + $0xd8] sm:$0xff]
      %v2770 = vld [vmem:[%s2750 + $0xe0] sm:$0xff]
      %v2771 = vld [vmem:[%s2750 + $0xf0] sm:$0xff]
      %v2772 = vld [vmem:[%s2750 + $0xf8] sm:$0xff]
      %v2773 = vld [vmem:[%s2750 + $0x108] sm:$0xff]
      %v2774 = vld [vmem:[%s2750 + $0x110] sm:$0xff]
      %v2775 = vld [vmem:[%s2750 + $0x120] sm:$0xff]
      %v2776 = vld [vmem:[%s2750 + $0x128] sm:$0xff]
      %v2777 = vld [vmem:[%s2750 + $0x138] sm:$0xff]
      %v2778 = vld [vmem:[%s2750 + $0x140] sm:$0xff]
      %v2779 = vld [vmem:[%s2750 + $0x150] sm:$0xff]
      %v2780 = vld [vmem:[%s2750 + $0x158] sm:$0xff]
      %v2781 = vld [vmem:[%s2750 + $0x168] sm:$0xff]
      %v2782 = vld [vmem:[%s2750 + $0x170] sm:$0xff]
      %v2783 = vlaneseq
      %v2784 = vshrl.u32 %v2783, 7
      %v2785 = vsub.s32 3, %v2784
      %v2786 = vrot.slane %v399, %v2785
      %v2787 = vmul.f32 %v2751, %v2786
      %v2788 = vmul.f32 %v2752, %v2786
      %v2789 = vmul.f32 %v2753, %v2786
      %v2790 = vmul.f32 %v2754, %v2786
      %v2791 = vmul.f32 %v2755, %v2786
      %v2792 = vmul.f32 %v2756, %v2786
      %v2793 = vmul.f32 %v2757, %v2786
      %v2794 = vmul.f32 %v2758, %v2786
      %v2795 = vmul.f32 %v2759, %v2786
      %v2796 = vmul.f32 %v2760, %v2786
      %v2797 = vmul.f32 %v2761, %v2786
      %v2798 = vmul.f32 %v2762, %v2786
      %v2799 = vmul.f32 %v2763, %v2786
      %v2800 = vmul.f32 %v2764, %v2786
      %v2801 = vmul.f32 %v2765, %v2786
      %v2802 = vmul.f32 %v2766, %v2786
      %v2803 = vmul.f32 %v2767, %v2786
      %v2804 = vmul.f32 %v2768, %v2786
      %v2805 = vmul.f32 %v2769, %v2786
      %v2806 = vmul.f32 %v2770, %v2786
      %v2807 = vmul.f32 %v2771, %v2786
      %v2808 = vmul.f32 %v2772, %v2786
      %v2809 = vmul.f32 %v2773, %v2786
      %v2810 = vmul.f32 %v2774, %v2786
      %v2811 = vmul.f32 %v2775, %v2786
      %v2812 = vmul.f32 %v2776, %v2786
      %v2813 = vmul.f32 %v2777, %v2786
      %v2814 = vmul.f32 %v2778, %v2786
      %v2815 = vmul.f32 %v2779, %v2786
      %v2816 = vmul.f32 %v2780, %v2786
      %v2817 = vmul.f32 %v2781, %v2786
      %v2818 = vmul.f32 %v2782, %v2786
      %v2819 = vadd.f32 %v2718, %v2787
      %v2820 = vadd.f32 %v2719, %v2788
      %v2821 = vadd.f32 %v2720, %v2789
      %v2822 = vadd.f32 %v2721, %v2790
      %v2823 = vadd.f32 %v2722, %v2791
      %v2824 = vadd.f32 %v2723, %v2792
      %v2825 = vadd.f32 %v2724, %v2793
      %v2826 = vadd.f32 %v2725, %v2794
      %v2827 = vadd.f32 %v2726, %v2795
      %v2828 = vadd.f32 %v2727, %v2796
      %v2829 = vadd.f32 %v2728, %v2797
      %v2830 = vadd.f32 %v2729, %v2798
      %v2831 = vadd.f32 %v2730, %v2799
      %v2832 = vadd.f32 %v2731, %v2800
      %v2833 = vadd.f32 %v2732, %v2801
      %v2834 = vadd.f32 %v2733, %v2802
      %v2835 = vadd.f32 %v2734, %v2803
      %v2836 = vadd.f32 %v2735, %v2804
      %v2837 = vadd.f32 %v2736, %v2805
      %v2838 = vadd.f32 %v2737, %v2806
      %v2839 = vadd.f32 %v2738, %v2807
      %v2840 = vadd.f32 %v2739, %v2808
      %v2841 = vadd.f32 %v2740, %v2809
      %v2842 = vadd.f32 %v2741, %v2810
      %v2843 = vadd.f32 %v2742, %v2811
      %v2844 = vadd.f32 %v2743, %v2812
      %v2845 = vadd.f32 %v2744, %v2813
      %v2846 = vadd.f32 %v2745, %v2814
      %v2847 = vadd.f32 %v2746, %v2815
      %v2848 = vadd.f32 %v2747, %v2816
      %v2849 = vadd.f32 %v2748, %v2817
      %v2850 = vadd.f32 %v2749, %v2818
      %v2851 = vld [vmem:[%s2750 + $0x1] sm:$0xff]
      %v2852 = vld [vmem:[%s2750 + $0x9] sm:$0xff]
      %v2853 = vld [vmem:[%s2750 + $0x19] sm:$0xff]
      %v2854 = vld [vmem:[%s2750 + $0x21] sm:$0xff]
      %v2855 = vld [vmem:[%s2750 + $0x31] sm:$0xff]
      %v2856 = vld [vmem:[%s2750 + $0x39] sm:$0xff]
      %v2857 = vld [vmem:[%s2750 + $0x49] sm:$0xff]
      %v2858 = vld [vmem:[%s2750 + $0x51] sm:$0xff]
      %v2859 = vld [vmem:[%s2750 + $0x61] sm:$0xff]
      %v2860 = vld [vmem:[%s2750 + $0x69] sm:$0xff]
      %v2861 = vld [vmem:[%s2750 + $0x79] sm:$0xff]
      %v2862 = vld [vmem:[%s2750 + $0x81] sm:$0xff]
      %v2863 = vld [vmem:[%s2750 + $0x91] sm:$0xff]
      %v2864 = vld [vmem:[%s2750 + $0x99] sm:$0xff]
      %v2865 = vld [vmem:[%s2750 + $0xa9] sm:$0xff]
      %v2866 = vld [vmem:[%s2750 + $0xb1] sm:$0xff]
      %v2867 = vld [vmem:[%s2750 + $0xc1] sm:$0xff]
      %v2868 = vld [vmem:[%s2750 + $0xc9] sm:$0xff]
      %v2869 = vld [vmem:[%s2750 + $0xd9] sm:$0xff]
      %v2870 = vld [vmem:[%s2750 + $0xe1] sm:$0xff]
      %v2871 = vld [vmem:[%s2750 + $0xf1] sm:$0xff]
      %v2872 = vld [vmem:[%s2750 + $0xf9] sm:$0xff]
      %v2873 = vld [vmem:[%s2750 + $0x109] sm:$0xff]
      %v2874 = vld [vmem:[%s2750 + $0x111] sm:$0xff]
      %v2875 = vld [vmem:[%s2750 + $0x121] sm:$0xff]
      %v2876 = vld [vmem:[%s2750 + $0x129] sm:$0xff]
      %v2877 = vld [vmem:[%s2750 + $0x139] sm:$0xff]
      %v2878 = vld [vmem:[%s2750 + $0x141] sm:$0xff]
      %v2879 = vld [vmem:[%s2750 + $0x151] sm:$0xff]
      %v2880 = vld [vmem:[%s2750 + $0x159] sm:$0xff]
      %v2881 = vld [vmem:[%s2750 + $0x169] sm:$0xff]
      %v2882 = vld [vmem:[%s2750 + $0x171] sm:$0xff]
      %v2883 = vlaneseq
      %v2884 = vshrl.u32 %v2883, 7
      %v2885 = vsub.s32 4, %v2884
      %v2886 = vrot.slane %v399, %v2885
      %v2887 = vmul.f32 %v2851, %v2886
      %v2888 = vmul.f32 %v2852, %v2886
      %v2889 = vmul.f32 %v2853, %v2886
      %v2890 = vmul.f32 %v2854, %v2886
      %v2891 = vmul.f32 %v2855, %v2886
      %v2892 = vmul.f32 %v2856, %v2886
      %v2893 = vmul.f32 %v2857, %v2886
      %v2894 = vmul.f32 %v2858, %v2886
      %v2895 = vmul.f32 %v2859, %v2886
      %v2896 = vmul.f32 %v2860, %v2886
      %v2897 = vmul.f32 %v2861, %v2886
      %v2898 = vmul.f32 %v2862, %v2886
      %v2899 = vmul.f32 %v2863, %v2886
      %v2900 = vmul.f32 %v2864, %v2886
      %v2901 = vmul.f32 %v2865, %v2886
      %v2902 = vmul.f32 %v2866, %v2886
      %v2903 = vmul.f32 %v2867, %v2886
      %v2904 = vmul.f32 %v2868, %v2886
      %v2905 = vmul.f32 %v2869, %v2886
      %v2906 = vmul.f32 %v2870, %v2886
      %v2907 = vmul.f32 %v2871, %v2886
      %v2908 = vmul.f32 %v2872, %v2886
      %v2909 = vmul.f32 %v2873, %v2886
      %v2910 = vmul.f32 %v2874, %v2886
      %v2911 = vmul.f32 %v2875, %v2886
      %v2912 = vmul.f32 %v2876, %v2886
      %v2913 = vmul.f32 %v2877, %v2886
      %v2914 = vmul.f32 %v2878, %v2886
      %v2915 = vmul.f32 %v2879, %v2886
      %v2916 = vmul.f32 %v2880, %v2886
      %v2917 = vmul.f32 %v2881, %v2886
      %v2918 = vmul.f32 %v2882, %v2886
      %v2919 = vadd.f32 %v2819, %v2887
      %v2920 = vadd.f32 %v2820, %v2888
      %v2921 = vadd.f32 %v2821, %v2889
      %v2922 = vadd.f32 %v2822, %v2890
      %v2923 = vadd.f32 %v2823, %v2891
      %v2924 = vadd.f32 %v2824, %v2892
      %v2925 = vadd.f32 %v2825, %v2893
      %v2926 = vadd.f32 %v2826, %v2894
      %v2927 = vadd.f32 %v2827, %v2895
      %v2928 = vadd.f32 %v2828, %v2896
      %v2929 = vadd.f32 %v2829, %v2897
      %v2930 = vadd.f32 %v2830, %v2898
      %v2931 = vadd.f32 %v2831, %v2899
      %v2932 = vadd.f32 %v2832, %v2900
      %v2933 = vadd.f32 %v2833, %v2901
      %v2934 = vadd.f32 %v2834, %v2902
      %v2935 = vadd.f32 %v2835, %v2903
      %v2936 = vadd.f32 %v2836, %v2904
      %v2937 = vadd.f32 %v2837, %v2905
      %v2938 = vadd.f32 %v2838, %v2906
      %v2939 = vadd.f32 %v2839, %v2907
      %v2940 = vadd.f32 %v2840, %v2908
      %v2941 = vadd.f32 %v2841, %v2909
      %v2942 = vadd.f32 %v2842, %v2910
      %v2943 = vadd.f32 %v2843, %v2911
      %v2944 = vadd.f32 %v2844, %v2912
      %v2945 = vadd.f32 %v2845, %v2913
      %v2946 = vadd.f32 %v2846, %v2914
      %v2947 = vadd.f32 %v2847, %v2915
      %v2948 = vadd.f32 %v2848, %v2916
      %v2949 = vadd.f32 %v2849, %v2917
      %v2950 = vadd.f32 %v2850, %v2918
      %v2951 = vld [vmem:[%s2750 + $0x2] sm:$0xff]
      %v2952 = vld [vmem:[%s2750 + $0xa] sm:$0xff]
      %v2953 = vld [vmem:[%s2750 + $0x1a] sm:$0xff]
      %v2954 = vld [vmem:[%s2750 + $0x22] sm:$0xff]
      %v2955 = vld [vmem:[%s2750 + $0x32] sm:$0xff]
      %v2956 = vld [vmem:[%s2750 + $0x3a] sm:$0xff]
      %v2957 = vld [vmem:[%s2750 + $0x4a] sm:$0xff]
      %v2958 = vld [vmem:[%s2750 + $0x52] sm:$0xff]
      %v2959 = vld [vmem:[%s2750 + $0x62] sm:$0xff]
      %v2960 = vld [vmem:[%s2750 + $0x6a] sm:$0xff]
      %v2961 = vld [vmem:[%s2750 + $0x7a] sm:$0xff]
      %v2962 = vld [vmem:[%s2750 + $0x82] sm:$0xff]
      %v2963 = vld [vmem:[%s2750 + $0x92] sm:$0xff]
      %v2964 = vld [vmem:[%s2750 + $0x9a] sm:$0xff]
      %v2965 = vld [vmem:[%s2750 + $0xaa] sm:$0xff]
      %v2966 = vld [vmem:[%s2750 + $0xb2] sm:$0xff]
      %v2967 = vld [vmem:[%s2750 + $0xc2] sm:$0xff]
      %v2968 = vld [vmem:[%s2750 + $0xca] sm:$0xff]
      %v2969 = vld [vmem:[%s2750 + $0xda] sm:$0xff]
      %v2970 = vld [vmem:[%s2750 + $0xe2] sm:$0xff]
      %v2971 = vld [vmem:[%s2750 + $0xf2] sm:$0xff]
      %v2972 = vld [vmem:[%s2750 + $0xfa] sm:$0xff]
      %v2973 = vld [vmem:[%s2750 + $0x10a] sm:$0xff]
      %v2974 = vld [vmem:[%s2750 + $0x112] sm:$0xff]
      %v2975 = vld [vmem:[%s2750 + $0x122] sm:$0xff]
      %v2976 = vld [vmem:[%s2750 + $0x12a] sm:$0xff]
      %v2977 = vld [vmem:[%s2750 + $0x13a] sm:$0xff]
      %v2978 = vld [vmem:[%s2750 + $0x142] sm:$0xff]
      %v2979 = vld [vmem:[%s2750 + $0x152] sm:$0xff]
      %v2980 = vld [vmem:[%s2750 + $0x15a] sm:$0xff]
      %v2981 = vld [vmem:[%s2750 + $0x16a] sm:$0xff]
      %v2982 = vld [vmem:[%s2750 + $0x172] sm:$0xff]
      %v2983 = vlaneseq
      %v2984 = vshrl.u32 %v2983, 7
      %v2985 = vsub.s32 5, %v2984
      %v2986 = vrot.slane %v399, %v2985
      %v2987 = vmul.f32 %v2951, %v2986
      %v2988 = vmul.f32 %v2952, %v2986
      %v2989 = vmul.f32 %v2953, %v2986
      %v2990 = vmul.f32 %v2954, %v2986
      %v2991 = vmul.f32 %v2955, %v2986
      %v2992 = vmul.f32 %v2956, %v2986
      %v2993 = vmul.f32 %v2957, %v2986
      %v2994 = vmul.f32 %v2958, %v2986
      %v2995 = vmul.f32 %v2959, %v2986
      %v2996 = vmul.f32 %v2960, %v2986
      %v2997 = vmul.f32 %v2961, %v2986
      %v2998 = vmul.f32 %v2962, %v2986
      %v2999 = vmul.f32 %v2963, %v2986
      %v3000 = vmul.f32 %v2964, %v2986
      %v3001 = vmul.f32 %v2965, %v2986
      %v3002 = vmul.f32 %v2966, %v2986
      %v3003 = vmul.f32 %v2967, %v2986
      %v3004 = vmul.f32 %v2968, %v2986
      %v3005 = vmul.f32 %v2969, %v2986
      %v3006 = vmul.f32 %v2970, %v2986
      %v3007 = vmul.f32 %v2971, %v2986
      %v3008 = vmul.f32 %v2972, %v2986
      %v3009 = vmul.f32 %v2973, %v2986
      %v3010 = vmul.f32 %v2974, %v2986
      %v3011 = vmul.f32 %v2975, %v2986
      %v3012 = vmul.f32 %v2976, %v2986
      %v3013 = vmul.f32 %v2977, %v2986
      %v3014 = vmul.f32 %v2978, %v2986
      %v3015 = vmul.f32 %v2979, %v2986
      %v3016 = vmul.f32 %v2980, %v2986
      %v3017 = vmul.f32 %v2981, %v2986
      %v3018 = vmul.f32 %v2982, %v2986
      %v3019 = vadd.f32 %v2919, %v2987
      %v3020 = vadd.f32 %v2920, %v2988
      %v3021 = vadd.f32 %v2921, %v2989
      %v3022 = vadd.f32 %v2922, %v2990
      %v3023 = vadd.f32 %v2923, %v2991
      %v3024 = vadd.f32 %v2924, %v2992
      %v3025 = vadd.f32 %v2925, %v2993
      %v3026 = vadd.f32 %v2926, %v2994
      %v3027 = vadd.f32 %v2927, %v2995
      %v3028 = vadd.f32 %v2928, %v2996
      %v3029 = vadd.f32 %v2929, %v2997
      %v3030 = vadd.f32 %v2930, %v2998
      %v3031 = vadd.f32 %v2931, %v2999
      %v3032 = vadd.f32 %v2932, %v3000
      %v3033 = vadd.f32 %v2933, %v3001
      %v3034 = vadd.f32 %v2934, %v3002
      %v3035 = vadd.f32 %v2935, %v3003
      %v3036 = vadd.f32 %v2936, %v3004
      %v3037 = vadd.f32 %v2937, %v3005
      %v3038 = vadd.f32 %v2938, %v3006
      %v3039 = vadd.f32 %v2939, %v3007
      %v3040 = vadd.f32 %v2940, %v3008
      %v3041 = vadd.f32 %v2941, %v3009
      %v3042 = vadd.f32 %v2942, %v3010
      %v3043 = vadd.f32 %v2943, %v3011
      %v3044 = vadd.f32 %v2944, %v3012
      %v3045 = vadd.f32 %v2945, %v3013
      %v3046 = vadd.f32 %v2946, %v3014
      %v3047 = vadd.f32 %v2947, %v3015
      %v3048 = vadd.f32 %v2948, %v3016
      %v3049 = vadd.f32 %v2949, %v3017
      %v3050 = vadd.f32 %v2950, %v3018
      %s3051 = scalar_lea.vmem [#allocation2], 48
      %v3052 = vld [vmem:[%s3051] sm:$0xff]
      %v3053 = vld [vmem:[%s3051 + $0x8] sm:$0xff]
      %v3054 = vld [vmem:[%s3051 + $0x18] sm:$0xff]
      %v3055 = vld [vmem:[%s3051 + $0x20] sm:$0xff]
      %v3056 = vld [vmem:[%s3051 + $0x30] sm:$0xff]
      %v3057 = vld [vmem:[%s3051 + $0x38] sm:$0xff]
      %v3058 = vld [vmem:[%s3051 + $0x48] sm:$0xff]
      %v3059 = vld [vmem:[%s3051 + $0x50] sm:$0xff]
      %v3060 = vld [vmem:[%s3051 + $0x60] sm:$0xff]
      %v3061 = vld [vmem:[%s3051 + $0x68] sm:$0xff]
      %v3062 = vld [vmem:[%s3051 + $0x78] sm:$0xff]
      %v3063 = vld [vmem:[%s3051 + $0x80] sm:$0xff]
      %v3064 = vld [vmem:[%s3051 + $0x90] sm:$0xff]
      %v3065 = vld [vmem:[%s3051 + $0x98] sm:$0xff]
      %v3066 = vld [vmem:[%s3051 + $0xa8] sm:$0xff]
      %v3067 = vld [vmem:[%s3051 + $0xb0] sm:$0xff]
      %v3068 = vld [vmem:[%s3051 + $0xc0] sm:$0xff]
      %v3069 = vld [vmem:[%s3051 + $0xc8] sm:$0xff]
      %v3070 = vld [vmem:[%s3051 + $0xd8] sm:$0xff]
      %v3071 = vld [vmem:[%s3051 + $0xe0] sm:$0xff]
      %v3072 = vld [vmem:[%s3051 + $0xf0] sm:$0xff]
      %v3073 = vld [vmem:[%s3051 + $0xf8] sm:$0xff]
      %v3074 = vld [vmem:[%s3051 + $0x108] sm:$0xff]
      %v3075 = vld [vmem:[%s3051 + $0x110] sm:$0xff]
      %v3076 = vld [vmem:[%s3051 + $0x120] sm:$0xff]
      %v3077 = vld [vmem:[%s3051 + $0x128] sm:$0xff]
      %v3078 = vld [vmem:[%s3051 + $0x138] sm:$0xff]
      %v3079 = vld [vmem:[%s3051 + $0x140] sm:$0xff]
      %v3080 = vld [vmem:[%s3051 + $0x150] sm:$0xff]
      %v3081 = vld [vmem:[%s3051 + $0x158] sm:$0xff]
      %v3082 = vld [vmem:[%s3051 + $0x168] sm:$0xff]
      %v3083 = vld [vmem:[%s3051 + $0x170] sm:$0xff]
      %v3084 = vlaneseq
      %v3085 = vshrl.u32 %v3084, 7
      %v3086 = vsub.s32 6, %v3085
      %v3087 = vrot.slane %v399, %v3086
      %v3088 = vmul.f32 %v3052, %v3087
      %v3089 = vmul.f32 %v3053, %v3087
      %v3090 = vmul.f32 %v3054, %v3087
      %v3091 = vmul.f32 %v3055, %v3087
      %v3092 = vmul.f32 %v3056, %v3087
      %v3093 = vmul.f32 %v3057, %v3087
      %v3094 = vmul.f32 %v3058, %v3087
      %v3095 = vmul.f32 %v3059, %v3087
      %v3096 = vmul.f32 %v3060, %v3087
      %v3097 = vmul.f32 %v3061, %v3087
      %v3098 = vmul.f32 %v3062, %v3087
      %v3099 = vmul.f32 %v3063, %v3087
      %v3100 = vmul.f32 %v3064, %v3087
      %v3101 = vmul.f32 %v3065, %v3087
      %v3102 = vmul.f32 %v3066, %v3087
      %v3103 = vmul.f32 %v3067, %v3087
      %v3104 = vmul.f32 %v3068, %v3087
      %v3105 = vmul.f32 %v3069, %v3087
      %v3106 = vmul.f32 %v3070, %v3087
      %v3107 = vmul.f32 %v3071, %v3087
      %v3108 = vmul.f32 %v3072, %v3087
      %v3109 = vmul.f32 %v3073, %v3087
      %v3110 = vmul.f32 %v3074, %v3087
      %v3111 = vmul.f32 %v3075, %v3087
      %v3112 = vmul.f32 %v3076, %v3087
      %v3113 = vmul.f32 %v3077, %v3087
      %v3114 = vmul.f32 %v3078, %v3087
      %v3115 = vmul.f32 %v3079, %v3087
      %v3116 = vmul.f32 %v3080, %v3087
      %v3117 = vmul.f32 %v3081, %v3087
      %v3118 = vmul.f32 %v3082, %v3087
      %v3119 = vmul.f32 %v3083, %v3087
      %v3120 = vadd.f32 %v3019, %v3088
      %v3121 = vadd.f32 %v3020, %v3089
      %v3122 = vadd.f32 %v3021, %v3090
      %v3123 = vadd.f32 %v3022, %v3091
      %v3124 = vadd.f32 %v3023, %v3092
      %v3125 = vadd.f32 %v3024, %v3093
      %v3126 = vadd.f32 %v3025, %v3094
      %v3127 = vadd.f32 %v3026, %v3095
      %v3128 = vadd.f32 %v3027, %v3096
      %v3129 = vadd.f32 %v3028, %v3097
      %v3130 = vadd.f32 %v3029, %v3098
      %v3131 = vadd.f32 %v3030, %v3099
      %v3132 = vadd.f32 %v3031, %v3100
      %v3133 = vadd.f32 %v3032, %v3101
      %v3134 = vadd.f32 %v3033, %v3102
      %v3135 = vadd.f32 %v3034, %v3103
      %v3136 = vadd.f32 %v3035, %v3104
      %v3137 = vadd.f32 %v3036, %v3105
      %v3138 = vadd.f32 %v3037, %v3106
      %v3139 = vadd.f32 %v3038, %v3107
      %v3140 = vadd.f32 %v3039, %v3108
      %v3141 = vadd.f32 %v3040, %v3109
      %v3142 = vadd.f32 %v3041, %v3110
      %v3143 = vadd.f32 %v3042, %v3111
      %v3144 = vadd.f32 %v3043, %v3112
      %v3145 = vadd.f32 %v3044, %v3113
      %v3146 = vadd.f32 %v3045, %v3114
      %v3147 = vadd.f32 %v3046, %v3115
      %v3148 = vadd.f32 %v3047, %v3116
      %v3149 = vadd.f32 %v3048, %v3117
      %v3150 = vadd.f32 %v3049, %v3118
      %v3151 = vadd.f32 %v3050, %v3119
      %v3152 = vld [vmem:[%s3051 + $0x1] sm:$0xff]
      %v3153 = vld [vmem:[%s3051 + $0x9] sm:$0xff]
      %v3154 = vld [vmem:[%s3051 + $0x19] sm:$0xff]
      %v3155 = vld [vmem:[%s3051 + $0x21] sm:$0xff]
      %v3156 = vld [vmem:[%s3051 + $0x31] sm:$0xff]
      %v3157 = vld [vmem:[%s3051 + $0x39] sm:$0xff]
      %v3158 = vld [vmem:[%s3051 + $0x49] sm:$0xff]
      %v3159 = vld [vmem:[%s3051 + $0x51] sm:$0xff]
      %v3160 = vld [vmem:[%s3051 + $0x61] sm:$0xff]
      %v3161 = vld [vmem:[%s3051 + $0x69] sm:$0xff]
      %v3162 = vld [vmem:[%s3051 + $0x79] sm:$0xff]
      %v3163 = vld [vmem:[%s3051 + $0x81] sm:$0xff]
      %v3164 = vld [vmem:[%s3051 + $0x91] sm:$0xff]
      %v3165 = vld [vmem:[%s3051 + $0x99] sm:$0xff]
      %v3166 = vld [vmem:[%s3051 + $0xa9] sm:$0xff]
      %v3167 = vld [vmem:[%s3051 + $0xb1] sm:$0xff]
      %v3168 = vld [vmem:[%s3051 + $0xc1] sm:$0xff]
      %v3169 = vld [vmem:[%s3051 + $0xc9] sm:$0xff]
      %v3170 = vld [vmem:[%s3051 + $0xd9] sm:$0xff]
      %v3171 = vld [vmem:[%s3051 + $0xe1] sm:$0xff]
      %v3172 = vld [vmem:[%s3051 + $0xf1] sm:$0xff]
      %v3173 = vld [vmem:[%s3051 + $0xf9] sm:$0xff]
      %v3174 = vld [vmem:[%s3051 + $0x109] sm:$0xff]
      %v3175 = vld [vmem:[%s3051 + $0x111] sm:$0xff]
      %v3176 = vld [vmem:[%s3051 + $0x121] sm:$0xff]
      %v3177 = vld [vmem:[%s3051 + $0x129] sm:$0xff]
      %v3178 = vld [vmem:[%s3051 + $0x139] sm:$0xff]
      %v3179 = vld [vmem:[%s3051 + $0x141] sm:$0xff]
      %v3180 = vld [vmem:[%s3051 + $0x151] sm:$0xff]
      %v3181 = vld [vmem:[%s3051 + $0x159] sm:$0xff]
      %v3182 = vld [vmem:[%s3051 + $0x169] sm:$0xff]
      %v3183 = vld [vmem:[%s3051 + $0x171] sm:$0xff]
      %v3184 = vlaneseq
      %v3185 = vshrl.u32 %v3184, 7
      %v3186 = vsub.s32 7, %v3185
      %v3187 = vrot.slane %v399, %v3186
      %v3188 = vmul.f32 %v3152, %v3187
      %v3189 = vmul.f32 %v3153, %v3187
      %v3190 = vmul.f32 %v3154, %v3187
      %v3191 = vmul.f32 %v3155, %v3187
      %v3192 = vmul.f32 %v3156, %v3187
      %v3193 = vmul.f32 %v3157, %v3187
      %v3194 = vmul.f32 %v3158, %v3187
      %v3195 = vmul.f32 %v3159, %v3187
      %v3196 = vmul.f32 %v3160, %v3187
      %v3197 = vmul.f32 %v3161, %v3187
      %v3198 = vmul.f32 %v3162, %v3187
      %v3199 = vmul.f32 %v3163, %v3187
      %v3200 = vmul.f32 %v3164, %v3187
      %v3201 = vmul.f32 %v3165, %v3187
      %v3202 = vmul.f32 %v3166, %v3187
      %v3203 = vmul.f32 %v3167, %v3187
      %v3204 = vmul.f32 %v3168, %v3187
      %v3205 = vmul.f32 %v3169, %v3187
      %v3206 = vmul.f32 %v3170, %v3187
      %v3207 = vmul.f32 %v3171, %v3187
      %v3208 = vmul.f32 %v3172, %v3187
      %v3209 = vmul.f32 %v3173, %v3187
      %v3210 = vmul.f32 %v3174, %v3187
      %v3211 = vmul.f32 %v3175, %v3187
      %v3212 = vmul.f32 %v3176, %v3187
      %v3213 = vmul.f32 %v3177, %v3187
      %v3214 = vmul.f32 %v3178, %v3187
      %v3215 = vmul.f32 %v3179, %v3187
      %v3216 = vmul.f32 %v3180, %v3187
      %v3217 = vmul.f32 %v3181, %v3187
      %v3218 = vmul.f32 %v3182, %v3187
      %v3219 = vmul.f32 %v3183, %v3187
      %v3220 = vadd.f32 %v3120, %v3188
      %v3221 = vadd.f32 %v3121, %v3189
      %v3222 = vadd.f32 %v3122, %v3190
      %v3223 = vadd.f32 %v3123, %v3191
      %v3224 = vadd.f32 %v3124, %v3192
      %v3225 = vadd.f32 %v3125, %v3193
      %v3226 = vadd.f32 %v3126, %v3194
      %v3227 = vadd.f32 %v3127, %v3195
      %v3228 = vadd.f32 %v3128, %v3196
      %v3229 = vadd.f32 %v3129, %v3197
      %v3230 = vadd.f32 %v3130, %v3198
      %v3231 = vadd.f32 %v3131, %v3199
      %v3232 = vadd.f32 %v3132, %v3200
      %v3233 = vadd.f32 %v3133, %v3201
      %v3234 = vadd.f32 %v3134, %v3202
      %v3235 = vadd.f32 %v3135, %v3203
      %v3236 = vadd.f32 %v3136, %v3204
      %v3237 = vadd.f32 %v3137, %v3205
      %v3238 = vadd.f32 %v3138, %v3206
      %v3239 = vadd.f32 %v3139, %v3207
      %v3240 = vadd.f32 %v3140, %v3208
      %v3241 = vadd.f32 %v3141, %v3209
      %v3242 = vadd.f32 %v3142, %v3210
      %v3243 = vadd.f32 %v3143, %v3211
      %v3244 = vadd.f32 %v3144, %v3212
      %v3245 = vadd.f32 %v3145, %v3213
      %v3246 = vadd.f32 %v3146, %v3214
      %v3247 = vadd.f32 %v3147, %v3215
      %v3248 = vadd.f32 %v3148, %v3216
      %v3249 = vadd.f32 %v3149, %v3217
      %v3250 = vadd.f32 %v3150, %v3218
      %v3251 = vadd.f32 %v3151, %v3219
      %v3252 = vld [vmem:[%s3051 + $0x2] sm:$0xff]
      %v3253 = vld [vmem:[%s3051 + $0xa] sm:$0xff]
      %v3254 = vld [vmem:[%s3051 + $0x1a] sm:$0xff]
      %v3255 = vld [vmem:[%s3051 + $0x22] sm:$0xff]
      %v3256 = vld [vmem:[%s3051 + $0x32] sm:$0xff]
      %v3257 = vld [vmem:[%s3051 + $0x3a] sm:$0xff]
      %v3258 = vld [vmem:[%s3051 + $0x4a] sm:$0xff]
      %v3259 = vld [vmem:[%s3051 + $0x52] sm:$0xff]
      %v3260 = vld [vmem:[%s3051 + $0x62] sm:$0xff]
      %v3261 = vld [vmem:[%s3051 + $0x6a] sm:$0xff]
      %v3262 = vld [vmem:[%s3051 + $0x7a] sm:$0xff]
      %v3263 = vld [vmem:[%s3051 + $0x82] sm:$0xff]
      %v3264 = vld [vmem:[%s3051 + $0x92] sm:$0xff]
      %v3265 = vld [vmem:[%s3051 + $0x9a] sm:$0xff]
      %v3266 = vld [vmem:[%s3051 + $0xaa] sm:$0xff]
      %v3267 = vld [vmem:[%s3051 + $0xb2] sm:$0xff]
      %v3268 = vld [vmem:[%s3051 + $0xc2] sm:$0xff]
      %v3269 = vld [vmem:[%s3051 + $0xca] sm:$0xff]
      %v3270 = vld [vmem:[%s3051 + $0xda] sm:$0xff]
      %v3271 = vld [vmem:[%s3051 + $0xe2] sm:$0xff]
      %v3272 = vld [vmem:[%s3051 + $0xf2] sm:$0xff]
      %v3273 = vld [vmem:[%s3051 + $0xfa] sm:$0xff]
      %v3274 = vld [vmem:[%s3051 + $0x10a] sm:$0xff]
      %v3275 = vld [vmem:[%s3051 + $0x112] sm:$0xff]
      %v3276 = vld [vmem:[%s3051 + $0x122] sm:$0xff]
      %v3277 = vld [vmem:[%s3051 + $0x12a] sm:$0xff]
      %v3278 = vld [vmem:[%s3051 + $0x13a] sm:$0xff]
      %v3279 = vld [vmem:[%s3051 + $0x142] sm:$0xff]
      %v3280 = vld [vmem:[%s3051 + $0x152] sm:$0xff]
      %v3281 = vld [vmem:[%s3051 + $0x15a] sm:$0xff]
      %v3282 = vld [vmem:[%s3051 + $0x16a] sm:$0xff]
      %v3283 = vld [vmem:[%s3051 + $0x172] sm:$0xff]
      %v3284 = vlaneseq
      %v3285 = vshrl.u32 %v3284, 7
      %v3286 = vsub.s32 0, %v3285
      %v3287 = vrot.slane %v400, %v3286
      %v3288 = vmul.f32 %v3252, %v3287
      %v3289 = vmul.f32 %v3253, %v3287
      %v3290 = vmul.f32 %v3254, %v3287
      %v3291 = vmul.f32 %v3255, %v3287
      %v3292 = vmul.f32 %v3256, %v3287
      %v3293 = vmul.f32 %v3257, %v3287
      %v3294 = vmul.f32 %v3258, %v3287
      %v3295 = vmul.f32 %v3259, %v3287
      %v3296 = vmul.f32 %v3260, %v3287
      %v3297 = vmul.f32 %v3261, %v3287
      %v3298 = vmul.f32 %v3262, %v3287
      %v3299 = vmul.f32 %v3263, %v3287
      %v3300 = vmul.f32 %v3264, %v3287
      %v3301 = vmul.f32 %v3265, %v3287
      %v3302 = vmul.f32 %v3266, %v3287
      %v3303 = vmul.f32 %v3267, %v3287
      %v3304 = vmul.f32 %v3268, %v3287
      %v3305 = vmul.f32 %v3269, %v3287
      %v3306 = vmul.f32 %v3270, %v3287
      %v3307 = vmul.f32 %v3271, %v3287
      %v3308 = vmul.f32 %v3272, %v3287
      %v3309 = vmul.f32 %v3273, %v3287
      %v3310 = vmul.f32 %v3274, %v3287
      %v3311 = vmul.f32 %v3275, %v3287
      %v3312 = vmul.f32 %v3276, %v3287
      %v3313 = vmul.f32 %v3277, %v3287
      %v3314 = vmul.f32 %v3278, %v3287
      %v3315 = vmul.f32 %v3279, %v3287
      %v3316 = vmul.f32 %v3280, %v3287
      %v3317 = vmul.f32 %v3281, %v3287
      %v3318 = vmul.f32 %v3282, %v3287
      %v3319 = vmul.f32 %v3283, %v3287
      %v3320 = vadd.f32 %v3220, %v3288
      %v3321 = vadd.f32 %v3221, %v3289
      %v3322 = vadd.f32 %v3222, %v3290
      %v3323 = vadd.f32 %v3223, %v3291
      %v3324 = vadd.f32 %v3224, %v3292
      %v3325 = vadd.f32 %v3225, %v3293
      %v3326 = vadd.f32 %v3226, %v3294
      %v3327 = vadd.f32 %v3227, %v3295
      %v3328 = vadd.f32 %v3228, %v3296
      %v3329 = vadd.f32 %v3229, %v3297
      %v3330 = vadd.f32 %v3230, %v3298
      %v3331 = vadd.f32 %v3231, %v3299
      %v3332 = vadd.f32 %v3232, %v3300
      %v3333 = vadd.f32 %v3233, %v3301
      %v3334 = vadd.f32 %v3234, %v3302
      %v3335 = vadd.f32 %v3235, %v3303
      %v3336 = vadd.f32 %v3236, %v3304
      %v3337 = vadd.f32 %v3237, %v3305
      %v3338 = vadd.f32 %v3238, %v3306
      %v3339 = vadd.f32 %v3239, %v3307
      %v3340 = vadd.f32 %v3240, %v3308
      %v3341 = vadd.f32 %v3241, %v3309
      %v3342 = vadd.f32 %v3242, %v3310
      %v3343 = vadd.f32 %v3243, %v3311
      %v3344 = vadd.f32 %v3244, %v3312
      %v3345 = vadd.f32 %v3245, %v3313
      %v3346 = vadd.f32 %v3246, %v3314
      %v3347 = vadd.f32 %v3247, %v3315
      %v3348 = vadd.f32 %v3248, %v3316
      %v3349 = vadd.f32 %v3249, %v3317
      %v3350 = vadd.f32 %v3250, %v3318
      %v3351 = vadd.f32 %v3251, %v3319
      %v3352 = vpack.c.bf16 %v3321, %v3320
      %v3353 = vpack.c.bf16 %v3323, %v3322
      %v3354 = vpack.c.bf16 %v3325, %v3324
      %v3355 = vpack.c.bf16 %v3327, %v3326
      %v3356 = vpack.c.bf16 %v3329, %v3328
      %v3357 = vpack.c.bf16 %v3331, %v3330
      %v3358 = vpack.c.bf16 %v3333, %v3332
      %v3359 = vpack.c.bf16 %v3335, %v3334
      %v3360 = vpack.c.bf16 %v3337, %v3336
      %v3361 = vpack.c.bf16 %v3339, %v3338
      %v3362 = vpack.c.bf16 %v3341, %v3340
      %v3363 = vpack.c.bf16 %v3343, %v3342
      %v3364 = vpack.c.bf16 %v3345, %v3344
      %v3365 = vpack.c.bf16 %v3347, %v3346
      %v3366 = vpack.c.bf16 %v3349, %v3348
      %v3367 = vpack.c.bf16 %v3351, %v3350
      %3369 = vset.pattern.permute.xlu0 0
      %3370 = vperm.xlu0 %3369, %v402
      %v3371 = vpop.permute.xlu0 %3370
      %v3374 = vsel %vm512, %v401, 0
      %v3377 = vsel %vm512, %v3352, 0
      %v3380 = vsel %vm512, %v3353, 0
      %v3383 = vsel %vm512, %v3354, 0
      %v3386 = vsel %vm512, %v3355, 0
      %v3389 = vsel %vm512, %v3356, 0
      %v3392 = vsel %vm512, %v3357, 0
      %v3395 = vsel %vm512, %v3358, 0
      %v3398 = vsel %vm512, %v3359, 0
      %v3401 = vsel %vm512, %v3360, 0
      %v3404 = vsel %vm512, %v3361, 0
      %v3407 = vsel %vm512, %v3362, 0
      %v3410 = vsel %vm512, %v3363, 0
      %v3413 = vsel %vm512, %v3364, 0
      %v3416 = vsel %vm512, %v3365, 0
      %v3419 = vsel %vm512, %v3366, 0
      %v3422 = vsel %vm512, %v3367, 0
      %3424 = vmatprep.subr.bf16.mxu0 0
      %3425 = vmatpush1.bf16.xpose.msra.mxu0 %v3377
      %3426 = vmatprep.subr.bf16.mxu0 0
      %3427 = vmatpush1.bf16.xpose.msra.mxu0 %v3380
      %3428 = vmatprep.subr.bf16.mxu0 0
      %3429 = vmatpush1.bf16.xpose.msra.mxu0 %v3383
      %3430 = vmatprep.subr.bf16.mxu0 0
      %3431 = vmatpush1.bf16.xpose.msra.mxu0 %v3386
      %3432 = vmatprep.subr.bf16.mxu0 0
      %3433 = vmatpush1.bf16.xpose.msra.mxu0 %v3389
      %3434 = vmatprep.subr.bf16.mxu0 0
      %3435 = vmatpush1.bf16.xpose.msra.mxu0 %v3392
      %3436 = vmatprep.subr.bf16.mxu0 0
      %3437 = vmatpush1.bf16.xpose.msra.mxu0 %v3395
      %3438 = vmatprep.subr.bf16.mxu0 0
      %3439 = vmatpush1.bf16.xpose.msra.mxu0 %v3398
      %3440 = vmatprep.subr.bf16.mxu0 0
      %3441 = vmatpush1.bf16.xpose.msra.mxu0 %v3401
      %3442 = vmatprep.subr.bf16.mxu0 0
      %3443 = vmatpush1.bf16.xpose.msra.mxu0 %v3404
      %3444 = vmatprep.subr.bf16.mxu0 0
      %3445 = vmatpush1.bf16.xpose.msra.mxu0 %v3407
      %3446 = vmatprep.subr.bf16.mxu0 0
      %3447 = vmatpush1.bf16.xpose.msra.mxu0 %v3410
      %3448 = vmatprep.subr.bf16.mxu0 0
      %3449 = vmatpush1.bf16.xpose.msra.mxu0 %v3413
      %3450 = vmatprep.subr.bf16.mxu0 0
      %3451 = vmatpush1.bf16.xpose.msra.mxu0 %v3416
      %3452 = vmatprep.subr.bf16.mxu0 0
      %3453 = vmatpush1.bf16.xpose.msra.mxu0 %v3419
      %3454 = vmatprep.subr.bf16.mxu0 0
      %3455 = vmatpush1.bf16.xpose.msra.mxu0 %v3422
      %3456 = vmatprep.mubr.bf16.mxu0 0
      %3457 = vmatmul.mubr.bf16.gmra.mrb[0].mxu0 %v3374
      %v3458 = vpop.f32.mrb[0].mxu0
      %v3459 = vadd.f32 %v3371, %v3458
      %v3460 = vpop.f32.mrb[0].mxu0
      %v3461 = vadd.f32 %v3371, %v3460
      %v3462 = vpop.f32.mrb[0].mxu0
      %v3463 = vpop.f32.mrb[0].mxu0
      %3464 = vdwg.mxu0
      %v3465 = vmax.f32 %v3459, 0.0
      %v3466 = vmax.f32 %v3461, 0.0
      %s3467 = smul.u32 %s350, 16
      %s3468 = sshra.s32 %s3467, 3
      %s3469 = sand.u32 %s3467, 7
      %s3470 = smul.addr %s3468, 4
      %s3471 = scalar_lea.vmem %s338, %s3470
      %v3472 = vld [vmem:[%s3471] sm:$0xf]
      %v3473 = vld [vmem:[%s3471 + $0x4] sm:$0xf]
      %v3474 = vld [vmem:[%s3471 + $0x8] sm:$0xf]
      %v3475 = vld [vmem:[%s3471 + $0xc] sm:$0xf]
      %v3476 = vld [vmem:[%s3471 + $0x10] sm:$0xf]
      %v3477 = vld [vmem:[%s3471 + $0x14] sm:$0xf]
      %v3478 = vld [vmem:[%s3471 + $0x18] sm:$0xf]
      %v3479 = vld [vmem:[%s3471 + $0x1c] sm:$0xf]
      %v3480 = vld [vmem:[%s3471 + $0x20] sm:$0xf]
      %v3481 = vld [vmem:[%s3471 + $0x24] sm:$0xf]
      %v3482 = vld [vmem:[%s3471 + $0x28] sm:$0xf]
      %v3483 = vld [vmem:[%s3471 + $0x2c] sm:$0xf]
      %v3484 = vld [vmem:[%s3471 + $0x30] sm:$0xf]
      %v3485 = vld [vmem:[%s3471 + $0x34] sm:$0xf]
      %v3486 = vld [vmem:[%s3471 + $0x38] sm:$0xf]
      %v3487 = vld [vmem:[%s3471 + $0x3c] sm:$0xf]
      %v3488 = vld [vmem:[%s3471 + $0x40] sm:$0xf]
      %v3489 = vld [vmem:[%s3471 + $0x44] sm:$0xf]
      %v3490 = vld [vmem:[%s3471 + $0x48] sm:$0xf]
      %v3491 = vld [vmem:[%s3471 + $0x4c] sm:$0xf]
      %v3492 = vld [vmem:[%s3471 + $0x50] sm:$0xf]
      %v3493 = vld [vmem:[%s3471 + $0x54] sm:$0xf]
      %v3494 = vld [vmem:[%s3471 + $0x58] sm:$0xf]
      %v3495 = vld [vmem:[%s3471 + $0x5c] sm:$0xf]
      %v3496 = vld [vmem:[%s3471 + $0x60] sm:$0xf]
      %v3497 = vld [vmem:[%s3471 + $0x64] sm:$0xf]
      %v3498 = vld [vmem:[%s3471 + $0x68] sm:$0xf]
      %v3499 = vld [vmem:[%s3471 + $0x6c] sm:$0xf]
      %v3500 = vld [vmem:[%s3471 + $0x70] sm:$0xf]
      %v3501 = vld [vmem:[%s3471 + $0x74] sm:$0xf]
      %v3502 = vld [vmem:[%s3471 + $0x78] sm:$0xf]
      %v3503 = vld [vmem:[%s3471 + $0x7c] sm:$0xf]
      %v3504 = vld [vmem:[%s7] sm:$0x3]
      %v3537 = vunpack.c.l.b16 %v3472
      %v3538 = vunpack.c.l.b16 %v3473
      %v3539 = vunpack.c.l.b16 %v3474
      %v3540 = vunpack.c.l.b16 %v3475
      %v3541 = vunpack.c.l.b16 %v3476
      %v3542 = vunpack.c.l.b16 %v3477
      %v3543 = vunpack.c.l.b16 %v3478
      %v3544 = vunpack.c.l.b16 %v3479
      %v3545 = vunpack.c.l.b16 %v3480
      %v3546 = vunpack.c.l.b16 %v3481
      %v3547 = vunpack.c.l.b16 %v3482
      %v3548 = vunpack.c.l.b16 %v3483
      %v3549 = vunpack.c.l.b16 %v3484
      %v3550 = vunpack.c.l.b16 %v3485
      %v3551 = vunpack.c.l.b16 %v3486
      %v3552 = vunpack.c.l.b16 %v3487
      %v3553 = vunpack.c.l.b16 %v3488
      %v3554 = vunpack.c.l.b16 %v3489
      %v3555 = vunpack.c.l.b16 %v3490
      %v3556 = vunpack.c.l.b16 %v3491
      %v3557 = vunpack.c.l.b16 %v3492
      %v3558 = vunpack.c.l.b16 %v3493
      %v3559 = vunpack.c.l.b16 %v3494
      %v3560 = vunpack.c.l.b16 %v3495
      %v3561 = vunpack.c.l.b16 %v3496
      %v3562 = vunpack.c.l.b16 %v3497
      %v3563 = vunpack.c.l.b16 %v3498
      %v3564 = vunpack.c.l.b16 %v3499
      %v3565 = vunpack.c.l.b16 %v3500
      %v3566 = vunpack.c.l.b16 %v3501
      %v3567 = vunpack.c.l.b16 %v3502
      %v3568 = vunpack.c.l.b16 %v3503
      %v3569 = vpack.c.b16 %v3538, %v3537
      %v3570 = vpack.c.b16 %v3540, %v3539
      %v3571 = vpack.c.b16 %v3542, %v3541
      %v3572 = vpack.c.b16 %v3544, %v3543
      %v3573 = vpack.c.b16 %v3546, %v3545
      %v3574 = vpack.c.b16 %v3548, %v3547
      %v3575 = vpack.c.b16 %v3550, %v3549
      %v3576 = vpack.c.b16 %v3552, %v3551
      %v3577 = vpack.c.b16 %v3554, %v3553
      %v3578 = vpack.c.b16 %v3556, %v3555
      %v3579 = vpack.c.b16 %v3558, %v3557
      %v3580 = vpack.c.b16 %v3560, %v3559
      %v3581 = vpack.c.b16 %v3562, %v3561
      %v3582 = vpack.c.b16 %v3564, %v3563
      %v3583 = vpack.c.b16 %v3566, %v3565
      %v3584 = vpack.c.b16 %v3568, %v3567
      %v3586 = vsel %vm512, %v3504, 0
      %v3589 = vsel %vm512, %v3569, 0
      %v3592 = vsel %vm512, %v3570, 0
      %v3595 = vsel %vm512, %v3571, 0
      %v3598 = vsel %vm512, %v3572, 0
      %v3601 = vsel %vm512, %v3573, 0
      %v3604 = vsel %vm512, %v3574, 0
      %v3607 = vsel %vm512, %v3575, 0
      %v3610 = vsel %vm512, %v3576, 0
      %v3613 = vsel %vm512, %v3577, 0
      %v3616 = vsel %vm512, %v3578, 0
      %v3619 = vsel %vm512, %v3579, 0
      %v3622 = vsel %vm512, %v3580, 0
      %v3625 = vsel %vm512, %v3581, 0
      %v3628 = vsel %vm512, %v3582, 0
      %v3631 = vsel %vm512, %v3583, 0
      %v3634 = vsel %vm512, %v3584, 0
      %3636 = vmatprep.subr.bf16.mxu0 0
      %3637 = vmatpush1.bf16.xpose.msra.mxu0 %v3589
      %3638 = vmatprep.subr.bf16.mxu0 0
      %3639 = vmatpush1.bf16.xpose.msra.mxu0 %v3592
      %3640 = vmatprep.subr.bf16.mxu0 0
      %3641 = vmatpush1.bf16.xpose.msra.mxu0 %v3595
      %3642 = vmatprep.subr.bf16.mxu0 0
      %3643 = vmatpush1.bf16.xpose.msra.mxu0 %v3598
      %3644 = vmatprep.subr.bf16.mxu0 0
      %3645 = vmatpush1.bf16.xpose.msra.mxu0 %v3601
      %3646 = vmatprep.subr.bf16.mxu0 0
      %3647 = vmatpush1.bf16.xpose.msra.mxu0 %v3604
      %3648 = vmatprep.subr.bf16.mxu0 0
      %3649 = vmatpush1.bf16.xpose.msra.mxu0 %v3607
      %3650 = vmatprep.subr.bf16.mxu0 0
      %3651 = vmatpush1.bf16.xpose.msra.mxu0 %v3610
      %3652 = vmatprep.subr.bf16.mxu0 0
      %3653 = vmatpush1.bf16.xpose.msra.mxu0 %v3613
      %3654 = vmatprep.subr.bf16.mxu0 0
      %3655 = vmatpush1.bf16.xpose.msra.mxu0 %v3616
      %3656 = vmatprep.subr.bf16.mxu0 0
      %3657 = vmatpush1.bf16.xpose.msra.mxu0 %v3619
      %3658 = vmatprep.subr.bf16.mxu0 0
      %3659 = vmatpush1.bf16.xpose.msra.mxu0 %v3622
      %3660 = vmatprep.subr.bf16.mxu0 0
      %3661 = vmatpush1.bf16.xpose.msra.mxu0 %v3625
      %3662 = vmatprep.subr.bf16.mxu0 0
      %3663 = vmatpush1.bf16.xpose.msra.mxu0 %v3628
      %3664 = vmatprep.subr.bf16.mxu0 0
      %3665 = vmatpush1.bf16.xpose.msra.mxu0 %v3631
      %3666 = vmatprep.subr.bf16.mxu0 0
      %3667 = vmatpush1.bf16.xpose.msra.mxu0 %v3634
      %3668 = vmatprep.mubr.bf16.mxu0 0
      %3669 = vmatmul.mubr.bf16.gmra.mrb[0].mxu0 %v3586
      %v3670 = vpop.f32.mrb[0].mxu0
      %v3671 = vadd.f32 0.0, %v3670
      %v3672 = vpop.f32.mrb[0].mxu0
      %v3673 = vadd.f32 0.0, %v3672
      %v3674 = vpop.f32.mrb[0].mxu0
      %v3675 = vpop.f32.mrb[0].mxu0
      %3676 = vdwg.mxu0
      %v3677 = vpack.c.bf16 %v3671, %v3671
      %v3678 = vpack.c.bf16 %v3673, %v3673
      %v3681 = vunpack.c.l.b16 %v3677
      %v3682 = vunpack.c.l.b16 %v3678
      %v3683 = vpack.c.b16 %v3682, %v3681
      %3685 = vst [vmem:[%s347] sm:$0x33] %v3683
      %v3686 = vpack.c.bf16 %v3465, %v3465
      %v3687 = vpack.c.bf16 %v3466, %v3466
      %v3690 = vunpack.c.l.b16 %v3686
      %v3691 = vunpack.c.l.b16 %v3687
      %v3692 = vpack.c.b16 %v3691, %v3690
      %v3693 = vrot.slane %v3692, 6
      %3695 = vst [vmem:[%s347] sm:$0xcc] %v3693
      %s3696 = smul.u32 2, %s24
      %p3697 = scmp.lt.s32.totalorder %s23, 1
      %s3698 = scalar_select %p3697, %s23, 1
      %p3699 = scmp.lt.s32.totalorder %s3696, 1
      %s3700 = scalar_select %p3699, %s3696, 1
      %s3701 = smul.addr %s3698, 2
      %s3702 = sadd.s32 %s3700, %s3701
      %s3703 = smul.addr %s3702, 4
      %s3704 = scalar_lea.vmem %s8, %s3703
      // Predicated region
      $region61: #{_lambda_.1} parent=51 // pred_check
        %p3705 = pneg %p229
      $region62: #{_lambda_.1} parent=51 // pred_check_branch
        %3707 = sbr.rel (%p3705) target = $region64
      $region63: #{_lambda_.1} parent=51 // pred_region
        %s3708 = smul.u32 2, %s24
      $region64: #{_lambda_.1} parent=51 // pred_fallthru
        _
    $region52: #{_lambda_.1} parent=5 // pred_fallthru
      _
    %p3709 = scmp.le.s32.totalorder 2, %s14
    // Predicated region
    $region65: #{_lambda_.1} parent=5 // pred_check
      %p3710 = pneg %p3709
    $region66: #{_lambda_.1} parent=5 // pred_check_branch
      %3712 = sbr.rel (%p3710) target = $region68
    $region67: #{_lambda_.1} parent=5 // pred_region
      %s3713 = ssub.s32 %s14, 2
      // Predicated region
      $region69: #{_lambda_.1} parent=67 // pred_check
        %p3714 = pneg %p235
      $region70: #{_lambda_.1} parent=67 // pred_check_branch
        %3716 = sbr.rel (%p3714) target = $region72
      $region71: #{_lambda_.1} parent=67 // pred_region
        %s3717 = smul.u32 2, %s26
        %p3718 = scmp.lt.s32.totalorder %s25, 1
        %s3719 = scalar_select %p3718, %s25, 1
        %p3720 = scmp.lt.s32.totalorder %s3717, 1
        %s3721 = scalar_select %p3720, %s3717, 1
        %s3722 = smul.addr %s3719, 2
        %s3723 = sadd.s32 %s3721, %s3722
        %s3724 = smul.addr %s3723, 4
        %s3725 = scalar_lea.vmem %s8, %s3724
      $region72: #{_lambda_.1} parent=67 // pred_fallthru
        _
    $region68: #{_lambda_.1} parent=5 // pred_fallthru
      _
  $region6: #{_lambda_.1} parent=0 // loop_footer
    %s18 = sadd.s32 1, %s14
  $region7: #{_lambda_.1} parent=0 // loop_footer_branch
    %13 = sbr.rel target = $region3
  $region8: #{_lambda_.1} parent=0 // loop_exit
    _

</llo_original>
